<compile_context>
chip_gen: v7x
topology: tpu7x:2x2x1
jax: 0.10.0
libtpu: 0.0.40
codegen_flags: <defaults>
</compile_context>

<pallas_src>
import numpy as np

import jax
import jax.numpy as jnp
from jax import lax
from jax.experimental import pallas as pl
from jax.experimental.pallas import tpu as pltpu


# ----------------------------------------------------------------------------
# Problem sizes (synthetic concrete sub-modules)
# ----------------------------------------------------------------------------
B = 2            # batch
H = W = 16       # input spatial
CIN = 3          # RGB input channels (zero-padded to 8 at the model boundary)
CIN_PAD = 8
C0, C1, C2, C3 = 8, 16, 32, 64     # encoder channel widths
M_ITEMS = 32                        # memory items per scale
PROMPT = 64                         # global prompt width

N0 = B * H * W                      # 512 cols at scale 0
N1 = B * (H // 2) * (W // 2)        # 128 cols at scale 1
N2 = B * (H // 4) * (W // 4)        # 32  cols at scale 2
N3 = B * (H // 8) * (W // 8)        # 8   cols at scale 3
HW1 = (H // 2) * (W // 2)           # 64 pixels / image at scale 1
HW2 = (H // 4) * (W // 4)           # 16
HW3 = (H // 8) * (W // 8)           # 4


# ----------------------------------------------------------------------------
# Slab packing: many small 2-D blocks -> one array.  Chunk row offsets are
# aligned to the dtype sublane tile so in-kernel static slices stay aligned.
# ----------------------------------------------------------------------------
class SlabLayout:
    def __init__(self, width, align=8):
        self.width = width
        self.align = align
        self.chunks = {}
        self.rows = 0

    def add(self, name, rows, cols):
        assert cols <= self.width, (name, cols, self.width)
        self.chunks[name] = (self.rows, rows, cols)
        self.rows += ((rows + self.align - 1) // self.align) * self.align

    def read(self, ref, name):
        off, r, c = self.chunks[name]
        return ref[off:off + r, :c]          # static, tile-aligned window

    def pack(self, arrays, dtype):
        slab = np.zeros((self.rows, self.width), np.float32)
        for name, (off, r, c) in self.chunks.items():
            a = np.asarray(arrays[name], np.float32)
            assert a.shape == (r, c), (name, a.shape, (r, c))
            slab[off:off + r, :c] = a
        return jnp.asarray(slab).astype(dtype)


# weights: [Cout, Cin] blocks, f32, width 64 (max Cin)
W_LAYOUT = SlabLayout(64, align=8)
for _n, _r, _c in [
    ("e0", C0, CIN_PAD), ("e1", C1, C0), ("e2", C2, C1), ("e3", C3, C2),
    ("m1n2", M_ITEMS, C1), ("m1T", C1, M_ITEMS),
    ("m2n2", M_ITEMS, C2), ("m2T", C2, M_ITEMS),
    ("pr1", PROMPT, C1), ("pr2", PROMPT, C2), ("pr3", PROMPT, C3),
    ("g1", C1, PROMPT), ("g2", C2, PROMPT),
    ("d2u", C2, C3), ("d2s", C2, C2),
    ("d1u", C1, C2), ("d1s", C1, C1),
    ("d0u", C0, C1), ("d0s", C0, C0),
    ("head", 1, C0),
]:
    W_LAYOUT.add(_n, _r, _c)

# biases / squared memory norms: [C, 1] columns, f32 (only ~1.5 KiB of DMA)
B_LAYOUT = SlabLayout(1, align=8)
for _n, _r in [
    ("b_e0", C0), ("b_e1", C1), ("b_e2", C2), ("b_e3", C3),
    ("m1sq", M_ITEMS), ("m2sq", M_ITEMS), ("b_pr", PROMPT),
    ("b_g1", C1), ("b_g2", C2),
    ("b_d2", C2), ("b_d1", C1), ("b_d0", C0), ("b_head", 1),
]:
    B_LAYOUT.add(_n, _r, 1)

# structure constants: pool^T per scale + batch-indicator rows, bf16 (exact)
S_LAYOUT = SlabLayout(128, align=16)
for _n, _r, _c in [
    ("P0T", N0, N1), ("P1T", N1, N2), ("P2T", N2, N3),
    ("E1T", B, N1), ("E2T", B, N2), ("E3T", B, N3),
]:
    S_LAYOUT.add(_n, _r, _c)


# ----------------------------------------------------------------------------
# The fused kernel: whole MPNet forward in one invocation, everything in VMEM.
# Activations are [C, N] (channels on sublanes, spatial*batch on lanes).
# ----------------------------------------------------------------------------
def _mpnet_kernel(x_ref, w_ref, b_ref, s_ref, o_ref):
    f32 = jnp.float32

    wz = lambda n: W_LAYOUT.read(w_ref, n)
    bz = lambda n: B_LAYOUT.read(b_ref, n)
    sz = lambda n: S_LAYOUT.read(s_ref, n).astype(f32)   # bf16 values are exact

    def mm(a, b):
        return jnp.dot(a, b, preferred_element_type=f32)

    def mm_rt(a, b):
        # a[M, K] x b[N, K] -> [M, N]  (contract b's lane axis: MXU transpose_rhs)
        return lax.dot_general(a, b, (((1,), (1,)), ((), ())),
                               preferred_element_type=f32)

    def relu(v):
        return jnp.maximum(v, 0.0)

    # structure constants, converted once and reused
    p0t, p1t, p2t = sz("P0T"), sz("P1T"), sz("P2T")      # [N_in, N_out] pool^T
    e1t, e2t, e3t = sz("E1T"), sz("E2T"), sz("E3T")      # [B, N] batch indicator

    # ---- encoder: 1x1 convs (+relu); 2x2 avg-pool expressed as f @ P^T -----
    x = x_ref[...]                                            # [8,  N0]
    f0 = relu(mm(wz("e0"), x) + bz("b_e0"))                   # [C0, N0]
    f1 = relu(mm(wz("e1"), mm(f0, p0t)) + bz("b_e1"))         # [C1, N1]
    f2 = relu(mm(wz("e2"), mm(f1, p1t)) + bz("b_e2"))         # [C2, N2]
    f3 = relu(mm(wz("e3"), mm(f2, p2t)) + bz("b_e3"))         # [C3, N3]

    # ---- memory bank: strict first-argmin nearest (L2) item -> residual ----
    # ||f||^2 is constant per column, so argmin(||m||^2 - 2<m,f>) is identical.
    def mem_residual(f, mem_n2, mem_t, msq):
        d = msq + mm(mem_n2, f)                               # [M, N]
        dmin = jnp.min(d, axis=0, keepdims=True)              # [1, N]
        item = lax.broadcasted_iota(jnp.int32, d.shape, 0)
        first = jnp.min(jnp.where(d <= dmin, item, d.shape[0]),
                        axis=0, keepdims=True)
        onehot = (item == first).astype(f32)                  # first argmin
        return f - mm(mem_t, onehot)

    dis1 = mem_residual(f1, wz("m1n2"), wz("m1T"), bz("m1sq"))    # [C1, N1]
    dis2 = mem_residual(f2, wz("m2n2"), wz("m2T"), bz("m2sq"))    # [C2, N2]

    # ---- promote: per-scale GAP (batch sums; 1/(H*W) folded into weights) --
    s1 = mm_rt(dis1, e1t)                                     # [C1, B]
    s2 = mm_rt(dis2, e2t)                                     # [C2, B]
    s3 = mm_rt(f3, e3t)                                       # [C3, B]
    prompt = relu(mm(wz("pr1"), s1) + mm(wz("pr2"), s2)
                  + mm(wz("pr3"), s3) + bz("b_pr"))           # [PROMPT, B]

    # ---- internal model: per-channel sigmoid gates, broadcast over batch ---
    gate1 = jax.nn.sigmoid(mm(wz("g1"), prompt) + bz("b_g1"))     # [C1, B]
    gate2 = jax.nn.sigmoid(mm(wz("g2"), prompt) + bz("b_g2"))     # [C2, B]
    p1 = f1 * mm(gate1, e1t)                                  # [C1, N1]
    p2 = f2 * mm(gate2, e2t)                                  # [C2, N2]

    # ---- decoder: up-branch 1x1 conv at LOW res; nearest-up == 4 * (t @ P),
    # the 4x is folded into the d*u weights, so only P^T is needed -----------
    d2 = relu(mm_rt(mm(wz("d2u"), f3), p2t) + mm(wz("d2s"), p2) + bz("b_d2"))
    d1 = relu(mm_rt(mm(wz("d1u"), d2), p1t) + mm(wz("d1s"), p1) + bz("b_d1"))
    d0 = relu(mm_rt(mm(wz("d0u"), d1), p0t) + mm(wz("d0s"), f0) + bz("b_d0"))

    # ---- Cout=1 head: lane-dense [1, N0] store ------------------------------
    o_ref[...] = (mm(wz("head"), d0) + bz("b_head")).astype(o_ref.dtype)


# ----------------------------------------------------------------------------
# Host-side structure matrices (pool^T and batch-indicator rows)
# ----------------------------------------------------------------------------
def _pool_T(b, h, w):
    """Transposed 2x2 average-pool matrix: [b*h*w, b*(h//2)*(w//2)]."""
    ho, wo = h // 2, w // 2
    m = np.zeros((b * h * w, b * ho * wo), np.float32)
    for bb in range(b):
        for i in range(h):
            for j in range(w):
                m[bb * h * w + i * w + j,
                  bb * ho * wo + (i // 2) * wo + (j // 2)] = 0.25
    return m


def _batch_ind_T(b, n_per):
    """[B, B*n_per] one-hot batch-membership indicator."""
    m = np.zeros((b, b * n_per), np.float32)
    for bb in range(b):
        m[bb, bb * n_per:(bb + 1) * n_per] = 1.0
    return m


# ----------------------------------------------------------------------------
# Parameter initialization + slab packing (deterministic, in-script)
# ----------------------------------------------------------------------------
def _dense(key, cin, cout):
    w = jax.random.normal(key, (cin, cout), dtype=jnp.float32) / jnp.sqrt(
        jnp.float32(cin))
    return np.asarray(w), np.zeros((cout,), np.float32)


def build_slabs():
    keys = jax.random.split(jax.random.PRNGKey(42), 16)
    # encoder (first layer zero-padded Cin 3 -> 8; padded input rows are 0)
    w_e0, b_e0 = _dense(keys[0], CIN, C0)
    w_e0 = np.concatenate([w_e0, np.zeros((CIN_PAD - CIN, C0), np.float32)], 0)
    w_e1, b_e1 = _dense(keys[1], C0, C1)
    w_e2, b_e2 = _dense(keys[2], C1, C2)
    w_e3, b_e3 = _dense(keys[3], C2, C3)
    # memory banks
    mem1 = np.asarray(jax.random.normal(keys[4], (M_ITEMS, C1), jnp.float32)) * 0.5
    mem2 = np.asarray(jax.random.normal(keys[5], (M_ITEMS, C2), jnp.float32)) * 0.5
    # promote: (16 + 32 + 64) -> 64, stored split (no in-kernel concat)
    w_pr, b_pr = _dense(keys[6], C1 + C2 + C3, PROMPT)
    # internal model: prompt -> per-scale channel gates
    w_g1, b_g1 = _dense(keys[7], PROMPT, C1)
    w_g2, b_g2 = _dense(keys[8], PROMPT, C2)
    # decoder 1x1 convs, split into up-branch / skip-branch halves
    w_d2, b_d2 = _dense(keys[9], C3 + C2, C2)
    w_d1, b_d1 = _dense(keys[10], C2 + C1, C1)
    w_d0, b_d0 = _dense(keys[11], C1 + C0, C0)
    # head
    w_hd, b_hd = _dense(keys[12], C0, 1)

    wslab = W_LAYOUT.pack({
        "e0": w_e0.T, "e1": w_e1.T, "e2": w_e2.T, "e3": w_e3.T,
        "m1n2": -2.0 * mem1, "m1T": mem1.T,           # -2x folded for distance
        "m2n2": -2.0 * mem2, "m2T": mem2.T,
        "pr1": w_pr[:C1].T / HW1,                     # GAP 1/(H*W) folded in
        "pr2": w_pr[C1:C1 + C2].T / HW2,
        "pr3": w_pr[C1 + C2:].T / HW3,
        "g1": w_g1.T, "g2": w_g2.T,
        "d2u": 4.0 * w_d2[:C3].T, "d2s": w_d2[C3:].T,  # 4x upsample folded in
        "d1u": 4.0 * w_d1[:C2].T, "d1s": w_d1[C2:].T,
        "d0u": 4.0 * w_d0[:C1].T, "d0s": w_d0[C1:].T,
        "head": w_hd.T,
    }, jnp.float32)

    bslab = B_LAYOUT.pack({
        "b_e0": b_e0[:, None], "b_e1": b_e1[:, None],
        "b_e2": b_e2[:, None], "b_e3": b_e3[:, None],
        "m1sq": np.sum(mem1 * mem1, 1)[:, None],
        "m2sq": np.sum(mem2 * mem2, 1)[:, None],
        "b_pr": b_pr[:, None],
        "b_g1": b_g1[:, None], "b_g2": b_g2[:, None],
        "b_d2": b_d2[:, None], "b_d1": b_d1[:, None], "b_d0": b_d0[:, None],
        "b_head": b_hd[:, None],
    }, jnp.float32)

    sslab = S_LAYOUT.pack({
        "P0T": _pool_T(B, H, W),
        "P1T": _pool_T(B, H // 2, W // 2),
        "P2T": _pool_T(B, H // 4, W // 4),
        "E1T": _batch_ind_T(B, HW1),
        "E2T": _batch_ind_T(B, HW2),
        "E3T": _batch_ind_T(B, HW3),
    }, jnp.bfloat16)   # values 0 / 0.25 / 1.0 are exact in bf16

    return wslab, bslab, sslab


# ----------------------------------------------------------------------------
# MPNet forward = layout plumbing + one fused pallas_call (4 input DMAs)
# ----------------------------------------------------------------------------
def mpnet_forward(wslab, bslab, sslab, x_nchw):
    # NCHW [B,3,H,W] -> channels-on-sublanes [CIN_PAD, B*H*W]; padded channel
    # rows are zero (matches the zero rows appended to w_e0).
    x = x_nchw.astype(jnp.float32).reshape(B, CIN, H * W)
    x = jnp.transpose(x, (1, 0, 2)).reshape(CIN, B * H * W)
    x = jnp.pad(x, ((0, CIN_PAD - CIN), (0, 0)))

    out = pl.pallas_call(
        _mpnet_kernel,
        out_shape=jax.ShapeDtypeStruct((1, N0), jnp.float32),
        in_specs=[pl.BlockSpec(memory_space=pltpu.MemorySpace.VMEM)] * 4,
        out_specs=pl.BlockSpec(memory_space=pltpu.MemorySpace.VMEM),
    )(x, wslab, bslab, sslab)

    # lane-dense [1, B*H*W] -> NCHW [B, 1, H, W]
    return out.reshape(B, H, W)[:, None, :, :]


if __name__ == "__main__":
    wslab, bslab, sslab = build_slabs()
    x = jax.random.normal(jax.random.PRNGKey(0), (B, CIN, H, W),
                          dtype=jnp.float32)
    fwd = jax.jit(lambda a: mpnet_forward(wslab, bslab, sslab, a))
    out = fwd(x)
    jax.block_until_ready(out)
    assert out.shape == (B, 1, H, W), out.shape
    print("KERNEL_OK")
</pallas_src>

<mosaic_0001>
module attributes {stable_mosaic.version = 11 : i64} {
  func.func @_mpnet_kernel(%arg0: memref<8x512xf32, #tpu.memory_space<vmem>>, %arg1: memref<592x64xf32, #tpu.memory_space<vmem>>, %arg2: memref<360x1xf32, #tpu.memory_space<vmem>>, %arg3: memref<720x128xbf16, #tpu.memory_space<vmem>>, %arg4: memref<1x512xf32, #tpu.memory_space<vmem>>) attributes {dimension_semantics = [], scalar_prefetch = 0 : i64, scratch_operands = 0 : i64, tpu.core_type = #tpu.core_type<tc>} {
    %c0 = arith.constant 0 : index
    %c0_0 = arith.constant 0 : index
    %0 = vector.load %arg3[%c0, %c0_0] : memref<720x128xbf16, #tpu.memory_space<vmem>>, vector<512x128xbf16>
    %1 = arith.extf %0 : vector<512x128xbf16> to vector<512x128xf32>
    %c512 = arith.constant 512 : index
    %c0_1 = arith.constant 0 : index
    %2 = vector.load %arg3[%c512, %c0_1] : memref<720x128xbf16, #tpu.memory_space<vmem>>, vector<128x32xbf16>
    %3 = arith.extf %2 : vector<128x32xbf16> to vector<128x32xf32>
    %c640 = arith.constant 640 : index
    %c0_2 = arith.constant 0 : index
    %4 = vector.load %arg3[%c640, %c0_2] : memref<720x128xbf16, #tpu.memory_space<vmem>>, vector<32x8xbf16>
    %5 = arith.extf %4 : vector<32x8xbf16> to vector<32x8xf32>
    %c672 = arith.constant 672 : index
    %c0_3 = arith.constant 0 : index
    %6 = vector.load %arg3[%c672, %c0_3] : memref<720x128xbf16, #tpu.memory_space<vmem>>, vector<2x128xbf16>
    %7 = arith.extf %6 : vector<2x128xbf16> to vector<2x128xf32>
    %c688 = arith.constant 688 : index
    %c0_4 = arith.constant 0 : index
    %8 = vector.load %arg3[%c688, %c0_4] : memref<720x128xbf16, #tpu.memory_space<vmem>>, vector<2x32xbf16>
    %9 = arith.extf %8 : vector<2x32xbf16> to vector<2x32xf32>
    %c704 = arith.constant 704 : index
    %c0_5 = arith.constant 0 : index
    %10 = vector.load %arg3[%c704, %c0_5] : memref<720x128xbf16, #tpu.memory_space<vmem>>, vector<2x8xbf16>
    %11 = arith.extf %10 : vector<2x8xbf16> to vector<2x8xf32>
    %c0_6 = arith.constant 0 : index
    %c0_7 = arith.constant 0 : index
    %12 = vector.load %arg0[%c0_6, %c0_7] : memref<8x512xf32, #tpu.memory_space<vmem>>, vector<8x512xf32>
    %c0_8 = arith.constant 0 : index
    %c0_9 = arith.constant 0 : index
    %13 = vector.load %arg1[%c0_8, %c0_9] : memref<592x64xf32, #tpu.memory_space<vmem>>, vector<8x8xf32>
    %cst = arith.constant dense<0.000000e+00> : vector<8x512xf32>
    %14 = tpu.matmul %13, %12, %cst {dimension_numbers = #tpu.dot_dimension_numbers<[1], [0], [0], [1], [0, 0, 1, 1], [], []>} : vector<8x8xf32>, vector<8x512xf32>, vector<8x512xf32> -> vector<8x512xf32>
    %c0_10 = arith.constant 0 : index
    %c0_11 = arith.constant 0 : index
    %15 = vector.load %arg2[%c0_10, %c0_11] : memref<360x1xf32, #tpu.memory_space<vmem>>, vector<8x1xf32>
    %16 = vector.broadcast %15 : vector<8x1xf32> to vector<8x512xf32>
    %17 = arith.addf %14, %16 : vector<8x512xf32>
    %cst_12 = arith.constant 0.000000e+00 : f32
    %18 = vector.broadcast %cst_12 : f32 to vector<8x512xf32>
    %19 = arith.maximumf %17, %18 : vector<8x512xf32>
    %c8 = arith.constant 8 : index
    %c0_13 = arith.constant 0 : index
    %20 = vector.load %arg1[%c8, %c0_13] : memref<592x64xf32, #tpu.memory_space<vmem>>, vector<16x8xf32>
    %cst_14 = arith.constant dense<0.000000e+00> : vector<8x128xf32>
    %21 = tpu.matmul %19, %1, %cst_14 {dimension_numbers = #tpu.dot_dimension_numbers<[1], [0], [0], [1], [0, 0, 1, 1], [], []>} : vector<8x512xf32>, vector<512x128xf32>, vector<8x128xf32> -> vector<8x128xf32>
    %cst_15 = arith.constant dense<0.000000e+00> : vector<16x128xf32>
    %22 = tpu.matmul %20, %21, %cst_15 {dimension_numbers = #tpu.dot_dimension_numbers<[1], [0], [0], [1], [0, 0, 1, 1], [], []>} : vector<16x8xf32>, vector<8x128xf32>, vector<16x128xf32> -> vector<16x128xf32>
    %c8_16 = arith.constant 8 : index
    %c0_17 = arith.constant 0 : index
    %23 = vector.load %arg2[%c8_16, %c0_17] : memref<360x1xf32, #tpu.memory_space<vmem>>, vector<16x1xf32>
    %24 = vector.broadcast %23 : vector<16x1xf32> to vector<16x128xf32>
    %25 = arith.addf %22, %24 : vector<16x128xf32>
    %cst_18 = arith.constant 0.000000e+00 : f32
    %26 = vector.broadcast %cst_18 : f32 to vector<16x128xf32>
    %27 = arith.maximumf %25, %26 : vector<16x128xf32>
    %c24 = arith.constant 24 : index
    %c0_19 = arith.constant 0 : index
    %28 = vector.load %arg1[%c24, %c0_19] : memref<592x64xf32, #tpu.memory_space<vmem>>, vector<32x16xf32>
    %cst_20 = arith.constant dense<0.000000e+00> : vector<16x32xf32>
    %29 = tpu.matmul %27, %3, %cst_20 {dimension_numbers = #tpu.dot_dimension_numbers<[1], [0], [0], [1], [0, 0, 1, 1], [], []>} : vector<16x128xf32>, vector<128x32xf32>, vector<16x32xf32> -> vector<16x32xf32>
    %cst_21 = arith.constant dense<0.000000e+00> : vector<32x32xf32>
    %30 = tpu.matmul %28, %29, %cst_21 {dimension_numbers = #tpu.dot_dimension_numbers<[1], [0], [0], [1], [0, 0, 1, 1], [], []>} : vector<32x16xf32>, vector<16x32xf32>, vector<32x32xf32> -> vector<32x32xf32>
    %c24_22 = arith.constant 24 : index
    %c0_23 = arith.constant 0 : index
    %31 = vector.load %arg2[%c24_22, %c0_23] : memref<360x1xf32, #tpu.memory_space<vmem>>, vector<32x1xf32>
    %32 = vector.broadcast %31 : vector<32x1xf32> to vector<32x32xf32>
    %33 = arith.addf %30, %32 : vector<32x32xf32>
    %cst_24 = arith.constant 0.000000e+00 : f32
    %34 = vector.broadcast %cst_24 : f32 to vector<32x32xf32>
    %35 = arith.maximumf %33, %34 : vector<32x32xf32>
    %c56 = arith.constant 56 : index
    %c0_25 = arith.constant 0 : index
    %36 = vector.load %arg1[%c56, %c0_25] : memref<592x64xf32, #tpu.memory_space<vmem>>, vector<64x32xf32>
    %cst_26 = arith.constant dense<0.000000e+00> : vector<32x8xf32>
    %37 = tpu.matmul %35, %5, %cst_26 {dimension_numbers = #tpu.dot_dimension_numbers<[1], [0], [0], [1], [0, 0, 1, 1], [], []>} : vector<32x32xf32>, vector<32x8xf32>, vector<32x8xf32> -> vector<32x8xf32>
    %cst_27 = arith.constant dense<0.000000e+00> : vector<64x8xf32>
    %38 = tpu.matmul %36, %37, %cst_27 {dimension_numbers = #tpu.dot_dimension_numbers<[1], [0], [0], [1], [0, 0, 1, 1], [], []>} : vector<64x32xf32>, vector<32x8xf32>, vector<64x8xf32> -> vector<64x8xf32>
    %c56_28 = arith.constant 56 : index
    %c0_29 = arith.constant 0 : index
    %39 = vector.load %arg2[%c56_28, %c0_29] : memref<360x1xf32, #tpu.memory_space<vmem>>, vector<64x1xf32>
    %40 = vector.broadcast %39 : vector<64x1xf32> to vector<64x8xf32>
    %41 = arith.addf %38, %40 : vector<64x8xf32>
    %cst_30 = arith.constant 0.000000e+00 : f32
    %42 = vector.broadcast %cst_30 : f32 to vector<64x8xf32>
    %43 = arith.maximumf %41, %42 : vector<64x8xf32>
    %c120 = arith.constant 120 : index
    %c0_31 = arith.constant 0 : index
    %44 = vector.load %arg1[%c120, %c0_31] : memref<592x64xf32, #tpu.memory_space<vmem>>, vector<32x16xf32>
    %c152 = arith.constant 152 : index
    %c0_32 = arith.constant 0 : index
    %45 = vector.load %arg1[%c152, %c0_32] : memref<592x64xf32, #tpu.memory_space<vmem>>, vector<16x32xf32>
    %c120_33 = arith.constant 120 : index
    %c0_34 = arith.constant 0 : index
    %46 = vector.load %arg2[%c120_33, %c0_34] : memref<360x1xf32, #tpu.memory_space<vmem>>, vector<32x1xf32>
    %cst_35 = arith.constant dense<0.000000e+00> : vector<32x128xf32>
    %47 = tpu.matmul %44, %27, %cst_35 {dimension_numbers = #tpu.dot_dimension_numbers<[1], [0], [0], [1], [0, 0, 1, 1], [], []>} : vector<32x16xf32>, vector<16x128xf32>, vector<32x128xf32> -> vector<32x128xf32>
    %48 = vector.broadcast %46 : vector<32x1xf32> to vector<32x128xf32>
    %49 = arith.addf %48, %47 : vector<32x128xf32>
    %cst_36 = arith.constant dense<0x7F800000> : vector<128xf32>
    %50 = vector.multi_reduction <minimumf>, %49, %cst_36 [0] : vector<32x128xf32> to vector<128xf32>
    %51 = vector.shape_cast %50 : vector<128xf32> to vector<1x128xf32>
    %52 = tpu.iota {dimensions = array<i32: 0>} : vector<32x128xi32>
    %53 = vector.broadcast %51 : vector<1x128xf32> to vector<32x128xf32>
    %54 = arith.cmpf ole, %49, %53 : vector<32x128xf32>
    %c32_i32 = arith.constant 32 : i32
    %55 = vector.broadcast %c32_i32 : i32 to vector<32x128xi32>
    %56 = arith.select %54, %52, %55 : vector<32x128xi1>, vector<32x128xi32>
    %cst_37 = arith.constant dense<2147483647> : vector<128xi32>
    %57 = vector.multi_reduction <minsi>, %56, %cst_37 [0] : vector<32x128xi32> to vector<128xi32>
    %58 = vector.shape_cast %57 : vector<128xi32> to vector<1x128xi32>
    %59 = vector.broadcast %58 : vector<1x128xi32> to vector<32x128xi32>
    %60 = arith.cmpi eq, %52, %59 : vector<32x128xi32>
    %61 = arith.extui %60 : vector<32x128xi1> to vector<32x128xi32>
    %62 = arith.sitofp %61 : vector<32x128xi32> to vector<32x128xf32>
    %cst_38 = arith.constant dense<0.000000e+00> : vector<16x128xf32>
    %63 = tpu.matmul %45, %62, %cst_38 {dimension_numbers = #tpu.dot_dimension_numbers<[1], [0], [0], [1], [0, 0, 1, 1], [], []>} : vector<16x32xf32>, vector<32x128xf32>, vector<16x128xf32> -> vector<16x128xf32>
    %64 = arith.subf %27, %63 : vector<16x128xf32>
    %c168 = arith.constant 168 : index
    %c0_39 = arith.constant 0 : index
    %65 = vector.load %arg1[%c168, %c0_39] : memref<592x64xf32, #tpu.memory_space<vmem>>, vector<32x32xf32>
    %c200 = arith.constant 200 : index
    %c0_40 = arith.constant 0 : index
    %66 = vector.load %arg1[%c200, %c0_40] : memref<592x64xf32, #tpu.memory_space<vmem>>, vector<32x32xf32>
    %c152_41 = arith.constant 152 : index
    %c0_42 = arith.constant 0 : index
    %67 = vector.load %arg2[%c152_41, %c0_42] : memref<360x1xf32, #tpu.memory_space<vmem>>, vector<32x1xf32>
    %cst_43 = arith.constant dense<0.000000e+00> : vector<32x32xf32>
    %68 = tpu.matmul %65, %35, %cst_43 {dimension_numbers = #tpu.dot_dimension_numbers<[1], [0], [0], [1], [0, 0, 1, 1], [], []>} : vector<32x32xf32>, vector<32x32xf32>, vector<32x32xf32> -> vector<32x32xf32>
    %69 = vector.broadcast %67 : vector<32x1xf32> to vector<32x32xf32>
    %70 = arith.addf %69, %68 : vector<32x32xf32>
    %cst_44 = arith.constant dense<0x7F800000> : vector<32xf32>
    %71 = vector.multi_reduction <minimumf>, %70, %cst_44 [0] : vector<32x32xf32> to vector<32xf32>
    %72 = vector.shape_cast %71 : vector<32xf32> to vector<1x32xf32>
    %73 = tpu.iota {dimensions = array<i32: 0>} : vector<32x32xi32>
    %74 = vector.broadcast %72 : vector<1x32xf32> to vector<32x32xf32>
    %75 = arith.cmpf ole, %70, %74 : vector<32x32xf32>
    %c32_i32_45 = arith.constant 32 : i32
    %76 = vector.broadcast %c32_i32_45 : i32 to vector<32x32xi32>
    %77 = arith.select %75, %73, %76 : vector<32x32xi1>, vector<32x32xi32>
    %cst_46 = arith.constant dense<2147483647> : vector<32xi32>
    %78 = vector.multi_reduction <minsi>, %77, %cst_46 [0] : vector<32x32xi32> to vector<32xi32>
    %79 = vector.shape_cast %78 : vector<32xi32> to vector<1x32xi32>
    %80 = vector.broadcast %79 : vector<1x32xi32> to vector<32x32xi32>
    %81 = arith.cmpi eq, %73, %80 : vector<32x32xi32>
    %82 = arith.extui %81 : vector<32x32xi1> to vector<32x32xi32>
    %83 = arith.sitofp %82 : vector<32x32xi32> to vector<32x32xf32>
    %cst_47 = arith.constant dense<0.000000e+00> : vector<32x32xf32>
    %84 = tpu.matmul %66, %83, %cst_47 {dimension_numbers = #tpu.dot_dimension_numbers<[1], [0], [0], [1], [0, 0, 1, 1], [], []>} : vector<32x32xf32>, vector<32x32xf32>, vector<32x32xf32> -> vector<32x32xf32>
    %85 = arith.subf %35, %84 : vector<32x32xf32>
    %cst_48 = arith.constant dense<0.000000e+00> : vector<16x2xf32>
    %86 = tpu.matmul %64, %7, %cst_48 {dimension_numbers = #tpu.dot_dimension_numbers<[1], [1], [0], [0], [0, 0, 1, 0], [], []>} : vector<16x128xf32>, vector<2x128xf32>, vector<16x2xf32> -> vector<16x2xf32>
    %cst_49 = arith.constant dense<0.000000e+00> : vector<32x2xf32>
    %87 = tpu.matmul %85, %9, %cst_49 {dimension_numbers = #tpu.dot_dimension_numbers<[1], [1], [0], [0], [0, 0, 1, 0], [], []>} : vector<32x32xf32>, vector<2x32xf32>, vector<32x2xf32> -> vector<32x2xf32>
    %cst_50 = arith.constant dense<0.000000e+00> : vector<64x2xf32>
    %88 = tpu.matmul %43, %11, %cst_50 {dimension_numbers = #tpu.dot_dimension_numbers<[1], [1], [0], [0], [0, 0, 1, 0], [], []>} : vector<64x8xf32>, vector<2x8xf32>, vector<64x2xf32> -> vector<64x2xf32>
    %c232 = arith.constant 232 : index
    %c0_51 = arith.constant 0 : index
    %89 = vector.load %arg1[%c232, %c0_51] : memref<592x64xf32, #tpu.memory_space<vmem>>, vector<64x16xf32>
    %cst_52 = arith.constant dense<0.000000e+00> : vector<64x2xf32>
    %90 = tpu.matmul %89, %86, %cst_52 {dimension_numbers = #tpu.dot_dimension_numbers<[1], [0], [0], [1], [0, 0, 1, 1], [], []>} : vector<64x16xf32>, vector<16x2xf32>, vector<64x2xf32> -> vector<64x2xf32>
    %c296 = arith.constant 296 : index
    %c0_53 = arith.constant 0 : index
    %91 = vector.load %arg1[%c296, %c0_53] : memref<592x64xf32, #tpu.memory_space<vmem>>, vector<64x32xf32>
    %cst_54 = arith.constant dense<0.000000e+00> : vector<64x2xf32>
    %92 = tpu.matmul %91, %87, %cst_54 {dimension_numbers = #tpu.dot_dimension_numbers<[1], [0], [0], [1], [0, 0, 1, 1], [], []>} : vector<64x32xf32>, vector<32x2xf32>, vector<64x2xf32> -> vector<64x2xf32>
    %93 = arith.addf %90, %92 : vector<64x2xf32>
    %c360 = arith.constant 360 : index
    %c0_55 = arith.constant 0 : index
    %94 = vector.load %arg1[%c360, %c0_55] : memref<592x64xf32, #tpu.memory_space<vmem>>, vector<64x64xf32>
    %cst_56 = arith.constant dense<0.000000e+00> : vector<64x2xf32>
    %95 = tpu.matmul %94, %88, %cst_56 {dimension_numbers = #tpu.dot_dimension_numbers<[1], [0], [0], [1], [0, 0, 1, 1], [], []>} : vector<64x64xf32>, vector<64x2xf32>, vector<64x2xf32> -> vector<64x2xf32>
    %96 = arith.addf %93, %95 : vector<64x2xf32>
    %c184 = arith.constant 184 : index
    %c0_57 = arith.constant 0 : index
    %97 = vector.load %arg2[%c184, %c0_57] : memref<360x1xf32, #tpu.memory_space<vmem>>, vector<64x1xf32>
    %98 = vector.broadcast %97 : vector<64x1xf32> to vector<64x2xf32>
    %99 = arith.addf %96, %98 : vector<64x2xf32>
    %cst_58 = arith.constant 0.000000e+00 : f32
    %100 = vector.broadcast %cst_58 : f32 to vector<64x2xf32>
    %101 = arith.maximumf %99, %100 : vector<64x2xf32>
    %c424 = arith.constant 424 : index
    %c0_59 = arith.constant 0 : index
    %102 = vector.load %arg1[%c424, %c0_59] : memref<592x64xf32, #tpu.memory_space<vmem>>, vector<16x64xf32>
    %cst_60 = arith.constant dense<0.000000e+00> : vector<16x2xf32>
    %103 = tpu.matmul %102, %101, %cst_60 {dimension_numbers = #tpu.dot_dimension_numbers<[1], [0], [0], [1], [0, 0, 1, 1], [], []>} : vector<16x64xf32>, vector<64x2xf32>, vector<16x2xf32> -> vector<16x2xf32>
    %c248 = arith.constant 248 : index
    %c0_61 = arith.constant 0 : index
    %104 = vector.load %arg2[%c248, %c0_61] : memref<360x1xf32, #tpu.memory_space<vmem>>, vector<16x1xf32>
    %105 = vector.broadcast %104 : vector<16x1xf32> to vector<16x2xf32>
    %106 = arith.addf %103, %105 : vector<16x2xf32>
    %107 = arith.negf %106 : vector<16x2xf32>
    %108 = math.exp %107 : vector<16x2xf32>
    %cst_62 = arith.constant 1.000000e+00 : f32
    %109 = vector.broadcast %cst_62 : f32 to vector<16x2xf32>
    %110 = arith.addf %109, %108 : vector<16x2xf32>
    %111 = arith.divf %109, %110 : vector<16x2xf32>
    %c440 = arith.constant 440 : index
    %c0_63 = arith.constant 0 : index
    %112 = vector.load %arg1[%c440, %c0_63] : memref<592x64xf32, #tpu.memory_space<vmem>>, vector<32x64xf32>
    %cst_64 = arith.constant dense<0.000000e+00> : vector<32x2xf32>
    %113 = tpu.matmul %112, %101, %cst_64 {dimension_numbers = #tpu.dot_dimension_numbers<[1], [0], [0], [1], [0, 0, 1, 1], [], []>} : vector<32x64xf32>, vector<64x2xf32>, vector<32x2xf32> -> vector<32x2xf32>
    %c264 = arith.constant 264 : index
    %c0_65 = arith.constant 0 : index
    %114 = vector.load %arg2[%c264, %c0_65] : memref<360x1xf32, #tpu.memory_space<vmem>>, vector<32x1xf32>
    %115 = vector.broadcast %114 : vector<32x1xf32> to vector<32x2xf32>
    %116 = arith.addf %113, %115 : vector<32x2xf32>
    %117 = arith.negf %116 : vector<32x2xf32>
    %118 = math.exp %117 : vector<32x2xf32>
    %cst_66 = arith.constant 1.000000e+00 : f32
    %119 = vector.broadcast %cst_66 : f32 to vector<32x2xf32>
    %120 = arith.addf %119, %118 : vector<32x2xf32>
    %121 = arith.divf %119, %120 : vector<32x2xf32>
    %cst_67 = arith.constant dense<0.000000e+00> : vector<16x128xf32>
    %122 = tpu.matmul %111, %7, %cst_67 {dimension_numbers = #tpu.dot_dimension_numbers<[1], [0], [0], [1], [0, 0, 1, 1], [], []>} : vector<16x2xf32>, vector<2x128xf32>, vector<16x128xf32> -> vector<16x128xf32>
    %123 = arith.mulf %27, %122 : vector<16x128xf32>
    %cst_68 = arith.constant dense<0.000000e+00> : vector<32x32xf32>
    %124 = tpu.matmul %121, %9, %cst_68 {dimension_numbers = #tpu.dot_dimension_numbers<[1], [0], [0], [1], [0, 0, 1, 1], [], []>} : vector<32x2xf32>, vector<2x32xf32>, vector<32x32xf32> -> vector<32x32xf32>
    %125 = arith.mulf %35, %124 : vector<32x32xf32>
    %c472 = arith.constant 472 : index
    %c0_69 = arith.constant 0 : index
    %126 = vector.load %arg1[%c472, %c0_69] : memref<592x64xf32, #tpu.memory_space<vmem>>, vector<32x64xf32>
    %cst_70 = arith.constant dense<0.000000e+00> : vector<32x8xf32>
    %127 = tpu.matmul %126, %43, %cst_70 {dimension_numbers = #tpu.dot_dimension_numbers<[1], [0], [0], [1], [0, 0, 1, 1], [], []>} : vector<32x64xf32>, vector<64x8xf32>, vector<32x8xf32> -> vector<32x8xf32>
    %cst_71 = arith.constant dense<0.000000e+00> : vector<32x32xf32>
    %128 = tpu.matmul %127, %5, %cst_71 {dimension_numbers = #tpu.dot_dimension_numbers<[1], [1], [0], [0], [0, 0, 1, 0], [], []>} : vector<32x8xf32>, vector<32x8xf32>, vector<32x32xf32> -> vector<32x32xf32>
    %c504 = arith.constant 504 : index
    %c0_72 = arith.constant 0 : index
    %129 = vector.load %arg1[%c504, %c0_72] : memref<592x64xf32, #tpu.memory_space<vmem>>, vector<32x32xf32>
    %cst_73 = arith.constant dense<0.000000e+00> : vector<32x32xf32>
    %130 = tpu.matmul %129, %125, %cst_73 {dimension_numbers = #tpu.dot_dimension_numbers<[1], [0], [0], [1], [0, 0, 1, 1], [], []>} : vector<32x32xf32>, vector<32x32xf32>, vector<32x32xf32> -> vector<32x32xf32>
    %131 = arith.addf %128, %130 : vector<32x32xf32>
    %c296_74 = arith.constant 296 : index
    %c0_75 = arith.constant 0 : index
    %132 = vector.load %arg2[%c296_74, %c0_75] : memref<360x1xf32, #tpu.memory_space<vmem>>, vector<32x1xf32>
    %133 = vector.broadcast %132 : vector<32x1xf32> to vector<32x32xf32>
    %134 = arith.addf %131, %133 : vector<32x32xf32>
    %cst_76 = arith.constant 0.000000e+00 : f32
    %135 = vector.broadcast %cst_76 : f32 to vector<32x32xf32>
    %136 = arith.maximumf %134, %135 : vector<32x32xf32>
    %c536 = arith.constant 536 : index
    %c0_77 = arith.constant 0 : index
    %137 = vector.load %arg1[%c536, %c0_77] : memref<592x64xf32, #tpu.memory_space<vmem>>, vector<16x32xf32>
    %cst_78 = arith.constant dense<0.000000e+00> : vector<16x32xf32>
    %138 = tpu.matmul %137, %136, %cst_78 {dimension_numbers = #tpu.dot_dimension_numbers<[1], [0], [0], [1], [0, 0, 1, 1], [], []>} : vector<16x32xf32>, vector<32x32xf32>, vector<16x32xf32> -> vector<16x32xf32>
    %cst_79 = arith.constant dense<0.000000e+00> : vector<16x128xf32>
    %139 = tpu.matmul %138, %3, %cst_79 {dimension_numbers = #tpu.dot_dimension_numbers<[1], [1], [0], [0], [0, 0, 1, 0], [], []>} : vector<16x32xf32>, vector<128x32xf32>, vector<16x128xf32> -> vector<16x128xf32>
    %c552 = arith.constant 552 : index
    %c0_80 = arith.constant 0 : index
    %140 = vector.load %arg1[%c552, %c0_80] : memref<592x64xf32, #tpu.memory_space<vmem>>, vector<16x16xf32>
    %cst_81 = arith.constant dense<0.000000e+00> : vector<16x128xf32>
    %141 = tpu.matmul %140, %123, %cst_81 {dimension_numbers = #tpu.dot_dimension_numbers<[1], [0], [0], [1], [0, 0, 1, 1], [], []>} : vector<16x16xf32>, vector<16x128xf32>, vector<16x128xf32> -> vector<16x128xf32>
    %142 = arith.addf %139, %141 : vector<16x128xf32>
    %c328 = arith.constant 328 : index
    %c0_82 = arith.constant 0 : index
    %143 = vector.load %arg2[%c328, %c0_82] : memref<360x1xf32, #tpu.memory_space<vmem>>, vector<16x1xf32>
    %144 = vector.broadcast %143 : vector<16x1xf32> to vector<16x128xf32>
    %145 = arith.addf %142, %144 : vector<16x128xf32>
    %cst_83 = arith.constant 0.000000e+00 : f32
    %146 = vector.broadcast %cst_83 : f32 to vector<16x128xf32>
    %147 = arith.maximumf %145, %146 : vector<16x128xf32>
    %c568 = arith.constant 568 : index
    %c0_84 = arith.constant 0 : index
    %148 = vector.load %arg1[%c568, %c0_84] : memref<592x64xf32, #tpu.memory_space<vmem>>, vector<8x16xf32>
    %cst_85 = arith.constant dense<0.000000e+00> : vector<8x128xf32>
    %149 = tpu.matmul %148, %147, %cst_85 {dimension_numbers = #tpu.dot_dimension_numbers<[1], [0], [0], [1], [0, 0, 1, 1], [], []>} : vector<8x16xf32>, vector<16x128xf32>, vector<8x128xf32> -> vector<8x128xf32>
    %cst_86 = arith.constant dense<0.000000e+00> : vector<8x512xf32>
    %150 = tpu.matmul %149, %1, %cst_86 {dimension_numbers = #tpu.dot_dimension_numbers<[1], [1], [0], [0], [0, 0, 1, 0], [], []>} : vector<8x128xf32>, vector<512x128xf32>, vector<8x512xf32> -> vector<8x512xf32>
    %c576 = arith.constant 576 : index
    %c0_87 = arith.constant 0 : index
    %151 = vector.load %arg1[%c576, %c0_87] : memref<592x64xf32, #tpu.memory_space<vmem>>, vector<8x8xf32>
    %cst_88 = arith.constant dense<0.000000e+00> : vector<8x512xf32>
    %152 = tpu.matmul %151, %19, %cst_88 {dimension_numbers = #tpu.dot_dimension_numbers<[1], [0], [0], [1], [0, 0, 1, 1], [], []>} : vector<8x8xf32>, vector<8x512xf32>, vector<8x512xf32> -> vector<8x512xf32>
    %153 = arith.addf %150, %152 : vector<8x512xf32>
    %c344 = arith.constant 344 : index
    %c0_89 = arith.constant 0 : index
    %154 = vector.load %arg2[%c344, %c0_89] : memref<360x1xf32, #tpu.memory_space<vmem>>, vector<8x1xf32>
    %155 = vector.broadcast %154 : vector<8x1xf32> to vector<8x512xf32>
    %156 = arith.addf %153, %155 : vector<8x512xf32>
    %cst_90 = arith.constant 0.000000e+00 : f32
    %157 = vector.broadcast %cst_90 : f32 to vector<8x512xf32>
    %158 = arith.maximumf %156, %157 : vector<8x512xf32>
    %c584 = arith.constant 584 : index
    %c0_91 = arith.constant 0 : index
    %159 = vector.load %arg1[%c584, %c0_91] : memref<592x64xf32, #tpu.memory_space<vmem>>, vector<1x8xf32>
    %cst_92 = arith.constant dense<0.000000e+00> : vector<1x512xf32>
    %160 = tpu.matmul %159, %158, %cst_92 {dimension_numbers = #tpu.dot_dimension_numbers<[1], [0], [0], [1], [0, 0, 1, 1], [], []>} : vector<1x8xf32>, vector<8x512xf32>, vector<1x512xf32> -> vector<1x512xf32>
    %c352 = arith.constant 352 : index
    %c0_93 = arith.constant 0 : index
    %161 = vector.load %arg2[%c352, %c0_93] : memref<360x1xf32, #tpu.memory_space<vmem>>, vector<1x1xf32>
    %162 = vector.broadcast %161 : vector<1x1xf32> to vector<1x512xf32>
    %163 = arith.addf %160, %162 : vector<1x512xf32>
    %c0_94 = arith.constant 0 : index
    %c0_95 = arith.constant 0 : index
    %164 = vector.load %arg4[%c0_94, %c0_95] : memref<1x512xf32, #tpu.memory_space<vmem>>, vector<1x512xf32>
    tpu.vector_store %arg4[%c0_94, %c0_95], %163 {strides = array<i32>} : memref<1x512xf32, #tpu.memory_space<vmem>>, vector<1x512xf32>,
    return
  }
}

</mosaic_0001>

<llo_original>
// kernel: _lambda_.1
$region0: #{_lambda_.1}
  #allocation0 [shape = 'u32[]', space=smem, size = 0x4, offset = 0x4, fixed_abs, tag = 'smem constant byte address 0x4 - core index']
  #allocation1 [shape = 'u32[144,128]{1,0:T(1,128)}', space=vmem, size = 0x12000, scoped, tag = 'internal scratch']
  %s0 = inlined_call_operand.vmem [shape: f32[8,512], index: 0, kind: input, shape index: {}]
  %s1 = inlined_call_operand.hbm [shape: f32[592,64], index: 1, kind: input, shape index: {}]
  %s2 = inlined_call_operand.hbm [shape: f32[360,1], index: 2, kind: input, shape index: {}]
  %s3 = inlined_call_operand.hbm [shape: bf16[720,128], index: 3, kind: input, shape index: {}]
  %s4 = inlined_call_operand.vmem [shape: f32[1,512], index: 4, kind: output, shape index: {}]
  %s5 = sld [smem:[#allocation0]]
  $region38: #{_lambda_.1} parent=0
    _
  %s7 = ssub.s32 1, %s5
  %s8 = scalar_select 0, %s7, %s5
  $region1: #{_lambda_.1} parent=0
    #allocation2 [shape = 'u8[303104]{0}', space=vmem, size = 0x4a000, scoped, tag = 'input window, operand 1, single buffered']
    #allocation3 [shape = 's32[1]{0}', space=sflag, size = 0x4, scoped, tag = 'scoped memory for _lambda_.1']
    #allocation4 [shape = 'u8[184320]{0}', space=vmem, size = 0x2d000, scoped, tag = 'input window, operand 2, single buffered']
    #allocation5 [shape = 's32[1]{0}', space=sflag, size = 0x4, scoped, tag = 'scoped memory for _lambda_.1']
    #allocation6 [shape = 'u8[184320]{0}', space=vmem, size = 0x2d000, scoped, tag = 'input window, operand 3, single buffered']
    %9 = vsyncpa [#allocation3], 0
    %10 = vsyncpa [#allocation5], 0
    // Predicated region
    $region2: #{_lambda_.1} parent=1 // pred_check
      _
    $region3: #{_lambda_.1} parent=1 // pred_check_branch
      %12 = sbr.rel (0) target = $region5
    $region4: #{_lambda_.1} parent=1 // pred_region
      _
    $region5: #{_lambda_.1} parent=1 // pred_fallthru
      _
    // Predicated region
    $region6: #{_lambda_.1} parent=1 // pred_check
      _
    $region7: #{_lambda_.1} parent=1 // pred_check_branch
      %14 = sbr.rel (0) target = $region9
    $region8: #{_lambda_.1} parent=1 // pred_region
      %s16 = ssub.s32 9472, 9472
      %17 = vsyncadd [#allocation3], %s16
      %s18 = sshll.u32 [#allocation2], 4
      %s19 = int_to_ptr.vmem [resolvable:$true] %s18
      %24 = dma.hbm_to_vmem [thread:$0]  %s1, 9472, %s19, [#allocation3], 128, 128, 8
    $region9: #{_lambda_.1} parent=1 // pred_fallthru
      _
    // Predicated region
    $region10: #{_lambda_.1} parent=1 // pred_check
      _
    $region11: #{_lambda_.1} parent=1 // pred_check_branch
      %26 = sbr.rel (0) target = $region13
    $region12: #{_lambda_.1} parent=1 // pred_region
      %s28 = ssub.s32 5760, 5760
      %29 = vsyncadd [#allocation5], %s28
      %s30 = sshll.u32 [#allocation4], 4
      %s31 = int_to_ptr.vmem [resolvable:$true] %s30
      %36 = dma.hbm_to_vmem [thread:$0]  %s2, 5760, %s31, [#allocation5], 128, 128, 8
    $region13: #{_lambda_.1} parent=1 // pred_fallthru
      _
    // Predicated region
    $region14: #{_lambda_.1} parent=1 // pred_check
      _
    $region15: #{_lambda_.1} parent=1 // pred_check_branch
      %38 = sbr.rel (0) target = $region17
    $region16: #{_lambda_.1} parent=1 // pred_region
      %s40 = ssub.s32 5760, 5760
      %41 = vsyncadd [#allocation5], %s40
      %s42 = sshll.u32 [#allocation6], 4
      %s43 = int_to_ptr.vmem [resolvable:$true] %s42
      %48 = dma.hbm_to_vmem [thread:$0]  %s3, 5760, %s43, [#allocation5], 64, 64, 4
    $region17: #{_lambda_.1} parent=1 // pred_fallthru
      _
    // Predicated region
    $region18: #{_lambda_.1} parent=1 // pred_check
      _
    $region19: #{_lambda_.1} parent=1 // pred_check_branch
      %50 = sbr.rel (0) target = $region21
    $region20: #{_lambda_.1} parent=1 // pred_region
      %51 = dma.done [#allocation3], 9472
    $region21: #{_lambda_.1} parent=1 // pred_fallthru
      _
    // Predicated region
    $region22: #{_lambda_.1} parent=1 // pred_check
      _
    $region23: #{_lambda_.1} parent=1 // pred_check_branch
      %53 = sbr.rel (0) target = $region25
    $region24: #{_lambda_.1} parent=1 // pred_region
      %54 = dma.done [#allocation5], 5760
    $region25: #{_lambda_.1} parent=1 // pred_fallthru
      _
    // Predicated region
    $region26: #{_lambda_.1} parent=1 // pred_check
      _
    $region27: #{_lambda_.1} parent=1 // pred_check_branch
      %56 = sbr.rel (0) target = $region29
    $region28: #{_lambda_.1} parent=1 // pred_region
      %57 = dma.done [#allocation5], 5760
    $region29: #{_lambda_.1} parent=1 // pred_fallthru
      _
    %v58 = vld [vmem:[#allocation6] sm:$0xf]
    %v59 = vld [vmem:[#allocation6 + $0x4] sm:$0xf]
    %v60 = vld [vmem:[#allocation6 + $0x8] sm:$0xf]
    %v61 = vld [vmem:[#allocation6 + $0xc] sm:$0xf]
    %v62 = vld [vmem:[#allocation6 + $0x10] sm:$0xf]
    %v63 = vld [vmem:[#allocation6 + $0x14] sm:$0xf]
    %v64 = vld [vmem:[#allocation6 + $0x18] sm:$0xf]
    %v65 = vld [vmem:[#allocation6 + $0x1c] sm:$0xf]
    %v66 = vld [vmem:[#allocation6 + $0x20] sm:$0xf]
    %v67 = vld [vmem:[#allocation6 + $0x24] sm:$0xf]
    %v68 = vld [vmem:[#allocation6 + $0x28] sm:$0xf]
    %v69 = vld [vmem:[#allocation6 + $0x2c] sm:$0xf]
    %v70 = vld [vmem:[#allocation6 + $0x30] sm:$0xf]
    %v71 = vld [vmem:[#allocation6 + $0x34] sm:$0xf]
    %v72 = vld [vmem:[#allocation6 + $0x38] sm:$0xf]
    %v73 = vld [vmem:[#allocation6 + $0x3c] sm:$0xf]
    %v74 = vld [vmem:[#allocation6 + $0x40] sm:$0xf]
    %v75 = vld [vmem:[#allocation6 + $0x44] sm:$0xf]
    %v76 = vld [vmem:[#allocation6 + $0x48] sm:$0xf]
    %v77 = vld [vmem:[#allocation6 + $0x4c] sm:$0xf]
    %v78 = vld [vmem:[#allocation6 + $0x50] sm:$0xf]
    %v79 = vld [vmem:[#allocation6 + $0x54] sm:$0xf]
    %v80 = vld [vmem:[#allocation6 + $0x58] sm:$0xf]
    %v81 = vld [vmem:[#allocation6 + $0x5c] sm:$0xf]
    %v82 = vld [vmem:[#allocation6 + $0x60] sm:$0xf]
    %v83 = vld [vmem:[#allocation6 + $0x64] sm:$0xf]
    %v84 = vld [vmem:[#allocation6 + $0x68] sm:$0xf]
    %v85 = vld [vmem:[#allocation6 + $0x6c] sm:$0xf]
    %v86 = vld [vmem:[#allocation6 + $0x70] sm:$0xf]
    %v87 = vld [vmem:[#allocation6 + $0x74] sm:$0xf]
    %v88 = vld [vmem:[#allocation6 + $0x78] sm:$0xf]
    %v89 = vld [vmem:[#allocation6 + $0x7c] sm:$0xf]
    %v90 = vld [vmem:[#allocation6 + $0x80] sm:$0xf]
    %v91 = vld [vmem:[#allocation6 + $0x84] sm:$0xf]
    %v92 = vld [vmem:[#allocation6 + $0x88] sm:$0xf]
    %v93 = vld [vmem:[#allocation6 + $0x8c] sm:$0xf]
    %v94 = vld [vmem:[#allocation6 + $0x90] sm:$0xf]
    %v95 = vld [vmem:[#allocation6 + $0x94] sm:$0xf]
    %v96 = vld [vmem:[#allocation6 + $0x98] sm:$0xf]
    %v97 = vld [vmem:[#allocation6 + $0x9c] sm:$0xf]
    %v98 = vld [vmem:[#allocation6 + $0xa0] sm:$0xf]
    %v99 = vld [vmem:[#allocation6 + $0xa4] sm:$0xf]
    %v100 = vld [vmem:[#allocation6 + $0xa8] sm:$0xf]
    %v101 = vld [vmem:[#allocation6 + $0xac] sm:$0xf]
    %v102 = vld [vmem:[#allocation6 + $0xb0] sm:$0xf]
    %v103 = vld [vmem:[#allocation6 + $0xb4] sm:$0xf]
    %v104 = vld [vmem:[#allocation6 + $0xb8] sm:$0xf]
    %v105 = vld [vmem:[#allocation6 + $0xbc] sm:$0xf]
    %v106 = vld [vmem:[#allocation6 + $0xc0] sm:$0xf]
    %v107 = vld [vmem:[#allocation6 + $0xc4] sm:$0xf]
    %v108 = vld [vmem:[#allocation6 + $0xc8] sm:$0xf]
    %v109 = vld [vmem:[#allocation6 + $0xcc] sm:$0xf]
    %v110 = vld [vmem:[#allocation6 + $0xd0] sm:$0xf]
    %v111 = vld [vmem:[#allocation6 + $0xd4] sm:$0xf]
    %v112 = vld [vmem:[#allocation6 + $0xd8] sm:$0xf]
    %v113 = vld [vmem:[#allocation6 + $0xdc] sm:$0xf]
    %v114 = vld [vmem:[#allocation6 + $0xe0] sm:$0xf]
    %v115 = vld [vmem:[#allocation6 + $0xe4] sm:$0xf]
    %v116 = vld [vmem:[#allocation6 + $0xe8] sm:$0xf]
    %v117 = vld [vmem:[#allocation6 + $0xec] sm:$0xf]
    %v118 = vld [vmem:[#allocation6 + $0xf0] sm:$0xf]
    %v119 = vld [vmem:[#allocation6 + $0xf4] sm:$0xf]
    %v120 = vld [vmem:[#allocation6 + $0xf8] sm:$0xf]
    %v121 = vld [vmem:[#allocation6 + $0xfc] sm:$0xf]
    %v122 = vunpack.c.l.bf16 %v58
    %v123 = vunpack.c.l.bf16 %v59
    %v124 = vunpack.c.l.bf16 %v60
    %v125 = vunpack.c.l.bf16 %v61
    %v126 = vunpack.c.l.bf16 %v62
    %v127 = vunpack.c.l.bf16 %v63
    %v128 = vunpack.c.l.bf16 %v64
    %v129 = vunpack.c.l.bf16 %v65
    %v130 = vunpack.c.l.bf16 %v66
    %v131 = vunpack.c.l.bf16 %v67
    %v132 = vunpack.c.l.bf16 %v68
    %v133 = vunpack.c.l.bf16 %v69
    %v134 = vunpack.c.l.bf16 %v70
    %v135 = vunpack.c.l.bf16 %v71
    %v136 = vunpack.c.l.bf16 %v72
    %v137 = vunpack.c.l.bf16 %v73
    %v138 = vunpack.c.l.bf16 %v74
    %v139 = vunpack.c.l.bf16 %v75
    %v140 = vunpack.c.l.bf16 %v76
    %v141 = vunpack.c.l.bf16 %v77
    %v142 = vunpack.c.l.bf16 %v78
    %v143 = vunpack.c.l.bf16 %v79
    %v144 = vunpack.c.l.bf16 %v80
    %v145 = vunpack.c.l.bf16 %v81
    %v146 = vunpack.c.l.bf16 %v82
    %v147 = vunpack.c.l.bf16 %v83
    %v148 = vunpack.c.l.bf16 %v84
    %v149 = vunpack.c.l.bf16 %v85
    %v150 = vunpack.c.l.bf16 %v86
    %v151 = vunpack.c.l.bf16 %v87
    %v152 = vunpack.c.l.bf16 %v88
    %v153 = vunpack.c.l.bf16 %v89
    %v154 = vunpack.c.l.bf16 %v90
    %v155 = vunpack.c.l.bf16 %v91
    %v156 = vunpack.c.l.bf16 %v92
    %v157 = vunpack.c.l.bf16 %v93
    %v158 = vunpack.c.l.bf16 %v94
    %v159 = vunpack.c.l.bf16 %v95
    %v160 = vunpack.c.l.bf16 %v96
    %v161 = vunpack.c.l.bf16 %v97
    %v162 = vunpack.c.l.bf16 %v98
    %v163 = vunpack.c.l.bf16 %v99
    %v164 = vunpack.c.l.bf16 %v100
    %v165 = vunpack.c.l.bf16 %v101
    %v166 = vunpack.c.l.bf16 %v102
    %v167 = vunpack.c.l.bf16 %v103
    %v168 = vunpack.c.l.bf16 %v104
    %v169 = vunpack.c.l.bf16 %v105
    %v170 = vunpack.c.l.bf16 %v106
    %v171 = vunpack.c.l.bf16 %v107
    %v172 = vunpack.c.l.bf16 %v108
    %v173 = vunpack.c.l.bf16 %v109
    %v174 = vunpack.c.l.bf16 %v110
    %v175 = vunpack.c.l.bf16 %v111
    %v176 = vunpack.c.l.bf16 %v112
    %v177 = vunpack.c.l.bf16 %v113
    %v178 = vunpack.c.l.bf16 %v114
    %v179 = vunpack.c.l.bf16 %v115
    %v180 = vunpack.c.l.bf16 %v116
    %v181 = vunpack.c.l.bf16 %v117
    %v182 = vunpack.c.l.bf16 %v118
    %v183 = vunpack.c.l.bf16 %v119
    %v184 = vunpack.c.l.bf16 %v120
    %v185 = vunpack.c.l.bf16 %v121
    %v186 = vld [vmem:[#allocation6 + $0x100] sm:$0xf]
    %v187 = vld [vmem:[#allocation6 + $0x104] sm:$0xf]
    %v188 = vld [vmem:[#allocation6 + $0x108] sm:$0xf]
    %v189 = vld [vmem:[#allocation6 + $0x10c] sm:$0xf]
    %v190 = vld [vmem:[#allocation6 + $0x110] sm:$0xf]
    %v191 = vld [vmem:[#allocation6 + $0x114] sm:$0xf]
    %v192 = vld [vmem:[#allocation6 + $0x118] sm:$0xf]
    %v193 = vld [vmem:[#allocation6 + $0x11c] sm:$0xf]
    %v194 = vld [vmem:[#allocation6 + $0x120] sm:$0xf]
    %v195 = vld [vmem:[#allocation6 + $0x124] sm:$0xf]
    %v196 = vld [vmem:[#allocation6 + $0x128] sm:$0xf]
    %v197 = vld [vmem:[#allocation6 + $0x12c] sm:$0xf]
    %v198 = vld [vmem:[#allocation6 + $0x130] sm:$0xf]
    %v199 = vld [vmem:[#allocation6 + $0x134] sm:$0xf]
    %v200 = vld [vmem:[#allocation6 + $0x138] sm:$0xf]
    %v201 = vld [vmem:[#allocation6 + $0x13c] sm:$0xf]
    %v202 = vunpack.c.l.bf16 %v186
    %v203 = vunpack.c.l.bf16 %v187
    %v204 = vunpack.c.l.bf16 %v188
    %v205 = vunpack.c.l.bf16 %v189
    %v206 = vunpack.c.l.bf16 %v190
    %v207 = vunpack.c.l.bf16 %v191
    %v208 = vunpack.c.l.bf16 %v192
    %v209 = vunpack.c.l.bf16 %v193
    %v210 = vunpack.c.l.bf16 %v194
    %v211 = vunpack.c.l.bf16 %v195
    %v212 = vunpack.c.l.bf16 %v196
    %v213 = vunpack.c.l.bf16 %v197
    %v214 = vunpack.c.l.bf16 %v198
    %v215 = vunpack.c.l.bf16 %v199
    %v216 = vunpack.c.l.bf16 %v200
    %v217 = vunpack.c.l.bf16 %v201
    %v218 = vld [vmem:[#allocation6 + $0x140] sm:$0xf]
    %v219 = vld [vmem:[#allocation6 + $0x144] sm:$0xf]
    %v220 = vld [vmem:[#allocation6 + $0x148] sm:$0xf]
    %v221 = vld [vmem:[#allocation6 + $0x14c] sm:$0xf]
    %v222 = vunpack.c.l.bf16 %v218
    %v223 = vunpack.c.l.bf16 %v219
    %v224 = vunpack.c.l.bf16 %v220
    %v225 = vunpack.c.l.bf16 %v221
    %v226 = vld [vmem:[#allocation6 + $0x150] sm:$0x1]
    %v227 = vunpack.c.l.bf16 %v226
    %v228 = vld [vmem:[#allocation6 + $0x158] sm:$0x1]
    %v229 = vunpack.c.l.bf16 %v228
    %v230 = vld [vmem:[#allocation6 + $0x160] sm:$0x1]
    %v231 = vunpack.c.l.bf16 %v230
    %v232 = vld [vmem:[%s0] sm:$0xff]
    %v233 = vld [vmem:[%s0 + $0x8] sm:$0xff]
    %v234 = vld [vmem:[%s0 + $0x10] sm:$0xff]
    %v235 = vld [vmem:[%s0 + $0x18] sm:$0xff]
    %v236 = vld [vmem:[#allocation2] sm:$0xff]
    %v237 = vld [vmem:[#allocation4] sm:$0xff]
    %239 = vset.pattern.permute.xlu0 0
    %240 = vperm.xlu0 %239, %v237
    %v241 = vpop.permute.xlu0 %240
    %vm243 = vcmask 64512
    %v245 = vsel %vm243, %v236, 0
    %247 = vmatprep.subr.mxu0 %v233
    %248 = vmatpush1.msra.mxu0 %v232
    %249 = vmatprep.subr.mxu0 0.0
    %250 = vmatpush1.msra.mxu0 0.0
    %251 = vmatprep.subr.mxu0 0.0
    %252 = vmatpush1.msra.mxu0 0.0
    %253 = vmatprep.subr.mxu0 0.0
    %254 = vmatpush1.msra.mxu0 0.0
    %255 = vmatprep.subr.mxu0 0.0
    %256 = vmatpush1.msra.mxu0 0.0
    %257 = vmatprep.subr.mxu0 0.0
    %258 = vmatpush1.msra.mxu0 0.0
    %259 = vmatprep.subr.mxu0 0.0
    %260 = vmatpush1.msra.mxu0 0.0
    %261 = vmatprep.subr.mxu0 0.0
    %262 = vmatpush1.msra.mxu0 0.0
    %263 = vmatprep.subr.mxu0 0.0
    %264 = vmatpush1.msra.mxu0 0.0
    %265 = vmatprep.subr.mxu0 0.0
    %266 = vmatpush1.msra.mxu0 0.0
    %267 = vmatprep.subr.mxu0 0.0
    %268 = vmatpush1.msra.mxu0 0.0
    %269 = vmatprep.subr.mxu0 0.0
    %270 = vmatpush1.msra.mxu0 0.0
    %271 = vmatprep.subr.mxu0 0.0
    %272 = vmatpush1.msra.mxu0 0.0
    %273 = vmatprep.subr.mxu0 0.0
    %274 = vmatpush1.msra.mxu0 0.0
    %275 = vmatprep.subr.mxu0 0.0
    %276 = vmatpush1.msra.mxu0 0.0
    %277 = vmatprep.subr.mxu0 0.0
    %278 = vmatpush1.msra.mxu0 0.0
    %279 = vmatprep.subr.mxu0 0.0
    %280 = vmatpush1.msra.mxu0 0.0
    %281 = vmatprep.subr.mxu0 0.0
    %282 = vmatpush1.msra.mxu0 0.0
    %283 = vmatprep.subr.mxu0 0.0
    %284 = vmatpush1.msra.mxu0 0.0
    %285 = vmatprep.subr.mxu0 0.0
    %286 = vmatpush1.msra.mxu0 0.0
    %287 = vmatprep.subr.mxu0 0.0
    %288 = vmatpush1.msra.mxu0 0.0
    %289 = vmatprep.subr.mxu0 0.0
    %290 = vmatpush1.msra.mxu0 0.0
    %291 = vmatprep.subr.mxu0 0.0
    %292 = vmatpush1.msra.mxu0 0.0
    %293 = vmatprep.subr.mxu0 0.0
    %294 = vmatpush1.msra.mxu0 0.0
    %295 = vmatprep.subr.mxu0 0.0
    %296 = vmatpush1.msra.mxu0 0.0
    %297 = vmatprep.subr.mxu0 0.0
    %298 = vmatpush1.msra.mxu0 0.0
    %299 = vmatprep.subr.mxu0 0.0
    %300 = vmatpush1.msra.mxu0 0.0
    %301 = vmatprep.subr.mxu0 0.0
    %302 = vmatpush1.msra.mxu0 0.0
    %303 = vmatprep.subr.mxu0 0.0
    %304 = vmatpush1.msra.mxu0 0.0
    %305 = vmatprep.subr.mxu0 0.0
    %306 = vmatpush1.msra.mxu0 0.0
    %307 = vmatprep.subr.mxu0 0.0
    %308 = vmatpush1.msra.mxu0 0.0
    %309 = vmatprep.subr.mxu0 0.0
    %310 = vmatpush1.msra.mxu0 0.0
    %311 = vmatprep.mubr.f32.mxu0 0.0
    %312 = vmatmul.mubr.f32.gmra.mrb[0].mxu0 %v245
    %v313 = vpop.f32.mrb[0].mxu0
    %v314 = vadd.f32 %v241, %v313
    %v315 = vpop.f32.mrb[0].mxu0
    %v316 = vadd.f32 %v241, %v315
    %317 = vdwg.mxu0
    %318 = vmatprep.subr.mxu0 %v235
    %319 = vmatpush1.msra.mxu0 %v234
    %320 = vmatprep.subr.mxu0 0.0
    %321 = vmatpush1.msra.mxu0 0.0
    %322 = vmatprep.subr.mxu0 0.0
    %323 = vmatpush1.msra.mxu0 0.0
    %324 = vmatprep.subr.mxu0 0.0
    %325 = vmatpush1.msra.mxu0 0.0
    %326 = vmatprep.subr.mxu0 0.0
    %327 = vmatpush1.msra.mxu0 0.0
    %328 = vmatprep.subr.mxu0 0.0
    %329 = vmatpush1.msra.mxu0 0.0
    %330 = vmatprep.subr.mxu0 0.0
    %331 = vmatpush1.msra.mxu0 0.0
    %332 = vmatprep.subr.mxu0 0.0
    %333 = vmatpush1.msra.mxu0 0.0
    %334 = vmatprep.subr.mxu0 0.0
    %335 = vmatpush1.msra.mxu0 0.0
    %336 = vmatprep.subr.mxu0 0.0
    %337 = vmatpush1.msra.mxu0 0.0
    %338 = vmatprep.subr.mxu0 0.0
    %339 = vmatpush1.msra.mxu0 0.0
    %340 = vmatprep.subr.mxu0 0.0
    %341 = vmatpush1.msra.mxu0 0.0
    %342 = vmatprep.subr.mxu0 0.0
    %343 = vmatpush1.msra.mxu0 0.0
    %344 = vmatprep.subr.mxu0 0.0
    %345 = vmatpush1.msra.mxu0 0.0
    %346 = vmatprep.subr.mxu0 0.0
    %347 = vmatpush1.msra.mxu0 0.0
    %348 = vmatprep.subr.mxu0 0.0
    %349 = vmatpush1.msra.mxu0 0.0
    %350 = vmatprep.subr.mxu0 0.0
    %351 = vmatpush1.msra.mxu0 0.0
    %352 = vmatprep.subr.mxu0 0.0
    %353 = vmatpush1.msra.mxu0 0.0
    %354 = vmatprep.subr.mxu0 0.0
    %355 = vmatpush1.msra.mxu0 0.0
    %356 = vmatprep.subr.mxu0 0.0
    %357 = vmatpush1.msra.mxu0 0.0
    %358 = vmatprep.subr.mxu0 0.0
    %359 = vmatpush1.msra.mxu0 0.0
    %360 = vmatprep.subr.mxu0 0.0
    %361 = vmatpush1.msra.mxu0 0.0
    %362 = vmatprep.subr.mxu0 0.0
    %363 = vmatpush1.msra.mxu0 0.0
    %364 = vmatprep.subr.mxu0 0.0
    %365 = vmatpush1.msra.mxu0 0.0
    %366 = vmatprep.subr.mxu0 0.0
    %367 = vmatpush1.msra.mxu0 0.0
    %368 = vmatprep.subr.mxu0 0.0
    %369 = vmatpush1.msra.mxu0 0.0
    %370 = vmatprep.subr.mxu0 0.0
    %371 = vmatpush1.msra.mxu0 0.0
    %372 = vmatprep.subr.mxu0 0.0
    %373 = vmatpush1.msra.mxu0 0.0
    %374 = vmatprep.subr.mxu0 0.0
    %375 = vmatpush1.msra.mxu0 0.0
    %376 = vmatprep.subr.mxu0 0.0
    %377 = vmatpush1.msra.mxu0 0.0
    %378 = vmatprep.subr.mxu0 0.0
    %379 = vmatpush1.msra.mxu0 0.0
    %380 = vmatprep.subr.mxu0 0.0
    %381 = vmatpush1.msra.mxu0 0.0
    %382 = vmatprep.mubr.f32.mxu0 0.0
    %383 = vmatmul.mubr.f32.gmra.mrb[0].mxu0 %v245
    %v384 = vpop.f32.mrb[0].mxu0
    %v385 = vadd.f32 %v241, %v384
    %v386 = vpop.f32.mrb[0].mxu0
    %v387 = vadd.f32 %v241, %v386
    %388 = vdwg.mxu0
    %v389 = vmax.f32 %v314, 0.0
    %v390 = vmax.f32 %v316, 0.0
    %v391 = vmax.f32 %v385, 0.0
    %v392 = vmax.f32 %v387, 0.0
    %v393 = vld [vmem:[#allocation2 + $0x8] sm:$0xff]
    %v394 = vld [vmem:[#allocation2 + $0x10] sm:$0xff]
    %395 = vmatprep.subr.mxu0 0.0
    %396 = vmatpush1.msra.mxu0 %v122
    %397 = vmatprep.subr.mxu0 0.0
    %398 = vmatpush1.msra.mxu0 %v123
    %399 = vmatprep.subr.mxu0 0.0
    %400 = vmatpush1.msra.mxu0 %v124
    %401 = vmatprep.subr.mxu0 0.0
    %402 = vmatpush1.msra.mxu0 %v125
    %403 = vmatprep.subr.mxu0 0.0
    %404 = vmatpush1.msra.mxu0 %v126
    %405 = vmatprep.subr.mxu0 0.0
    %406 = vmatpush1.msra.mxu0 %v127
    %407 = vmatprep.subr.mxu0 0.0
    %408 = vmatpush1.msra.mxu0 %v128
    %409 = vmatprep.subr.mxu0 0.0
    %410 = vmatpush1.msra.mxu0 %v129
    %411 = vmatprep.subr.mxu0 0.0
    %412 = vmatpush1.msra.mxu0 %v130
    %413 = vmatprep.subr.mxu0 0.0
    %414 = vmatpush1.msra.mxu0 %v131
    %415 = vmatprep.subr.mxu0 0.0
    %416 = vmatpush1.msra.mxu0 %v132
    %417 = vmatprep.subr.mxu0 0.0
    %418 = vmatpush1.msra.mxu0 %v133
    %419 = vmatprep.subr.mxu0 0.0
    %420 = vmatpush1.msra.mxu0 %v134
    %421 = vmatprep.subr.mxu0 0.0
    %422 = vmatpush1.msra.mxu0 %v135
    %423 = vmatprep.subr.mxu0 0.0
    %424 = vmatpush1.msra.mxu0 %v136
    %425 = vmatprep.subr.mxu0 0.0
    %426 = vmatpush1.msra.mxu0 %v137
    %427 = vmatprep.subr.mxu0 0.0
    %428 = vmatpush1.msra.mxu0 %v138
    %429 = vmatprep.subr.mxu0 0.0
    %430 = vmatpush1.msra.mxu0 %v139
    %431 = vmatprep.subr.mxu0 0.0
    %432 = vmatpush1.msra.mxu0 %v140
    %433 = vmatprep.subr.mxu0 0.0
    %434 = vmatpush1.msra.mxu0 %v141
    %435 = vmatprep.subr.mxu0 0.0
    %436 = vmatpush1.msra.mxu0 %v142
    %437 = vmatprep.subr.mxu0 0.0
    %438 = vmatpush1.msra.mxu0 %v143
    %439 = vmatprep.subr.mxu0 0.0
    %440 = vmatpush1.msra.mxu0 %v144
    %441 = vmatprep.subr.mxu0 0.0
    %442 = vmatpush1.msra.mxu0 %v145
    %443 = vmatprep.subr.mxu0 0.0
    %444 = vmatpush1.msra.mxu0 %v146
    %445 = vmatprep.subr.mxu0 0.0
    %446 = vmatpush1.msra.mxu0 %v147
    %447 = vmatprep.subr.mxu0 0.0
    %448 = vmatpush1.msra.mxu0 %v148
    %449 = vmatprep.subr.mxu0 0.0
    %450 = vmatpush1.msra.mxu0 %v149
    %451 = vmatprep.subr.mxu0 0.0
    %452 = vmatpush1.msra.mxu0 %v150
    %453 = vmatprep.subr.mxu0 0.0
    %454 = vmatpush1.msra.mxu0 %v151
    %455 = vmatprep.subr.mxu0 0.0
    %456 = vmatpush1.msra.mxu0 %v152
    %457 = vmatprep.subr.mxu0 0.0
    %458 = vmatpush1.msra.mxu0 %v153
    %459 = vmatprep.mubr.f32.mxu0 %v390
    %460 = vmatmul.mubr.f32.gmra.mrb[0].mxu0 %v389
    %v461 = vpop.f32.mrb[0].mxu0
    %v462 = vadd.f32 0.0, %v461
    %v463 = vpop.f32.mrb[0].mxu0
    %464 = vdwg.mxu0
    %465 = vmatprep.subr.mxu0 0.0
    %466 = vmatpush1.msra.mxu0 %v154
    %467 = vmatprep.subr.mxu0 0.0
    %468 = vmatpush1.msra.mxu0 %v155
    %469 = vmatprep.subr.mxu0 0.0
    %470 = vmatpush1.msra.mxu0 %v156
    %471 = vmatprep.subr.mxu0 0.0
    %472 = vmatpush1.msra.mxu0 %v157
    %473 = vmatprep.subr.mxu0 0.0
    %474 = vmatpush1.msra.mxu0 %v158
    %475 = vmatprep.subr.mxu0 0.0
    %476 = vmatpush1.msra.mxu0 %v159
    %477 = vmatprep.subr.mxu0 0.0
    %478 = vmatpush1.msra.mxu0 %v160
    %479 = vmatprep.subr.mxu0 0.0
    %480 = vmatpush1.msra.mxu0 %v161
    %481 = vmatprep.subr.mxu0 0.0
    %482 = vmatpush1.msra.mxu0 %v162
    %483 = vmatprep.subr.mxu0 0.0
    %484 = vmatpush1.msra.mxu0 %v163
    %485 = vmatprep.subr.mxu0 0.0
    %486 = vmatpush1.msra.mxu0 %v164
    %487 = vmatprep.subr.mxu0 0.0
    %488 = vmatpush1.msra.mxu0 %v165
    %489 = vmatprep.subr.mxu0 0.0
    %490 = vmatpush1.msra.mxu0 %v166
    %491 = vmatprep.subr.mxu0 0.0
    %492 = vmatpush1.msra.mxu0 %v167
    %493 = vmatprep.subr.mxu0 0.0
    %494 = vmatpush1.msra.mxu0 %v168
    %495 = vmatprep.subr.mxu0 0.0
    %496 = vmatpush1.msra.mxu0 %v169
    %497 = vmatprep.subr.mxu0 0.0
    %498 = vmatpush1.msra.mxu0 %v170
    %499 = vmatprep.subr.mxu0 0.0
    %500 = vmatpush1.msra.mxu0 %v171
    %501 = vmatprep.subr.mxu0 0.0
    %502 = vmatpush1.msra.mxu0 %v172
    %503 = vmatprep.subr.mxu0 0.0
    %504 = vmatpush1.msra.mxu0 %v173
    %505 = vmatprep.subr.mxu0 0.0
    %506 = vmatpush1.msra.mxu0 %v174
    %507 = vmatprep.subr.mxu0 0.0
    %508 = vmatpush1.msra.mxu0 %v175
    %509 = vmatprep.subr.mxu0 0.0
    %510 = vmatpush1.msra.mxu0 %v176
    %511 = vmatprep.subr.mxu0 0.0
    %512 = vmatpush1.msra.mxu0 %v177
    %513 = vmatprep.subr.mxu0 0.0
    %514 = vmatpush1.msra.mxu0 %v178
    %515 = vmatprep.subr.mxu0 0.0
    %516 = vmatpush1.msra.mxu0 %v179
    %517 = vmatprep.subr.mxu0 0.0
    %518 = vmatpush1.msra.mxu0 %v180
    %519 = vmatprep.subr.mxu0 0.0
    %520 = vmatpush1.msra.mxu0 %v181
    %521 = vmatprep.subr.mxu0 0.0
    %522 = vmatpush1.msra.mxu0 %v182
    %523 = vmatprep.subr.mxu0 0.0
    %524 = vmatpush1.msra.mxu0 %v183
    %525 = vmatprep.subr.mxu0 0.0
    %526 = vmatpush1.msra.mxu0 %v184
    %527 = vmatprep.subr.mxu0 0.0
    %528 = vmatpush1.msra.mxu0 %v185
    %529 = vmatprep.mubr.f32.mxu0 %v392
    %530 = vmatmul.mubr.f32.gmra.mrb[0].mxu0 %v391
    %v531 = vpop.f32.mrb[0].mxu0
    %v532 = vadd.f32 %v462, %v531
    %v533 = vpop.f32.mrb[0].mxu0
    %534 = vdwg.mxu0
    %v535 = vld [vmem:[#allocation4 + $0x8] sm:$0xff]
    %v536 = vld [vmem:[#allocation4 + $0x10] sm:$0xff]
    %538 = vset.pattern.permute.xlu0 0
    %539 = vperm.xlu0 %538, %v535
    %v540 = vpop.permute.xlu0 %539
    %543 = vset.pattern.permute.xlu0 0
    %544 = vperm.xlu0 %543, %v536
    %v545 = vpop.permute.xlu0 %544
    %v548 = vsel %vm243, %v393, 0
    %v551 = vsel %vm243, %v394, 0
    %553 = vmatprep.subr.mxu0 0.0
    %554 = vmatpush1.msra.mxu0 %v532
    %555 = vmatprep.subr.mxu0 0.0
    %556 = vmatpush1.msra.mxu0 0.0
    %557 = vmatprep.subr.mxu0 0.0
    %558 = vmatpush1.msra.mxu0 0.0
    %559 = vmatprep.subr.mxu0 0.0
    %560 = vmatpush1.msra.mxu0 0.0
    %561 = vmatprep.subr.mxu0 0.0
    %562 = vmatpush1.msra.mxu0 0.0
    %563 = vmatprep.subr.mxu0 0.0
    %564 = vmatpush1.msra.mxu0 0.0
    %565 = vmatprep.subr.mxu0 0.0
    %566 = vmatpush1.msra.mxu0 0.0
    %567 = vmatprep.subr.mxu0 0.0
    %568 = vmatpush1.msra.mxu0 0.0
    %569 = vmatprep.subr.mxu0 0.0
    %570 = vmatpush1.msra.mxu0 0.0
    %571 = vmatprep.subr.mxu0 0.0
    %572 = vmatpush1.msra.mxu0 0.0
    %573 = vmatprep.subr.mxu0 0.0
    %574 = vmatpush1.msra.mxu0 0.0
    %575 = vmatprep.subr.mxu0 0.0
    %576 = vmatpush1.msra.mxu0 0.0
    %577 = vmatprep.subr.mxu0 0.0
    %578 = vmatpush1.msra.mxu0 0.0
    %579 = vmatprep.subr.mxu0 0.0
    %580 = vmatpush1.msra.mxu0 0.0
    %581 = vmatprep.subr.mxu0 0.0
    %582 = vmatpush1.msra.mxu0 0.0
    %583 = vmatprep.subr.mxu0 0.0
    %584 = vmatpush1.msra.mxu0 0.0
    %585 = vmatprep.subr.mxu0 0.0
    %586 = vmatpush1.msra.mxu0 0.0
    %587 = vmatprep.subr.mxu0 0.0
    %588 = vmatpush1.msra.mxu0 0.0
    %589 = vmatprep.subr.mxu0 0.0
    %590 = vmatpush1.msra.mxu0 0.0
    %591 = vmatprep.subr.mxu0 0.0
    %592 = vmatpush1.msra.mxu0 0.0
    %593 = vmatprep.subr.mxu0 0.0
    %594 = vmatpush1.msra.mxu0 0.0
    %595 = vmatprep.subr.mxu0 0.0
    %596 = vmatpush1.msra.mxu0 0.0
    %597 = vmatprep.subr.mxu0 0.0
    %598 = vmatpush1.msra.mxu0 0.0
    %599 = vmatprep.subr.mxu0 0.0
    %600 = vmatpush1.msra.mxu0 0.0
    %601 = vmatprep.subr.mxu0 0.0
    %602 = vmatpush1.msra.mxu0 0.0
    %603 = vmatprep.subr.mxu0 0.0
    %604 = vmatpush1.msra.mxu0 0.0
    %605 = vmatprep.subr.mxu0 0.0
    %606 = vmatpush1.msra.mxu0 0.0
    %607 = vmatprep.subr.mxu0 0.0
    %608 = vmatpush1.msra.mxu0 0.0
    %609 = vmatprep.subr.mxu0 0.0
    %610 = vmatpush1.msra.mxu0 0.0
    %611 = vmatprep.subr.mxu0 0.0
    %612 = vmatpush1.msra.mxu0 0.0
    %613 = vmatprep.subr.mxu0 0.0
    %614 = vmatpush1.msra.mxu0 0.0
    %615 = vmatprep.subr.mxu0 0.0
    %616 = vmatpush1.msra.mxu0 0.0
    %617 = vmatprep.mubr.f32.mxu0 0.0
    %618 = vmatmul.mubr.f32.gmra.mrb[0].mxu0 %v548
    %v619 = vpop.f32.mrb[0].mxu0
    %v620 = vadd.f32 %v540, %v619
    %v621 = vpop.f32.mrb[0].mxu0
    %622 = vmatprep.mubr.f32.mxu0 0.0
    %623 = vmatmul.mubr.f32.gmra.mrb[0].mxu0 %v551
    %v624 = vpop.f32.mrb[0].mxu0
    %v625 = vadd.f32 %v545, %v624
    %v626 = vpop.f32.mrb[0].mxu0
    %627 = vdwg.mxu0
    %v628 = vmax.f32 %v620, 0.0
    %v629 = vmax.f32 %v625, 0.0
    %v630 = vld [vmem:[#allocation2 + $0x18] sm:$0xff]
    %v631 = vld [vmem:[#allocation2 + $0x20] sm:$0xff]
    %v632 = vld [vmem:[#allocation2 + $0x28] sm:$0xff]
    %v633 = vld [vmem:[#allocation2 + $0x30] sm:$0xff]
    %634 = vmatprep.subr.mxu0 0.0
    %635 = vmatpush1.msra.mxu0 %v202
    %636 = vmatprep.subr.mxu0 0.0
    %637 = vmatpush1.msra.mxu0 %v203
    %638 = vmatprep.subr.mxu0 0.0
    %639 = vmatpush1.msra.mxu0 %v204
    %640 = vmatprep.subr.mxu0 0.0
    %641 = vmatpush1.msra.mxu0 %v205
    %642 = vmatprep.subr.mxu0 0.0
    %643 = vmatpush1.msra.mxu0 %v206
    %644 = vmatprep.subr.mxu0 0.0
    %645 = vmatpush1.msra.mxu0 %v207
    %646 = vmatprep.subr.mxu0 0.0
    %647 = vmatpush1.msra.mxu0 %v208
    %648 = vmatprep.subr.mxu0 0.0
    %649 = vmatpush1.msra.mxu0 %v209
    %650 = vmatprep.subr.mxu0 0.0
    %651 = vmatpush1.msra.mxu0 %v210
    %652 = vmatprep.subr.mxu0 0.0
    %653 = vmatpush1.msra.mxu0 %v211
    %654 = vmatprep.subr.mxu0 0.0
    %655 = vmatpush1.msra.mxu0 %v212
    %656 = vmatprep.subr.mxu0 0.0
    %657 = vmatpush1.msra.mxu0 %v213
    %658 = vmatprep.subr.mxu0 0.0
    %659 = vmatpush1.msra.mxu0 %v214
    %660 = vmatprep.subr.mxu0 0.0
    %661 = vmatpush1.msra.mxu0 %v215
    %662 = vmatprep.subr.mxu0 0.0
    %663 = vmatpush1.msra.mxu0 %v216
    %664 = vmatprep.subr.mxu0 0.0
    %665 = vmatpush1.msra.mxu0 %v217
    %666 = vmatprep.subr.mxu0 0.0
    %667 = vmatpush1.msra.mxu0 0.0
    %668 = vmatprep.subr.mxu0 0.0
    %669 = vmatpush1.msra.mxu0 0.0
    %670 = vmatprep.subr.mxu0 0.0
    %671 = vmatpush1.msra.mxu0 0.0
    %672 = vmatprep.subr.mxu0 0.0
    %673 = vmatpush1.msra.mxu0 0.0
    %674 = vmatprep.subr.mxu0 0.0
    %675 = vmatpush1.msra.mxu0 0.0
    %676 = vmatprep.subr.mxu0 0.0
    %677 = vmatpush1.msra.mxu0 0.0
    %678 = vmatprep.subr.mxu0 0.0
    %679 = vmatpush1.msra.mxu0 0.0
    %680 = vmatprep.subr.mxu0 0.0
    %681 = vmatpush1.msra.mxu0 0.0
    %682 = vmatprep.subr.mxu0 0.0
    %683 = vmatpush1.msra.mxu0 0.0
    %684 = vmatprep.subr.mxu0 0.0
    %685 = vmatpush1.msra.mxu0 0.0
    %686 = vmatprep.subr.mxu0 0.0
    %687 = vmatpush1.msra.mxu0 0.0
    %688 = vmatprep.subr.mxu0 0.0
    %689 = vmatpush1.msra.mxu0 0.0
    %690 = vmatprep.subr.mxu0 0.0
    %691 = vmatpush1.msra.mxu0 0.0
    %692 = vmatprep.subr.mxu0 0.0
    %693 = vmatpush1.msra.mxu0 0.0
    %694 = vmatprep.subr.mxu0 0.0
    %695 = vmatpush1.msra.mxu0 0.0
    %696 = vmatprep.subr.mxu0 0.0
    %697 = vmatpush1.msra.mxu0 0.0
    %698 = vmatprep.mubr.f32.mxu0 0.0
    %699 = vmatmul.mubr.f32.gmra.mrb[0].mxu0 %v628
    %v700 = vpop.f32.mrb[0].mxu0
    %v701 = vadd.f32 0.0, %v700
    %v702 = vpop.f32.mrb[0].mxu0
    %703 = vmatprep.mubr.f32.mxu0 0.0
    %704 = vmatmul.mubr.f32.gmra.mrb[0].mxu0 %v629
    %v705 = vpop.f32.mrb[0].mxu0
    %v706 = vadd.f32 0.0, %v705
    %v707 = vpop.f32.mrb[0].mxu0
    %708 = vdwg.mxu0
    %v709 = vld [vmem:[#allocation4 + $0x18] sm:$0xff]
    %v710 = vld [vmem:[#allocation4 + $0x20] sm:$0xff]
    %v711 = vld [vmem:[#allocation4 + $0x28] sm:$0xff]
    %v712 = vld [vmem:[#allocation4 + $0x30] sm:$0xff]
    %714 = vset.pattern.permute.xlu0 0
    %715 = vperm.xlu0 %714, %v709
    %v716 = vpop.permute.xlu0 %715
    %719 = vset.pattern.permute.xlu0 0
    %720 = vperm.xlu0 %719, %v710
    %v721 = vpop.permute.xlu0 %720
    %724 = vset.pattern.permute.xlu0 0
    %725 = vperm.xlu0 %724, %v711
    %v726 = vpop.permute.xlu0 %725
    %729 = vset.pattern.permute.xlu0 0
    %730 = vperm.xlu0 %729, %v712
    %v731 = vpop.permute.xlu0 %730
    %vm733 = vcmask 130048
    %v735 = vsel %vm733, %v630, 0
    %v738 = vsel %vm733, %v631, 0
    %v741 = vsel %vm733, %v632, 0
    %v744 = vsel %vm733, %v633, 0
    %746 = vmatprep.subr.mxu0 0.0
    %747 = vmatpush1.msra.mxu0 %v701
    %748 = vmatprep.subr.mxu0 0.0
    %749 = vmatpush1.msra.mxu0 %v706
    %750 = vmatprep.subr.mxu0 0.0
    %751 = vmatpush1.msra.mxu0 0.0
    %752 = vmatprep.subr.mxu0 0.0
    %753 = vmatpush1.msra.mxu0 0.0
    %754 = vmatprep.subr.mxu0 0.0
    %755 = vmatpush1.msra.mxu0 0.0
    %756 = vmatprep.subr.mxu0 0.0
    %757 = vmatpush1.msra.mxu0 0.0
    %758 = vmatprep.subr.mxu0 0.0
    %759 = vmatpush1.msra.mxu0 0.0
    %760 = vmatprep.subr.mxu0 0.0
    %761 = vmatpush1.msra.mxu0 0.0
    %762 = vmatprep.subr.mxu0 0.0
    %763 = vmatpush1.msra.mxu0 0.0
    %764 = vmatprep.subr.mxu0 0.0
    %765 = vmatpush1.msra.mxu0 0.0
    %766 = vmatprep.subr.mxu0 0.0
    %767 = vmatpush1.msra.mxu0 0.0
    %768 = vmatprep.subr.mxu0 0.0
    %769 = vmatpush1.msra.mxu0 0.0
    %770 = vmatprep.subr.mxu0 0.0
    %771 = vmatpush1.msra.mxu0 0.0
    %772 = vmatprep.subr.mxu0 0.0
    %773 = vmatpush1.msra.mxu0 0.0
    %774 = vmatprep.subr.mxu0 0.0
    %775 = vmatpush1.msra.mxu0 0.0
    %776 = vmatprep.subr.mxu0 0.0
    %777 = vmatpush1.msra.mxu0 0.0
    %778 = vmatprep.subr.mxu0 0.0
    %779 = vmatpush1.msra.mxu0 0.0
    %780 = vmatprep.subr.mxu0 0.0
    %781 = vmatpush1.msra.mxu0 0.0
    %782 = vmatprep.subr.mxu0 0.0
    %783 = vmatpush1.msra.mxu0 0.0
    %784 = vmatprep.subr.mxu0 0.0
    %785 = vmatpush1.msra.mxu0 0.0
    %786 = vmatprep.subr.mxu0 0.0
    %787 = vmatpush1.msra.mxu0 0.0
    %788 = vmatprep.subr.mxu0 0.0
    %789 = vmatpush1.msra.mxu0 0.0
    %790 = vmatprep.subr.mxu0 0.0
    %791 = vmatpush1.msra.mxu0 0.0
    %792 = vmatprep.subr.mxu0 0.0
    %793 = vmatpush1.msra.mxu0 0.0
    %794 = vmatprep.subr.mxu0 0.0
    %795 = vmatpush1.msra.mxu0 0.0
    %796 = vmatprep.subr.mxu0 0.0
    %797 = vmatpush1.msra.mxu0 0.0
    %798 = vmatprep.subr.mxu0 0.0
    %799 = vmatpush1.msra.mxu0 0.0
    %800 = vmatprep.subr.mxu0 0.0
    %801 = vmatpush1.msra.mxu0 0.0
    %802 = vmatprep.subr.mxu0 0.0
    %803 = vmatpush1.msra.mxu0 0.0
    %804 = vmatprep.subr.mxu0 0.0
    %805 = vmatpush1.msra.mxu0 0.0
    %806 = vmatprep.subr.mxu0 0.0
    %807 = vmatpush1.msra.mxu0 0.0
    %808 = vmatprep.subr.mxu0 0.0
    %809 = vmatpush1.msra.mxu0 0.0
    %810 = vmatprep.mubr.f32.mxu0 0.0
    %811 = vmatmul.mubr.f32.gmra.mrb[0].mxu0 %v735
    %v812 = vpop.f32.mrb[0].mxu0
    %v813 = vadd.f32 %v716, %v812
    %v814 = vpop.f32.mrb[0].mxu0
    %815 = vmatprep.mubr.f32.mxu0 0.0
    %816 = vmatmul.mubr.f32.gmra.mrb[0].mxu0 %v738
    %v817 = vpop.f32.mrb[0].mxu0
    %v818 = vadd.f32 %v721, %v817
    %v819 = vpop.f32.mrb[0].mxu0
    %820 = vmatprep.mubr.f32.mxu0 0.0
    %821 = vmatmul.mubr.f32.gmra.mrb[0].mxu0 %v741
    %v822 = vpop.f32.mrb[0].mxu0
    %v823 = vadd.f32 %v726, %v822
    %v824 = vpop.f32.mrb[0].mxu0
    %825 = vmatprep.mubr.f32.mxu0 0.0
    %826 = vmatmul.mubr.f32.gmra.mrb[0].mxu0 %v744
    %v827 = vpop.f32.mrb[0].mxu0
    %v828 = vadd.f32 %v731, %v827
    %v829 = vpop.f32.mrb[0].mxu0
    %830 = vdwg.mxu0
    %v831 = vmax.f32 %v813, 0.0
    %v832 = vmax.f32 %v818, 0.0
    %v833 = vmax.f32 %v823, 0.0
    %v834 = vmax.f32 %v828, 0.0
    %v835 = vld [vmem:[#allocation2 + $0x38] sm:$0xff]
    %v836 = vld [vmem:[#allocation2 + $0x40] sm:$0xff]
    %v837 = vld [vmem:[#allocation2 + $0x48] sm:$0xff]
    %v838 = vld [vmem:[#allocation2 + $0x50] sm:$0xff]
    %v839 = vld [vmem:[#allocation2 + $0x58] sm:$0xff]
    %v840 = vld [vmem:[#allocation2 + $0x60] sm:$0xff]
    %v841 = vld [vmem:[#allocation2 + $0x68] sm:$0xff]
    %v842 = vld [vmem:[#allocation2 + $0x70] sm:$0xff]
    %vm843 = vcmask 261120
    %v845 = vsel %vm843, %v831, 0
    %v848 = vsel %vm843, %v832, 0
    %v851 = vsel %vm843, %v833, 0
    %v854 = vsel %vm843, %v834, 0
    %856 = vmatprep.subr.mxu0 0.0
    %857 = vmatpush1.msra.mxu0 %v222
    %858 = vmatprep.subr.mxu0 0.0
    %859 = vmatpush1.msra.mxu0 %v223
    %860 = vmatprep.subr.mxu0 0.0
    %861 = vmatpush1.msra.mxu0 %v224
    %862 = vmatprep.subr.mxu0 0.0
    %863 = vmatpush1.msra.mxu0 %v225
    %864 = vmatprep.subr.mxu0 0.0
    %865 = vmatpush1.msra.mxu0 0.0
    %866 = vmatprep.subr.mxu0 0.0
    %867 = vmatpush1.msra.mxu0 0.0
    %868 = vmatprep.subr.mxu0 0.0
    %869 = vmatpush1.msra.mxu0 0.0
    %870 = vmatprep.subr.mxu0 0.0
    %871 = vmatpush1.msra.mxu0 0.0
    %872 = vmatprep.subr.mxu0 0.0
    %873 = vmatpush1.msra.mxu0 0.0
    %874 = vmatprep.subr.mxu0 0.0
    %875 = vmatpush1.msra.mxu0 0.0
    %876 = vmatprep.subr.mxu0 0.0
    %877 = vmatpush1.msra.mxu0 0.0
    %878 = vmatprep.subr.mxu0 0.0
    %879 = vmatpush1.msra.mxu0 0.0
    %880 = vmatprep.subr.mxu0 0.0
    %881 = vmatpush1.msra.mxu0 0.0
    %882 = vmatprep.subr.mxu0 0.0
    %883 = vmatpush1.msra.mxu0 0.0
    %884 = vmatprep.subr.mxu0 0.0
    %885 = vmatpush1.msra.mxu0 0.0
    %886 = vmatprep.subr.mxu0 0.0
    %887 = vmatpush1.msra.mxu0 0.0
    %888 = vmatprep.subr.mxu0 0.0
    %889 = vmatpush1.msra.mxu0 0.0
    %890 = vmatprep.subr.mxu0 0.0
    %891 = vmatpush1.msra.mxu0 0.0
    %892 = vmatprep.subr.mxu0 0.0
    %893 = vmatpush1.msra.mxu0 0.0
    %894 = vmatprep.subr.mxu0 0.0
    %895 = vmatpush1.msra.mxu0 0.0
    %896 = vmatprep.subr.mxu0 0.0
    %897 = vmatpush1.msra.mxu0 0.0
    %898 = vmatprep.subr.mxu0 0.0
    %899 = vmatpush1.msra.mxu0 0.0
    %900 = vmatprep.subr.mxu0 0.0
    %901 = vmatpush1.msra.mxu0 0.0
    %902 = vmatprep.subr.mxu0 0.0
    %903 = vmatpush1.msra.mxu0 0.0
    %904 = vmatprep.subr.mxu0 0.0
    %905 = vmatpush1.msra.mxu0 0.0
    %906 = vmatprep.subr.mxu0 0.0
    %907 = vmatpush1.msra.mxu0 0.0
    %908 = vmatprep.subr.mxu0 0.0
    %909 = vmatpush1.msra.mxu0 0.0
    %910 = vmatprep.subr.mxu0 0.0
    %911 = vmatpush1.msra.mxu0 0.0
    %912 = vmatprep.subr.mxu0 0.0
    %913 = vmatpush1.msra.mxu0 0.0
    %914 = vmatprep.subr.mxu0 0.0
    %915 = vmatpush1.msra.mxu0 0.0
    %916 = vmatprep.subr.mxu0 0.0
    %917 = vmatpush1.msra.mxu0 0.0
    %918 = vmatprep.subr.mxu0 0.0
    %919 = vmatpush1.msra.mxu0 0.0
    %920 = vmatprep.mubr.f32.mxu0 0.0
    %921 = vmatmul.mubr.f32.gmra.mrb[0].mxu0 %v845
    %v922 = vpop.f32.mrb[0].mxu0
    %v923 = vadd.f32 0.0, %v922
    %v924 = vpop.f32.mrb[0].mxu0
    %925 = vmatprep.mubr.f32.mxu0 0.0
    %926 = vmatmul.mubr.f32.gmra.mrb[0].mxu0 %v848
    %v927 = vpop.f32.mrb[0].mxu0
    %v928 = vadd.f32 0.0, %v927
    %v929 = vpop.f32.mrb[0].mxu0
    %930 = vmatprep.mubr.f32.mxu0 0.0
    %931 = vmatmul.mubr.f32.gmra.mrb[0].mxu0 %v851
    %v932 = vpop.f32.mrb[0].mxu0
    %v933 = vadd.f32 0.0, %v932
    %v934 = vpop.f32.mrb[0].mxu0
    %935 = vmatprep.mubr.f32.mxu0 0.0
    %936 = vmatmul.mubr.f32.gmra.mrb[0].mxu0 %v854
    %v937 = vpop.f32.mrb[0].mxu0
    %v938 = vadd.f32 0.0, %v937
    %v939 = vpop.f32.mrb[0].mxu0
    %940 = vdwg.mxu0
    %v941 = vld [vmem:[#allocation4 + $0x38] sm:$0xff]
    %v942 = vld [vmem:[#allocation4 + $0x40] sm:$0xff]
    %v943 = vld [vmem:[#allocation4 + $0x48] sm:$0xff]
    %v944 = vld [vmem:[#allocation4 + $0x50] sm:$0xff]
    %v945 = vld [vmem:[#allocation4 + $0x58] sm:$0xff]
    %v946 = vld [vmem:[#allocation4 + $0x60] sm:$0xff]
    %v947 = vld [vmem:[#allocation4 + $0x68] sm:$0xff]
    %v948 = vld [vmem:[#allocation4 + $0x70] sm:$0xff]
    %950 = vset.pattern.permute.xlu0 0
    %951 = vperm.xlu0 %950, %v941
    %v952 = vpop.permute.xlu0 %951
    %955 = vset.pattern.permute.xlu0 0
    %956 = vperm.xlu0 %955, %v942
    %v957 = vpop.permute.xlu0 %956
    %960 = vset.pattern.permute.xlu0 0
    %961 = vperm.xlu0 %960, %v943
    %v962 = vpop.permute.xlu0 %961
    %965 = vset.pattern.permute.xlu0 0
    %966 = vperm.xlu0 %965, %v944
    %v967 = vpop.permute.xlu0 %966
    %970 = vset.pattern.permute.xlu0 0
    %971 = vperm.xlu0 %970, %v945
    %v972 = vpop.permute.xlu0 %971
    %975 = vset.pattern.permute.xlu0 0
    %976 = vperm.xlu0 %975, %v946
    %v977 = vpop.permute.xlu0 %976
    %980 = vset.pattern.permute.xlu0 0
    %981 = vperm.xlu0 %980, %v947
    %v982 = vpop.permute.xlu0 %981
    %985 = vset.pattern.permute.xlu0 0
    %986 = vperm.xlu0 %985, %v948
    %v987 = vpop.permute.xlu0 %986
    %v990 = vsel %vm843, %v835, 0
    %v993 = vsel %vm843, %v836, 0
    %v996 = vsel %vm843, %v837, 0
    %v999 = vsel %vm843, %v838, 0
    %v1002 = vsel %vm843, %v839, 0
    %v1005 = vsel %vm843, %v840, 0
    %v1008 = vsel %vm843, %v841, 0
    %v1011 = vsel %vm843, %v842, 0
    %1013 = vmatprep.subr.mxu0 0.0
    %1014 = vmatpush1.msra.mxu0 %v923
    %1015 = vmatprep.subr.mxu0 0.0
    %1016 = vmatpush1.msra.mxu0 %v928
    %1017 = vmatprep.subr.mxu0 0.0
    %1018 = vmatpush1.msra.mxu0 %v933
    %1019 = vmatprep.subr.mxu0 0.0
    %1020 = vmatpush1.msra.mxu0 %v938
    %1021 = vmatprep.subr.mxu0 0.0
    %1022 = vmatpush1.msra.mxu0 0.0
    %1023 = vmatprep.subr.mxu0 0.0
    %1024 = vmatpush1.msra.mxu0 0.0
    %1025 = vmatprep.subr.mxu0 0.0
    %1026 = vmatpush1.msra.mxu0 0.0
    %1027 = vmatprep.subr.mxu0 0.0
    %1028 = vmatpush1.msra.mxu0 0.0
    %1029 = vmatprep.subr.mxu0 0.0
    %1030 = vmatpush1.msra.mxu0 0.0
    %1031 = vmatprep.subr.mxu0 0.0
    %1032 = vmatpush1.msra.mxu0 0.0
    %1033 = vmatprep.subr.mxu0 0.0
    %1034 = vmatpush1.msra.mxu0 0.0
    %1035 = vmatprep.subr.mxu0 0.0
    %1036 = vmatpush1.msra.mxu0 0.0
    %1037 = vmatprep.subr.mxu0 0.0
    %1038 = vmatpush1.msra.mxu0 0.0
    %1039 = vmatprep.subr.mxu0 0.0
    %1040 = vmatpush1.msra.mxu0 0.0
    %1041 = vmatprep.subr.mxu0 0.0
    %1042 = vmatpush1.msra.mxu0 0.0
    %1043 = vmatprep.subr.mxu0 0.0
    %1044 = vmatpush1.msra.mxu0 0.0
    %1045 = vmatprep.subr.mxu0 0.0
    %1046 = vmatpush1.msra.mxu0 0.0
    %1047 = vmatprep.subr.mxu0 0.0
    %1048 = vmatpush1.msra.mxu0 0.0
    %1049 = vmatprep.subr.mxu0 0.0
    %1050 = vmatpush1.msra.mxu0 0.0
    %1051 = vmatprep.subr.mxu0 0.0
    %1052 = vmatpush1.msra.mxu0 0.0
    %1053 = vmatprep.subr.mxu0 0.0
    %1054 = vmatpush1.msra.mxu0 0.0
    %1055 = vmatprep.subr.mxu0 0.0
    %1056 = vmatpush1.msra.mxu0 0.0
    %1057 = vmatprep.subr.mxu0 0.0
    %1058 = vmatpush1.msra.mxu0 0.0
    %1059 = vmatprep.subr.mxu0 0.0
    %1060 = vmatpush1.msra.mxu0 0.0
    %1061 = vmatprep.subr.mxu0 0.0
    %1062 = vmatpush1.msra.mxu0 0.0
    %1063 = vmatprep.subr.mxu0 0.0
    %1064 = vmatpush1.msra.mxu0 0.0
    %1065 = vmatprep.subr.mxu0 0.0
    %1066 = vmatpush1.msra.mxu0 0.0
    %1067 = vmatprep.subr.mxu0 0.0
    %1068 = vmatpush1.msra.mxu0 0.0
    %1069 = vmatprep.subr.mxu0 0.0
    %1070 = vmatpush1.msra.mxu0 0.0
    %1071 = vmatprep.subr.mxu0 0.0
    %1072 = vmatpush1.msra.mxu0 0.0
    %1073 = vmatprep.subr.mxu0 0.0
    %1074 = vmatpush1.msra.mxu0 0.0
    %1075 = vmatprep.subr.mxu0 0.0
    %1076 = vmatpush1.msra.mxu0 0.0
    %1077 = vmatprep.mubr.f32.mxu0 0.0
    %1078 = vmatmul.mubr.f32.gmra.mrb[0].mxu0 %v990
    %v1079 = vpop.f32.mrb[0].mxu0
    %v1080 = vadd.f32 %v952, %v1079
    %v1081 = vpop.f32.mrb[0].mxu0
    %1082 = vmatprep.mubr.f32.mxu0 0.0
    %1083 = vmatmul.mubr.f32.gmra.mrb[0].mxu0 %v993
    %v1084 = vpop.f32.mrb[0].mxu0
    %v1085 = vadd.f32 %v957, %v1084
    %v1086 = vpop.f32.mrb[0].mxu0
    %1087 = vmatprep.mubr.f32.mxu0 0.0
    %1088 = vmatmul.mubr.f32.gmra.mrb[0].mxu0 %v996
    %v1089 = vpop.f32.mrb[0].mxu0
    %v1090 = vadd.f32 %v962, %v1089
    %v1091 = vpop.f32.mrb[0].mxu0
    %1092 = vmatprep.mubr.f32.mxu0 0.0
    %1093 = vmatmul.mubr.f32.gmra.mrb[0].mxu0 %v999
    %v1094 = vpop.f32.mrb[0].mxu0
    %v1095 = vadd.f32 %v967, %v1094
    %v1096 = vpop.f32.mrb[0].mxu0
    %1097 = vmatprep.mubr.f32.mxu0 0.0
    %1098 = vmatmul.mubr.f32.gmra.mrb[0].mxu0 %v1002
    %v1099 = vpop.f32.mrb[0].mxu0
    %v1100 = vadd.f32 %v972, %v1099
    %v1101 = vpop.f32.mrb[0].mxu0
    %1102 = vmatprep.mubr.f32.mxu0 0.0
    %1103 = vmatmul.mubr.f32.gmra.mrb[0].mxu0 %v1005
    %v1104 = vpop.f32.mrb[0].mxu0
    %v1105 = vadd.f32 %v977, %v1104
    %v1106 = vpop.f32.mrb[0].mxu0
    %1107 = vmatprep.mubr.f32.mxu0 0.0
    %1108 = vmatmul.mubr.f32.gmra.mrb[0].mxu0 %v1008
    %v1109 = vpop.f32.mrb[0].mxu0
    %v1110 = vadd.f32 %v982, %v1109
    %v1111 = vpop.f32.mrb[0].mxu0
    %1112 = vmatprep.mubr.f32.mxu0 0.0
    %1113 = vmatmul.mubr.f32.gmra.mrb[0].mxu0 %v1011
    %v1114 = vpop.f32.mrb[0].mxu0
    %v1115 = vadd.f32 %v987, %v1114
    %v1116 = vpop.f32.mrb[0].mxu0
    %1117 = vdwg.mxu0
    %v1118 = vmax.f32 %v1080, 0.0
    %v1119 = vmax.f32 %v1085, 0.0
    %v1120 = vmax.f32 %v1090, 0.0
    %v1121 = vmax.f32 %v1095, 0.0
    %v1122 = vmax.f32 %v1100, 0.0
    %v1123 = vmax.f32 %v1105, 0.0
    %v1124 = vmax.f32 %v1110, 0.0
    %v1125 = vmax.f32 %v1115, 0.0
    %v1126 = vld [vmem:[#allocation2 + $0x78] sm:$0xff]
    %v1127 = vld [vmem:[#allocation2 + $0x80] sm:$0xff]
    %v1128 = vld [vmem:[#allocation2 + $0x88] sm:$0xff]
    %v1129 = vld [vmem:[#allocation2 + $0x90] sm:$0xff]
    %v1130 = vld [vmem:[#allocation2 + $0x98] sm:$0xff]
    %v1131 = vld [vmem:[#allocation2 + $0xa0] sm:$0xff]
    %v1132 = vld [vmem:[#allocation4 + $0x78] sm:$0xff]
    %v1133 = vld [vmem:[#allocation4 + $0x80] sm:$0xff]
    %v1134 = vld [vmem:[#allocation4 + $0x88] sm:$0xff]
    %v1135 = vld [vmem:[#allocation4 + $0x90] sm:$0xff]
    %v1137 = vsel %vm733, %v1126, 0
    %v1140 = vsel %vm733, %v1127, 0
    %v1143 = vsel %vm733, %v1128, 0
    %v1146 = vsel %vm733, %v1129, 0
    %1148 = vmatprep.subr.mxu0 0.0
    %1149 = vmatpush1.msra.mxu0 %v628
    %1150 = vmatprep.subr.mxu0 0.0
    %1151 = vmatpush1.msra.mxu0 %v629
    %1152 = vmatprep.subr.mxu0 0.0
    %1153 = vmatpush1.msra.mxu0 0.0
    %1154 = vmatprep.subr.mxu0 0.0
    %1155 = vmatpush1.msra.mxu0 0.0
    %1156 = vmatprep.subr.mxu0 0.0
    %1157 = vmatpush1.msra.mxu0 0.0
    %1158 = vmatprep.subr.mxu0 0.0
    %1159 = vmatpush1.msra.mxu0 0.0
    %1160 = vmatprep.subr.mxu0 0.0
    %1161 = vmatpush1.msra.mxu0 0.0
    %1162 = vmatprep.subr.mxu0 0.0
    %1163 = vmatpush1.msra.mxu0 0.0
    %1164 = vmatprep.subr.mxu0 0.0
    %1165 = vmatpush1.msra.mxu0 0.0
    %1166 = vmatprep.subr.mxu0 0.0
    %1167 = vmatpush1.msra.mxu0 0.0
    %1168 = vmatprep.subr.mxu0 0.0
    %1169 = vmatpush1.msra.mxu0 0.0
    %1170 = vmatprep.subr.mxu0 0.0
    %1171 = vmatpush1.msra.mxu0 0.0
    %1172 = vmatprep.subr.mxu0 0.0
    %1173 = vmatpush1.msra.mxu0 0.0
    %1174 = vmatprep.subr.mxu0 0.0
    %1175 = vmatpush1.msra.mxu0 0.0
    %1176 = vmatprep.subr.mxu0 0.0
    %1177 = vmatpush1.msra.mxu0 0.0
    %1178 = vmatprep.subr.mxu0 0.0
    %1179 = vmatpush1.msra.mxu0 0.0
    %1180 = vmatprep.subr.mxu0 0.0
    %1181 = vmatpush1.msra.mxu0 0.0
    %1182 = vmatprep.subr.mxu0 0.0
    %1183 = vmatpush1.msra.mxu0 0.0
    %1184 = vmatprep.subr.mxu0 0.0
    %1185 = vmatpush1.msra.mxu0 0.0
    %1186 = vmatprep.subr.mxu0 0.0
    %1187 = vmatpush1.msra.mxu0 0.0
    %1188 = vmatprep.subr.mxu0 0.0
    %1189 = vmatpush1.msra.mxu0 0.0
    %1190 = vmatprep.subr.mxu0 0.0
    %1191 = vmatpush1.msra.mxu0 0.0
    %1192 = vmatprep.subr.mxu0 0.0
    %1193 = vmatpush1.msra.mxu0 0.0
    %1194 = vmatprep.subr.mxu0 0.0
    %1195 = vmatpush1.msra.mxu0 0.0
    %1196 = vmatprep.subr.mxu0 0.0
    %1197 = vmatpush1.msra.mxu0 0.0
    %1198 = vmatprep.subr.mxu0 0.0
    %1199 = vmatpush1.msra.mxu0 0.0
    %1200 = vmatprep.subr.mxu0 0.0
    %1201 = vmatpush1.msra.mxu0 0.0
    %1202 = vmatprep.subr.mxu0 0.0
    %1203 = vmatpush1.msra.mxu0 0.0
    %1204 = vmatprep.subr.mxu0 0.0
    %1205 = vmatpush1.msra.mxu0 0.0
    %1206 = vmatprep.subr.mxu0 0.0
    %1207 = vmatpush1.msra.mxu0 0.0
    %1208 = vmatprep.subr.mxu0 0.0
    %1209 = vmatpush1.msra.mxu0 0.0
    %1210 = vmatprep.subr.mxu0 0.0
    %1211 = vmatpush1.msra.mxu0 0.0
    %1212 = vmatprep.mubr.f32.mxu0 0.0
    %1213 = vmatmul.mubr.f32.gmra.mrb[0].mxu0 %v1137
    %v1214 = vpop.f32.mrb[0].mxu0
    %v1215 = vadd.f32 0.0, %v1214
    %v1216 = vpop.f32.mrb[0].mxu0
    %1217 = vmatprep.mubr.f32.mxu0 0.0
    %1218 = vmatmul.mubr.f32.gmra.mrb[0].mxu0 %v1140
    %v1219 = vpop.f32.mrb[0].mxu0
    %v1220 = vadd.f32 0.0, %v1219
    %v1221 = vpop.f32.mrb[0].mxu0
    %1222 = vmatprep.mubr.f32.mxu0 0.0
    %1223 = vmatmul.mubr.f32.gmra.mrb[0].mxu0 %v1143
    %v1224 = vpop.f32.mrb[0].mxu0
    %v1225 = vadd.f32 0.0, %v1224
    %v1226 = vpop.f32.mrb[0].mxu0
    %1227 = vmatprep.mubr.f32.mxu0 0.0
    %1228 = vmatmul.mubr.f32.gmra.mrb[0].mxu0 %v1146
    %v1229 = vpop.f32.mrb[0].mxu0
    %v1230 = vadd.f32 0.0, %v1229
    %v1231 = vpop.f32.mrb[0].mxu0
    %1232 = vdwg.mxu0
    %1234 = vset.pattern.permute.xlu0 0
    %1235 = vperm.xlu0 %1234, %v1132
    %v1236 = vpop.permute.xlu0 %1235
    %1239 = vset.pattern.permute.xlu0 0
    %1240 = vperm.xlu0 %1239, %v1133
    %v1241 = vpop.permute.xlu0 %1240
    %1244 = vset.pattern.permute.xlu0 0
    %1245 = vperm.xlu0 %1244, %v1134
    %v1246 = vpop.permute.xlu0 %1245
    %1249 = vset.pattern.permute.xlu0 0
    %1250 = vperm.xlu0 %1249, %v1135
    %v1251 = vpop.permute.xlu0 %1250
    %v1253 = vadd.f32 %v1236, %v1215
    %v1254 = vadd.f32 %v1241, %v1220
    %v1255 = vadd.f32 %v1246, %v1225
    %v1256 = vadd.f32 %v1251, %v1230
    %v1257 = vmin.f32 %v1253, %v1254
    %v1258 = vmin.f32 %v1255, %v1256
    %v1259 = vmin.f32 %v1257, %v1258
    %v1260 = vrot.slane %v1259, 4
    %v1261 = vmin.f32 %v1259, %v1260
    %v1262 = vrot.slane %v1261, 2
    %v1263 = vmin.f32 %v1261, %v1262
    %v1264 = vrot.slane %v1263, 1
    %v1265 = vmin.f32 %v1263, %v1264
    %v1266 = vlaneseq
    %v1267 = vshrl.u32 %v1266, 7
    %v1268 = vadd.s32 %v1267, 8
    %v1269 = vadd.s32 %v1267, 16
    %v1270 = vadd.s32 %v1267, 24
    %vm1271 = vcmp.le.f32.partialorder %v1253, %v1265
    %vm1272 = vcmp.le.f32.partialorder %v1254, %v1265
    %vm1273 = vcmp.le.f32.partialorder %v1255, %v1265
    %vm1274 = vcmp.le.f32.partialorder %v1256, %v1265
    %v1275 = vsel %vm1271, %v1267, 32
    %v1276 = vsel %vm1272, %v1268, 32
    %v1277 = vsel %vm1273, %v1269, 32
    %v1278 = vsel %vm1274, %v1270, 32
    %vm1279 = vcmp.lt.s32.totalorder %v1275, %v1276
    %v1280 = vsel %vm1279, %v1275, %v1276
    %vm1281 = vcmp.lt.s32.totalorder %v1277, %v1278
    %v1282 = vsel %vm1281, %v1277, %v1278
    %vm1283 = vcmp.lt.s32.totalorder %v1280, %v1282
    %v1284 = vsel %vm1283, %v1280, %v1282
    %v1285 = vrot.slane %v1284, 4
    %vm1286 = vcmp.lt.s32.totalorder %v1284, %v1285
    %v1287 = vsel %vm1286, %v1284, %v1285
    %v1288 = vrot.slane %v1287, 2
    %vm1289 = vcmp.lt.s32.totalorder %v1287, %v1288
    %v1290 = vsel %vm1289, %v1287, %v1288
    %v1291 = vrot.slane %v1290, 1
    %vm1292 = vcmp.lt.s32.totalorder %v1290, %v1291
    %v1293 = vsel %vm1292, %v1290, %v1291
    %vm1294 = vcmp.eq.s32.totalorder %v1267, %v1293
    %vm1295 = vcmp.eq.s32.totalorder %v1268, %v1293
    %vm1296 = vcmp.eq.s32.totalorder %v1269, %v1293
    %vm1297 = vcmp.eq.s32.totalorder %v1270, %v1293
    %v1298 = vsel %vm1294, 1, 0
    %v1299 = vsel %vm1295, 1, 0
    %v1300 = vsel %vm1296, 1, 0
    %v1301 = vsel %vm1297, 1, 0
    %v1302 = vcvt.s32.f32 %v1298
    %v1303 = vcvt.s32.f32 %v1299
    %v1304 = vcvt.s32.f32 %v1300
    %v1305 = vcvt.s32.f32 %v1301
    %v1307 = vsel %vm843, %v1130, 0
    %v1310 = vsel %vm843, %v1131, 0
    %1312 = vmatprep.subr.mxu0 0.0
    %1313 = vmatpush1.msra.mxu0 %v1302
    %1314 = vmatprep.subr.mxu0 0.0
    %1315 = vmatpush1.msra.mxu0 %v1303
    %1316 = vmatprep.subr.mxu0 0.0
    %1317 = vmatpush1.msra.mxu0 %v1304
    %1318 = vmatprep.subr.mxu0 0.0
    %1319 = vmatpush1.msra.mxu0 %v1305
    %1320 = vmatprep.subr.mxu0 0.0
    %1321 = vmatpush1.msra.mxu0 0.0
    %1322 = vmatprep.subr.mxu0 0.0
    %1323 = vmatpush1.msra.mxu0 0.0
    %1324 = vmatprep.subr.mxu0 0.0
    %1325 = vmatpush1.msra.mxu0 0.0
    %1326 = vmatprep.subr.mxu0 0.0
    %1327 = vmatpush1.msra.mxu0 0.0
    %1328 = vmatprep.subr.mxu0 0.0
    %1329 = vmatpush1.msra.mxu0 0.0
    %1330 = vmatprep.subr.mxu0 0.0
    %1331 = vmatpush1.msra.mxu0 0.0
    %1332 = vmatprep.subr.mxu0 0.0
    %1333 = vmatpush1.msra.mxu0 0.0
    %1334 = vmatprep.subr.mxu0 0.0
    %1335 = vmatpush1.msra.mxu0 0.0
    %1336 = vmatprep.subr.mxu0 0.0
    %1337 = vmatpush1.msra.mxu0 0.0
    %1338 = vmatprep.subr.mxu0 0.0
    %1339 = vmatpush1.msra.mxu0 0.0
    %1340 = vmatprep.subr.mxu0 0.0
    %1341 = vmatpush1.msra.mxu0 0.0
    %1342 = vmatprep.subr.mxu0 0.0
    %1343 = vmatpush1.msra.mxu0 0.0
    %1344 = vmatprep.subr.mxu0 0.0
    %1345 = vmatpush1.msra.mxu0 0.0
    %1346 = vmatprep.subr.mxu0 0.0
    %1347 = vmatpush1.msra.mxu0 0.0
    %1348 = vmatprep.subr.mxu0 0.0
    %1349 = vmatpush1.msra.mxu0 0.0
    %1350 = vmatprep.subr.mxu0 0.0
    %1351 = vmatpush1.msra.mxu0 0.0
    %1352 = vmatprep.subr.mxu0 0.0
    %1353 = vmatpush1.msra.mxu0 0.0
    %1354 = vmatprep.subr.mxu0 0.0
    %1355 = vmatpush1.msra.mxu0 0.0
    %1356 = vmatprep.subr.mxu0 0.0
    %1357 = vmatpush1.msra.mxu0 0.0
    %1358 = vmatprep.subr.mxu0 0.0
    %1359 = vmatpush1.msra.mxu0 0.0
    %1360 = vmatprep.subr.mxu0 0.0
    %1361 = vmatpush1.msra.mxu0 0.0
    %1362 = vmatprep.subr.mxu0 0.0
    %1363 = vmatpush1.msra.mxu0 0.0
    %1364 = vmatprep.subr.mxu0 0.0
    %1365 = vmatpush1.msra.mxu0 0.0
    %1366 = vmatprep.subr.mxu0 0.0
    %1367 = vmatpush1.msra.mxu0 0.0
    %1368 = vmatprep.subr.mxu0 0.0
    %1369 = vmatpush1.msra.mxu0 0.0
    %1370 = vmatprep.subr.mxu0 0.0
    %1371 = vmatpush1.msra.mxu0 0.0
    %1372 = vmatprep.subr.mxu0 0.0
    %1373 = vmatpush1.msra.mxu0 0.0
    %1374 = vmatprep.subr.mxu0 0.0
    %1375 = vmatpush1.msra.mxu0 0.0
    %1376 = vmatprep.mubr.f32.mxu0 0.0
    %1377 = vmatmul.mubr.f32.gmra.mrb[0].mxu0 %v1307
    %v1378 = vpop.f32.mrb[0].mxu0
    %v1379 = vadd.f32 0.0, %v1378
    %v1380 = vpop.f32.mrb[0].mxu0
    %1381 = vmatprep.mubr.f32.mxu0 0.0
    %1382 = vmatmul.mubr.f32.gmra.mrb[0].mxu0 %v1310
    %v1383 = vpop.f32.mrb[0].mxu0
    %v1384 = vadd.f32 0.0, %v1383
    %v1385 = vpop.f32.mrb[0].mxu0
    %1386 = vdwg.mxu0
    %v1387 = vsub.f32 %v628, %v1379
    %v1388 = vsub.f32 %v629, %v1384
    %v1389 = vld [vmem:[#allocation2 + $0xa8] sm:$0xff]
    %v1390 = vld [vmem:[#allocation2 + $0xb0] sm:$0xff]
    %v1391 = vld [vmem:[#allocation2 + $0xb8] sm:$0xff]
    %v1392 = vld [vmem:[#allocation2 + $0xc0] sm:$0xff]
    %v1393 = vld [vmem:[#allocation2 + $0xc8] sm:$0xff]
    %v1394 = vld [vmem:[#allocation2 + $0xd0] sm:$0xff]
    %v1395 = vld [vmem:[#allocation2 + $0xd8] sm:$0xff]
    %v1396 = vld [vmem:[#allocation2 + $0xe0] sm:$0xff]
    %v1397 = vld [vmem:[#allocation4 + $0x98] sm:$0xff]
    %v1398 = vld [vmem:[#allocation4 + $0xa0] sm:$0xff]
    %v1399 = vld [vmem:[#allocation4 + $0xa8] sm:$0xff]
    %v1400 = vld [vmem:[#allocation4 + $0xb0] sm:$0xff]
    %v1402 = vsel %vm843, %v1389, 0
    %v1405 = vsel %vm843, %v1390, 0
    %v1408 = vsel %vm843, %v1391, 0
    %v1411 = vsel %vm843, %v1392, 0
    %1413 = vmatprep.subr.mxu0 0.0
    %1414 = vmatpush1.msra.mxu0 %v831
    %1415 = vmatprep.subr.mxu0 0.0
    %1416 = vmatpush1.msra.mxu0 %v832
    %1417 = vmatprep.subr.mxu0 0.0
    %1418 = vmatpush1.msra.mxu0 %v833
    %1419 = vmatprep.subr.mxu0 0.0
    %1420 = vmatpush1.msra.mxu0 %v834
    %1421 = vmatprep.subr.mxu0 0.0
    %1422 = vmatpush1.msra.mxu0 0.0
    %1423 = vmatprep.subr.mxu0 0.0
    %1424 = vmatpush1.msra.mxu0 0.0
    %1425 = vmatprep.subr.mxu0 0.0
    %1426 = vmatpush1.msra.mxu0 0.0
    %1427 = vmatprep.subr.mxu0 0.0
    %1428 = vmatpush1.msra.mxu0 0.0
    %1429 = vmatprep.subr.mxu0 0.0
    %1430 = vmatpush1.msra.mxu0 0.0
    %1431 = vmatprep.subr.mxu0 0.0
    %1432 = vmatpush1.msra.mxu0 0.0
    %1433 = vmatprep.subr.mxu0 0.0
    %1434 = vmatpush1.msra.mxu0 0.0
    %1435 = vmatprep.subr.mxu0 0.0
    %1436 = vmatpush1.msra.mxu0 0.0
    %1437 = vmatprep.subr.mxu0 0.0
    %1438 = vmatpush1.msra.mxu0 0.0
    %1439 = vmatprep.subr.mxu0 0.0
    %1440 = vmatpush1.msra.mxu0 0.0
    %1441 = vmatprep.subr.mxu0 0.0
    %1442 = vmatpush1.msra.mxu0 0.0
    %1443 = vmatprep.subr.mxu0 0.0
    %1444 = vmatpush1.msra.mxu0 0.0
    %1445 = vmatprep.subr.mxu0 0.0
    %1446 = vmatpush1.msra.mxu0 0.0
    %1447 = vmatprep.subr.mxu0 0.0
    %1448 = vmatpush1.msra.mxu0 0.0
    %1449 = vmatprep.subr.mxu0 0.0
    %1450 = vmatpush1.msra.mxu0 0.0
    %1451 = vmatprep.subr.mxu0 0.0
    %1452 = vmatpush1.msra.mxu0 0.0
    %1453 = vmatprep.subr.mxu0 0.0
    %1454 = vmatpush1.msra.mxu0 0.0
    %1455 = vmatprep.subr.mxu0 0.0
    %1456 = vmatpush1.msra.mxu0 0.0
    %1457 = vmatprep.subr.mxu0 0.0
    %1458 = vmatpush1.msra.mxu0 0.0
    %1459 = vmatprep.subr.mxu0 0.0
    %1460 = vmatpush1.msra.mxu0 0.0
    %1461 = vmatprep.subr.mxu0 0.0
    %1462 = vmatpush1.msra.mxu0 0.0
    %1463 = vmatprep.subr.mxu0 0.0
    %1464 = vmatpush1.msra.mxu0 0.0
    %1465 = vmatprep.subr.mxu0 0.0
    %1466 = vmatpush1.msra.mxu0 0.0
    %1467 = vmatprep.subr.mxu0 0.0
    %1468 = vmatpush1.msra.mxu0 0.0
    %1469 = vmatprep.subr.mxu0 0.0
    %1470 = vmatpush1.msra.mxu0 0.0
    %1471 = vmatprep.subr.mxu0 0.0
    %1472 = vmatpush1.msra.mxu0 0.0
    %1473 = vmatprep.subr.mxu0 0.0
    %1474 = vmatpush1.msra.mxu0 0.0
    %1475 = vmatprep.subr.mxu0 0.0
    %1476 = vmatpush1.msra.mxu0 0.0
    %1477 = vmatprep.mubr.f32.mxu0 0.0
    %1478 = vmatmul.mubr.f32.gmra.mrb[0].mxu0 %v1402
    %v1479 = vpop.f32.mrb[0].mxu0
    %v1480 = vadd.f32 0.0, %v1479
    %v1481 = vpop.f32.mrb[0].mxu0
    %1482 = vmatprep.mubr.f32.mxu0 0.0
    %1483 = vmatmul.mubr.f32.gmra.mrb[0].mxu0 %v1405
    %v1484 = vpop.f32.mrb[0].mxu0
    %v1485 = vadd.f32 0.0, %v1484
    %v1486 = vpop.f32.mrb[0].mxu0
    %1487 = vmatprep.mubr.f32.mxu0 0.0
    %1488 = vmatmul.mubr.f32.gmra.mrb[0].mxu0 %v1408
    %v1489 = vpop.f32.mrb[0].mxu0
    %v1490 = vadd.f32 0.0, %v1489
    %v1491 = vpop.f32.mrb[0].mxu0
    %1492 = vmatprep.mubr.f32.mxu0 0.0
    %1493 = vmatmul.mubr.f32.gmra.mrb[0].mxu0 %v1411
    %v1494 = vpop.f32.mrb[0].mxu0
    %v1495 = vadd.f32 0.0, %v1494
    %v1496 = vpop.f32.mrb[0].mxu0
    %1497 = vdwg.mxu0
    %1499 = vset.pattern.permute.xlu0 0
    %1500 = vperm.xlu0 %1499, %v1397
    %v1501 = vpop.permute.xlu0 %1500
    %1504 = vset.pattern.permute.xlu0 0
    %1505 = vperm.xlu0 %1504, %v1398
    %v1506 = vpop.permute.xlu0 %1505
    %1509 = vset.pattern.permute.xlu0 0
    %1510 = vperm.xlu0 %1509, %v1399
    %v1511 = vpop.permute.xlu0 %1510
    %1514 = vset.pattern.permute.xlu0 0
    %1515 = vperm.xlu0 %1514, %v1400
    %v1516 = vpop.permute.xlu0 %1515
    %v1518 = vadd.f32 %v1501, %v1480
    %v1519 = vadd.f32 %v1506, %v1485
    %v1520 = vadd.f32 %v1511, %v1490
    %v1521 = vadd.f32 %v1516, %v1495
    %v1522 = vsel %vm843, %v1518, inf
    %v1523 = vsel %vm843, %v1519, inf
    %v1524 = vsel %vm843, %v1520, inf
    %v1525 = vsel %vm843, %v1521, inf
    %v1526 = vmin.f32 %v1522, %v1523
    %v1527 = vmin.f32 %v1524, %v1525
    %v1528 = vmin.f32 %v1526, %v1527
    %v1529 = vrot.slane %v1528, 4
    %v1530 = vmin.f32 %v1528, %v1529
    %v1531 = vrot.slane %v1530, 2
    %v1532 = vmin.f32 %v1530, %v1531
    %v1533 = vrot.slane %v1532, 1
    %v1534 = vmin.f32 %v1532, %v1533
    %vm1535 = vcmp.le.f32.partialorder %v1518, %v1534
    %vm1536 = vcmp.le.f32.partialorder %v1519, %v1534
    %vm1537 = vcmp.le.f32.partialorder %v1520, %v1534
    %vm1538 = vcmp.le.f32.partialorder %v1521, %v1534
    %v1539 = vsel %vm1535, %v1267, 32
    %v1540 = vsel %vm1536, %v1268, 32
    %v1541 = vsel %vm1537, %v1269, 32
    %v1542 = vsel %vm1538, %v1270, 32
    %v1543 = vsel %vm843, %v1539, 2147483647
    %v1544 = vsel %vm843, %v1540, 2147483647
    %v1545 = vsel %vm843, %v1541, 2147483647
    %v1546 = vsel %vm843, %v1542, 2147483647
    %vm1547 = vcmp.lt.s32.totalorder %v1543, %v1544
    %v1548 = vsel %vm1547, %v1543, %v1544
    %vm1549 = vcmp.lt.s32.totalorder %v1545, %v1546
    %v1550 = vsel %vm1549, %v1545, %v1546
    %vm1551 = vcmp.lt.s32.totalorder %v1548, %v1550
    %v1552 = vsel %vm1551, %v1548, %v1550
    %v1553 = vrot.slane %v1552, 4
    %vm1554 = vcmp.lt.s32.totalorder %v1552, %v1553
    %v1555 = vsel %vm1554, %v1552, %v1553
    %v1556 = vrot.slane %v1555, 2
    %vm1557 = vcmp.lt.s32.totalorder %v1555, %v1556
    %v1558 = vsel %vm1557, %v1555, %v1556
    %v1559 = vrot.slane %v1558, 1
    %vm1560 = vcmp.lt.s32.totalorder %v1558, %v1559
    %v1561 = vsel %vm1560, %v1558, %v1559
    %vm1562 = vcmp.eq.s32.totalorder %v1267, %v1561
    %vm1563 = vcmp.eq.s32.totalorder %v1268, %v1561
    %vm1564 = vcmp.eq.s32.totalorder %v1269, %v1561
    %vm1565 = vcmp.eq.s32.totalorder %v1270, %v1561
    %v1566 = vsel %vm1562, 1, 0
    %v1567 = vsel %vm1563, 1, 0
    %v1568 = vsel %vm1564, 1, 0
    %v1569 = vsel %vm1565, 1, 0
    %v1570 = vcvt.s32.f32 %v1566
    %v1571 = vcvt.s32.f32 %v1567
    %v1572 = vcvt.s32.f32 %v1568
    %v1573 = vcvt.s32.f32 %v1569
    %v1575 = vsel %vm843, %v1393, 0
    %v1578 = vsel %vm843, %v1394, 0
    %v1581 = vsel %vm843, %v1395, 0
    %v1584 = vsel %vm843, %v1396, 0
    %1586 = vmatprep.subr.mxu0 0.0
    %1587 = vmatpush1.msra.mxu0 %v1570
    %1588 = vmatprep.subr.mxu0 0.0
    %1589 = vmatpush1.msra.mxu0 %v1571
    %1590 = vmatprep.subr.mxu0 0.0
    %1591 = vmatpush1.msra.mxu0 %v1572
    %1592 = vmatprep.subr.mxu0 0.0
    %1593 = vmatpush1.msra.mxu0 %v1573
    %1594 = vmatprep.subr.mxu0 0.0
    %1595 = vmatpush1.msra.mxu0 0.0
    %1596 = vmatprep.subr.mxu0 0.0
    %1597 = vmatpush1.msra.mxu0 0.0
    %1598 = vmatprep.subr.mxu0 0.0
    %1599 = vmatpush1.msra.mxu0 0.0
    %1600 = vmatprep.subr.mxu0 0.0
    %1601 = vmatpush1.msra.mxu0 0.0
    %1602 = vmatprep.subr.mxu0 0.0
    %1603 = vmatpush1.msra.mxu0 0.0
    %1604 = vmatprep.subr.mxu0 0.0
    %1605 = vmatpush1.msra.mxu0 0.0
    %1606 = vmatprep.subr.mxu0 0.0
    %1607 = vmatpush1.msra.mxu0 0.0
    %1608 = vmatprep.subr.mxu0 0.0
    %1609 = vmatpush1.msra.mxu0 0.0
    %1610 = vmatprep.subr.mxu0 0.0
    %1611 = vmatpush1.msra.mxu0 0.0
    %1612 = vmatprep.subr.mxu0 0.0
    %1613 = vmatpush1.msra.mxu0 0.0
    %1614 = vmatprep.subr.mxu0 0.0
    %1615 = vmatpush1.msra.mxu0 0.0
    %1616 = vmatprep.subr.mxu0 0.0
    %1617 = vmatpush1.msra.mxu0 0.0
    %1618 = vmatprep.subr.mxu0 0.0
    %1619 = vmatpush1.msra.mxu0 0.0
    %1620 = vmatprep.subr.mxu0 0.0
    %1621 = vmatpush1.msra.mxu0 0.0
    %1622 = vmatprep.subr.mxu0 0.0
    %1623 = vmatpush1.msra.mxu0 0.0
    %1624 = vmatprep.subr.mxu0 0.0
    %1625 = vmatpush1.msra.mxu0 0.0
    %1626 = vmatprep.subr.mxu0 0.0
    %1627 = vmatpush1.msra.mxu0 0.0
    %1628 = vmatprep.subr.mxu0 0.0
    %1629 = vmatpush1.msra.mxu0 0.0
    %1630 = vmatprep.subr.mxu0 0.0
    %1631 = vmatpush1.msra.mxu0 0.0
    %1632 = vmatprep.subr.mxu0 0.0
    %1633 = vmatpush1.msra.mxu0 0.0
    %1634 = vmatprep.subr.mxu0 0.0
    %1635 = vmatpush1.msra.mxu0 0.0
    %1636 = vmatprep.subr.mxu0 0.0
    %1637 = vmatpush1.msra.mxu0 0.0
    %1638 = vmatprep.subr.mxu0 0.0
    %1639 = vmatpush1.msra.mxu0 0.0
    %1640 = vmatprep.subr.mxu0 0.0
    %1641 = vmatpush1.msra.mxu0 0.0
    %1642 = vmatprep.subr.mxu0 0.0
    %1643 = vmatpush1.msra.mxu0 0.0
    %1644 = vmatprep.subr.mxu0 0.0
    %1645 = vmatpush1.msra.mxu0 0.0
    %1646 = vmatprep.subr.mxu0 0.0
    %1647 = vmatpush1.msra.mxu0 0.0
    %1648 = vmatprep.subr.mxu0 0.0
    %1649 = vmatpush1.msra.mxu0 0.0
    %1650 = vmatprep.mubr.f32.mxu0 0.0
    %1651 = vmatmul.mubr.f32.gmra.mrb[0].mxu0 %v1575
    %v1652 = vpop.f32.mrb[0].mxu0
    %v1653 = vadd.f32 0.0, %v1652
    %v1654 = vpop.f32.mrb[0].mxu0
    %1655 = vmatprep.mubr.f32.mxu0 0.0
    %1656 = vmatmul.mubr.f32.gmra.mrb[0].mxu0 %v1578
    %v1657 = vpop.f32.mrb[0].mxu0
    %v1658 = vadd.f32 0.0, %v1657
    %v1659 = vpop.f32.mrb[0].mxu0
    %1660 = vmatprep.mubr.f32.mxu0 0.0
    %1661 = vmatmul.mubr.f32.gmra.mrb[0].mxu0 %v1581
    %v1662 = vpop.f32.mrb[0].mxu0
    %v1663 = vadd.f32 0.0, %v1662
    %v1664 = vpop.f32.mrb[0].mxu0
    %1665 = vmatprep.mubr.f32.mxu0 0.0
    %1666 = vmatmul.mubr.f32.gmra.mrb[0].mxu0 %v1584
    %v1667 = vpop.f32.mrb[0].mxu0
    %v1668 = vadd.f32 0.0, %v1667
    %v1669 = vpop.f32.mrb[0].mxu0
    %1670 = vdwg.mxu0
    %v1671 = vsub.f32 %v831, %v1653
    %v1672 = vsub.f32 %v832, %v1658
    %v1673 = vsub.f32 %v833, %v1663
    %v1674 = vsub.f32 %v834, %v1668
    %1675 = vmatprep.subr.mxu0 0.0
    %1676 = vmatpush1.xpose.msra.mxu0 %v227
    %1677 = vmatprep.subr.mxu0 0.0
    %1678 = vmatpush1.xpose.msra.mxu0 0.0
    %1679 = vmatprep.subr.mxu0 0.0
    %1680 = vmatpush1.xpose.msra.mxu0 0.0
    %1681 = vmatprep.subr.mxu0 0.0
    %1682 = vmatpush1.xpose.msra.mxu0 0.0
    %1683 = vmatprep.subr.mxu0 0.0
    %1684 = vmatpush1.xpose.msra.mxu0 0.0
    %1685 = vmatprep.subr.mxu0 0.0
    %1686 = vmatpush1.xpose.msra.mxu0 0.0
    %1687 = vmatprep.subr.mxu0 0.0
    %1688 = vmatpush1.xpose.msra.mxu0 0.0
    %1689 = vmatprep.subr.mxu0 0.0
    %1690 = vmatpush1.xpose.msra.mxu0 0.0
    %1691 = vmatprep.subr.mxu0 0.0
    %1692 = vmatpush1.xpose.msra.mxu0 0.0
    %1693 = vmatprep.subr.mxu0 0.0
    %1694 = vmatpush1.xpose.msra.mxu0 0.0
    %1695 = vmatprep.subr.mxu0 0.0
    %1696 = vmatpush1.xpose.msra.mxu0 0.0
    %1697 = vmatprep.subr.mxu0 0.0
    %1698 = vmatpush1.xpose.msra.mxu0 0.0
    %1699 = vmatprep.subr.mxu0 0.0
    %1700 = vmatpush1.xpose.msra.mxu0 0.0
    %1701 = vmatprep.subr.mxu0 0.0
    %1702 = vmatpush1.xpose.msra.mxu0 0.0
    %1703 = vmatprep.subr.mxu0 0.0
    %1704 = vmatpush1.xpose.msra.mxu0 0.0
    %1705 = vmatprep.subr.mxu0 0.0
    %1706 = vmatpush1.xpose.msra.mxu0 0.0
    %1707 = vmatprep.subr.mxu0 0.0
    %1708 = vmatpush1.xpose.msra.mxu0 0.0
    %1709 = vmatprep.subr.mxu0 0.0
    %1710 = vmatpush1.xpose.msra.mxu0 0.0
    %1711 = vmatprep.subr.mxu0 0.0
    %1712 = vmatpush1.xpose.msra.mxu0 0.0
    %1713 = vmatprep.subr.mxu0 0.0
    %1714 = vmatpush1.xpose.msra.mxu0 0.0
    %1715 = vmatprep.subr.mxu0 0.0
    %1716 = vmatpush1.xpose.msra.mxu0 0.0
    %1717 = vmatprep.subr.mxu0 0.0
    %1718 = vmatpush1.xpose.msra.mxu0 0.0
    %1719 = vmatprep.subr.mxu0 0.0
    %1720 = vmatpush1.xpose.msra.mxu0 0.0
    %1721 = vmatprep.subr.mxu0 0.0
    %1722 = vmatpush1.xpose.msra.mxu0 0.0
    %1723 = vmatprep.subr.mxu0 0.0
    %1724 = vmatpush1.xpose.msra.mxu0 0.0
    %1725 = vmatprep.subr.mxu0 0.0
    %1726 = vmatpush1.xpose.msra.mxu0 0.0
    %1727 = vmatprep.subr.mxu0 0.0
    %1728 = vmatpush1.xpose.msra.mxu0 0.0
    %1729 = vmatprep.subr.mxu0 0.0
    %1730 = vmatpush1.xpose.msra.mxu0 0.0
    %1731 = vmatprep.subr.mxu0 0.0
    %1732 = vmatpush1.xpose.msra.mxu0 0.0
    %1733 = vmatprep.subr.mxu0 0.0
    %1734 = vmatpush1.xpose.msra.mxu0 0.0
    %1735 = vmatprep.subr.mxu0 0.0
    %1736 = vmatpush1.xpose.msra.mxu0 0.0
    %1737 = vmatprep.subr.mxu0 0.0
    %1738 = vmatpush1.xpose.msra.mxu0 0.0
    %1739 = vmatprep.mubr.f32.mxu0 0.0
    %1740 = vmatmul.mubr.f32.gmra.mrb[0].mxu0 %v1387
    %v1741 = vpop.f32.mrb[0].mxu0
    %v1742 = vadd.f32 0.0, %v1741
    %v1743 = vpop.f32.mrb[0].mxu0
    %1744 = vmatprep.mubr.f32.mxu0 0.0
    %1745 = vmatmul.mubr.f32.gmra.mrb[0].mxu0 %v1388
    %v1746 = vpop.f32.mrb[0].mxu0
    %v1747 = vadd.f32 0.0, %v1746
    %v1748 = vpop.f32.mrb[0].mxu0
    %1749 = vdwg.mxu0
    %v1751 = vsel %vm843, %v1671, 0
    %v1754 = vsel %vm843, %v1672, 0
    %v1757 = vsel %vm843, %v1673, 0
    %v1760 = vsel %vm843, %v1674, 0
    %v1763 = vsel %vm843, %v229, 0
    %1765 = vmatprep.subr.mxu0 0.0
    %1766 = vmatpush1.xpose.msra.mxu0 %v1763
    %1767 = vmatprep.subr.mxu0 0.0
    %1768 = vmatpush1.xpose.msra.mxu0 0.0
    %1769 = vmatprep.subr.mxu0 0.0
    %1770 = vmatpush1.xpose.msra.mxu0 0.0
    %1771 = vmatprep.subr.mxu0 0.0
    %1772 = vmatpush1.xpose.msra.mxu0 0.0
    %1773 = vmatprep.subr.mxu0 0.0
    %1774 = vmatpush1.xpose.msra.mxu0 0.0
    %1775 = vmatprep.subr.mxu0 0.0
    %1776 = vmatpush1.xpose.msra.mxu0 0.0
    %1777 = vmatprep.subr.mxu0 0.0
    %1778 = vmatpush1.xpose.msra.mxu0 0.0
    %1779 = vmatprep.subr.mxu0 0.0
    %1780 = vmatpush1.xpose.msra.mxu0 0.0
    %1781 = vmatprep.subr.mxu0 0.0
    %1782 = vmatpush1.xpose.msra.mxu0 0.0
    %1783 = vmatprep.subr.mxu0 0.0
    %1784 = vmatpush1.xpose.msra.mxu0 0.0
    %1785 = vmatprep.subr.mxu0 0.0
    %1786 = vmatpush1.xpose.msra.mxu0 0.0
    %1787 = vmatprep.subr.mxu0 0.0
    %1788 = vmatpush1.xpose.msra.mxu0 0.0
    %1789 = vmatprep.subr.mxu0 0.0
    %1790 = vmatpush1.xpose.msra.mxu0 0.0
    %1791 = vmatprep.subr.mxu0 0.0
    %1792 = vmatpush1.xpose.msra.mxu0 0.0
    %1793 = vmatprep.subr.mxu0 0.0
    %1794 = vmatpush1.xpose.msra.mxu0 0.0
    %1795 = vmatprep.subr.mxu0 0.0
    %1796 = vmatpush1.xpose.msra.mxu0 0.0
    %1797 = vmatprep.subr.mxu0 0.0
    %1798 = vmatpush1.xpose.msra.mxu0 0.0
    %1799 = vmatprep.subr.mxu0 0.0
    %1800 = vmatpush1.xpose.msra.mxu0 0.0
    %1801 = vmatprep.subr.mxu0 0.0
    %1802 = vmatpush1.xpose.msra.mxu0 0.0
    %1803 = vmatprep.subr.mxu0 0.0
    %1804 = vmatpush1.xpose.msra.mxu0 0.0
    %1805 = vmatprep.subr.mxu0 0.0
    %1806 = vmatpush1.xpose.msra.mxu0 0.0
    %1807 = vmatprep.subr.mxu0 0.0
    %1808 = vmatpush1.xpose.msra.mxu0 0.0
    %1809 = vmatprep.subr.mxu0 0.0
    %1810 = vmatpush1.xpose.msra.mxu0 0.0
    %1811 = vmatprep.subr.mxu0 0.0
    %1812 = vmatpush1.xpose.msra.mxu0 0.0
    %1813 = vmatprep.subr.mxu0 0.0
    %1814 = vmatpush1.xpose.msra.mxu0 0.0
    %1815 = vmatprep.subr.mxu0 0.0
    %1816 = vmatpush1.xpose.msra.mxu0 0.0
    %1817 = vmatprep.subr.mxu0 0.0
    %1818 = vmatpush1.xpose.msra.mxu0 0.0
    %1819 = vmatprep.subr.mxu0 0.0
    %1820 = vmatpush1.xpose.msra.mxu0 0.0
    %1821 = vmatprep.subr.mxu0 0.0
    %1822 = vmatpush1.xpose.msra.mxu0 0.0
    %1823 = vmatprep.subr.mxu0 0.0
    %1824 = vmatpush1.xpose.msra.mxu0 0.0
    %1825 = vmatprep.subr.mxu0 0.0
    %1826 = vmatpush1.xpose.msra.mxu0 0.0
    %1827 = vmatprep.subr.mxu0 0.0
    %1828 = vmatpush1.xpose.msra.mxu0 0.0
    %1829 = vmatprep.mubr.f32.mxu0 0.0
    %1830 = vmatmul.mubr.f32.gmra.mrb[0].mxu0 %v1751
    %v1831 = vpop.f32.mrb[0].mxu0
    %v1832 = vadd.f32 0.0, %v1831
    %v1833 = vpop.f32.mrb[0].mxu0
    %1834 = vmatprep.mubr.f32.mxu0 0.0
    %1835 = vmatmul.mubr.f32.gmra.mrb[0].mxu0 %v1754
    %v1836 = vpop.f32.mrb[0].mxu0
    %v1837 = vadd.f32 0.0, %v1836
    %v1838 = vpop.f32.mrb[0].mxu0
    %1839 = vmatprep.mubr.f32.mxu0 0.0
    %1840 = vmatmul.mubr.f32.gmra.mrb[0].mxu0 %v1757
    %v1841 = vpop.f32.mrb[0].mxu0
    %v1842 = vadd.f32 0.0, %v1841
    %v1843 = vpop.f32.mrb[0].mxu0
    %1844 = vmatprep.mubr.f32.mxu0 0.0
    %1845 = vmatmul.mubr.f32.gmra.mrb[0].mxu0 %v1760
    %v1846 = vpop.f32.mrb[0].mxu0
    %v1847 = vadd.f32 0.0, %v1846
    %v1848 = vpop.f32.mrb[0].mxu0
    %1849 = vdwg.mxu0
    %v1851 = vsel %vm243, %v1118, 0
    %v1854 = vsel %vm243, %v1119, 0
    %v1857 = vsel %vm243, %v1120, 0
    %v1860 = vsel %vm243, %v1121, 0
    %v1863 = vsel %vm243, %v1122, 0
    %v1866 = vsel %vm243, %v1123, 0
    %v1869 = vsel %vm243, %v1124, 0
    %v1872 = vsel %vm243, %v1125, 0
    %v1875 = vsel %vm243, %v231, 0
    %1877 = vmatprep.subr.mxu0 0.0
    %1878 = vmatpush1.xpose.msra.mxu0 %v1875
    %1879 = vmatprep.subr.mxu0 0.0
    %1880 = vmatpush1.xpose.msra.mxu0 0.0
    %1881 = vmatprep.subr.mxu0 0.0
    %1882 = vmatpush1.xpose.msra.mxu0 0.0
    %1883 = vmatprep.subr.mxu0 0.0
    %1884 = vmatpush1.xpose.msra.mxu0 0.0
    %1885 = vmatprep.subr.mxu0 0.0
    %1886 = vmatpush1.xpose.msra.mxu0 0.0
    %1887 = vmatprep.subr.mxu0 0.0
    %1888 = vmatpush1.xpose.msra.mxu0 0.0
    %1889 = vmatprep.subr.mxu0 0.0
    %1890 = vmatpush1.xpose.msra.mxu0 0.0
    %1891 = vmatprep.subr.mxu0 0.0
    %1892 = vmatpush1.xpose.msra.mxu0 0.0
    %1893 = vmatprep.subr.mxu0 0.0
    %1894 = vmatpush1.xpose.msra.mxu0 0.0
    %1895 = vmatprep.subr.mxu0 0.0
    %1896 = vmatpush1.xpose.msra.mxu0 0.0
    %1897 = vmatprep.subr.mxu0 0.0
    %1898 = vmatpush1.xpose.msra.mxu0 0.0
    %1899 = vmatprep.subr.mxu0 0.0
    %1900 = vmatpush1.xpose.msra.mxu0 0.0
    %1901 = vmatprep.subr.mxu0 0.0
    %1902 = vmatpush1.xpose.msra.mxu0 0.0
    %1903 = vmatprep.subr.mxu0 0.0
    %1904 = vmatpush1.xpose.msra.mxu0 0.0
    %1905 = vmatprep.subr.mxu0 0.0
    %1906 = vmatpush1.xpose.msra.mxu0 0.0
    %1907 = vmatprep.subr.mxu0 0.0
    %1908 = vmatpush1.xpose.msra.mxu0 0.0
    %1909 = vmatprep.subr.mxu0 0.0
    %1910 = vmatpush1.xpose.msra.mxu0 0.0
    %1911 = vmatprep.subr.mxu0 0.0
    %1912 = vmatpush1.xpose.msra.mxu0 0.0
    %1913 = vmatprep.subr.mxu0 0.0
    %1914 = vmatpush1.xpose.msra.mxu0 0.0
    %1915 = vmatprep.subr.mxu0 0.0
    %1916 = vmatpush1.xpose.msra.mxu0 0.0
    %1917 = vmatprep.subr.mxu0 0.0
    %1918 = vmatpush1.xpose.msra.mxu0 0.0
    %1919 = vmatprep.subr.mxu0 0.0
    %1920 = vmatpush1.xpose.msra.mxu0 0.0
    %1921 = vmatprep.subr.mxu0 0.0
    %1922 = vmatpush1.xpose.msra.mxu0 0.0
    %1923 = vmatprep.subr.mxu0 0.0
    %1924 = vmatpush1.xpose.msra.mxu0 0.0
    %1925 = vmatprep.subr.mxu0 0.0
    %1926 = vmatpush1.xpose.msra.mxu0 0.0
    %1927 = vmatprep.subr.mxu0 0.0
    %1928 = vmatpush1.xpose.msra.mxu0 0.0
    %1929 = vmatprep.subr.mxu0 0.0
    %1930 = vmatpush1.xpose.msra.mxu0 0.0
    %1931 = vmatprep.subr.mxu0 0.0
    %1932 = vmatpush1.xpose.msra.mxu0 0.0
    %1933 = vmatprep.subr.mxu0 0.0
    %1934 = vmatpush1.xpose.msra.mxu0 0.0
    %1935 = vmatprep.subr.mxu0 0.0
    %1936 = vmatpush1.xpose.msra.mxu0 0.0
    %1937 = vmatprep.subr.mxu0 0.0
    %1938 = vmatpush1.xpose.msra.mxu0 0.0
    %1939 = vmatprep.subr.mxu0 0.0
    %1940 = vmatpush1.xpose.msra.mxu0 0.0
    %1941 = vmatprep.mubr.f32.mxu0 0.0
    %1942 = vmatmul.mubr.f32.gmra.mrb[0].mxu0 %v1851
    %v1943 = vpop.f32.mrb[0].mxu0
    %v1944 = vadd.f32 0.0, %v1943
    %v1945 = vpop.f32.mrb[0].mxu0
    %1946 = vmatprep.mubr.f32.mxu0 0.0
    %1947 = vmatmul.mubr.f32.gmra.mrb[0].mxu0 %v1854
    %v1948 = vpop.f32.mrb[0].mxu0
    %v1949 = vadd.f32 0.0, %v1948
    %v1950 = vpop.f32.mrb[0].mxu0
    %1951 = vmatprep.mubr.f32.mxu0 0.0
    %1952 = vmatmul.mubr.f32.gmra.mrb[0].mxu0 %v1857
    %v1953 = vpop.f32.mrb[0].mxu0
    %v1954 = vadd.f32 0.0, %v1953
    %v1955 = vpop.f32.mrb[0].mxu0
    %1956 = vmatprep.mubr.f32.mxu0 0.0
    %1957 = vmatmul.mubr.f32.gmra.mrb[0].mxu0 %v1860
    %v1958 = vpop.f32.mrb[0].mxu0
    %v1959 = vadd.f32 0.0, %v1958
    %v1960 = vpop.f32.mrb[0].mxu0
    %1961 = vmatprep.mubr.f32.mxu0 0.0
    %1962 = vmatmul.mubr.f32.gmra.mrb[0].mxu0 %v1863
    %v1963 = vpop.f32.mrb[0].mxu0
    %v1964 = vadd.f32 0.0, %v1963
    %v1965 = vpop.f32.mrb[0].mxu0
    %1966 = vmatprep.mubr.f32.mxu0 0.0
    %1967 = vmatmul.mubr.f32.gmra.mrb[0].mxu0 %v1866
    %v1968 = vpop.f32.mrb[0].mxu0
    %v1969 = vadd.f32 0.0, %v1968
    %v1970 = vpop.f32.mrb[0].mxu0
    %1971 = vmatprep.mubr.f32.mxu0 0.0
    %1972 = vmatmul.mubr.f32.gmra.mrb[0].mxu0 %v1869
    %v1973 = vpop.f32.mrb[0].mxu0
    %v1974 = vadd.f32 0.0, %v1973
    %v1975 = vpop.f32.mrb[0].mxu0
    %1976 = vmatprep.mubr.f32.mxu0 0.0
    %1977 = vmatmul.mubr.f32.gmra.mrb[0].mxu0 %v1872
    %v1978 = vpop.f32.mrb[0].mxu0
    %v1979 = vadd.f32 0.0, %v1978
    %v1980 = vpop.f32.mrb[0].mxu0
    %1981 = vdwg.mxu0
    %v1982 = vld [vmem:[#allocation2 + $0xe8] sm:$0xff]
    %v1983 = vld [vmem:[#allocation2 + $0xf0] sm:$0xff]
    %v1984 = vld [vmem:[#allocation2 + $0xf8] sm:$0xff]
    %v1985 = vld [vmem:[#allocation2 + $0x100] sm:$0xff]
    %v1986 = vld [vmem:[#allocation2 + $0x108] sm:$0xff]
    %v1987 = vld [vmem:[#allocation2 + $0x110] sm:$0xff]
    %v1988 = vld [vmem:[#allocation2 + $0x118] sm:$0xff]
    %v1989 = vld [vmem:[#allocation2 + $0x120] sm:$0xff]
    %v1990 = vld [vmem:[#allocation2 + $0x128] sm:$0xff]
    %v1991 = vld [vmem:[#allocation2 + $0x130] sm:$0xff]
    %v1992 = vld [vmem:[#allocation2 + $0x138] sm:$0xff]
    %v1993 = vld [vmem:[#allocation2 + $0x140] sm:$0xff]
    %v1994 = vld [vmem:[#allocation2 + $0x148] sm:$0xff]
    %v1995 = vld [vmem:[#allocation2 + $0x150] sm:$0xff]
    %v1996 = vld [vmem:[#allocation2 + $0x158] sm:$0xff]
    %v1997 = vld [vmem:[#allocation2 + $0x160] sm:$0xff]
    %v1999 = vsel %vm843, %v1990, 0
    %v2002 = vsel %vm843, %v1991, 0
    %v2005 = vsel %vm843, %v1992, 0
    %v2008 = vsel %vm843, %v1993, 0
    %v2011 = vsel %vm843, %v1994, 0
    %v2014 = vsel %vm843, %v1995, 0
    %v2017 = vsel %vm843, %v1996, 0
    %v2020 = vsel %vm843, %v1997, 0
    %2022 = vmatprep.subr.mxu0 0.0
    %2023 = vmatpush1.msra.mxu0 %v1832
    %2024 = vmatprep.subr.mxu0 0.0
    %2025 = vmatpush1.msra.mxu0 %v1837
    %2026 = vmatprep.subr.mxu0 0.0
    %2027 = vmatpush1.msra.mxu0 %v1842
    %2028 = vmatprep.subr.mxu0 0.0
    %2029 = vmatpush1.msra.mxu0 %v1847
    %2030 = vmatprep.subr.mxu0 0.0
    %2031 = vmatpush1.msra.mxu0 0.0
    %2032 = vmatprep.subr.mxu0 0.0
    %2033 = vmatpush1.msra.mxu0 0.0
    %2034 = vmatprep.subr.mxu0 0.0
    %2035 = vmatpush1.msra.mxu0 0.0
    %2036 = vmatprep.subr.mxu0 0.0
    %2037 = vmatpush1.msra.mxu0 0.0
    %2038 = vmatprep.subr.mxu0 0.0
    %2039 = vmatpush1.msra.mxu0 0.0
    %2040 = vmatprep.subr.mxu0 0.0
    %2041 = vmatpush1.msra.mxu0 0.0
    %2042 = vmatprep.subr.mxu0 0.0
    %2043 = vmatpush1.msra.mxu0 0.0
    %2044 = vmatprep.subr.mxu0 0.0
    %2045 = vmatpush1.msra.mxu0 0.0
    %2046 = vmatprep.subr.mxu0 0.0
    %2047 = vmatpush1.msra.mxu0 0.0
    %2048 = vmatprep.subr.mxu0 0.0
    %2049 = vmatpush1.msra.mxu0 0.0
    %2050 = vmatprep.subr.mxu0 0.0
    %2051 = vmatpush1.msra.mxu0 0.0
    %2052 = vmatprep.subr.mxu0 0.0
    %2053 = vmatpush1.msra.mxu0 0.0
    %2054 = vmatprep.subr.mxu0 0.0
    %2055 = vmatpush1.msra.mxu0 0.0
    %2056 = vmatprep.subr.mxu0 0.0
    %2057 = vmatpush1.msra.mxu0 0.0
    %2058 = vmatprep.subr.mxu0 0.0
    %2059 = vmatpush1.msra.mxu0 0.0
    %2060 = vmatprep.subr.mxu0 0.0
    %2061 = vmatpush1.msra.mxu0 0.0
    %2062 = vmatprep.subr.mxu0 0.0
    %2063 = vmatpush1.msra.mxu0 0.0
    %2064 = vmatprep.subr.mxu0 0.0
    %2065 = vmatpush1.msra.mxu0 0.0
    %2066 = vmatprep.subr.mxu0 0.0
    %2067 = vmatpush1.msra.mxu0 0.0
    %2068 = vmatprep.subr.mxu0 0.0
    %2069 = vmatpush1.msra.mxu0 0.0
    %2070 = vmatprep.subr.mxu0 0.0
    %2071 = vmatpush1.msra.mxu0 0.0
    %2072 = vmatprep.subr.mxu0 0.0
    %2073 = vmatpush1.msra.mxu0 0.0
    %2074 = vmatprep.subr.mxu0 0.0
    %2075 = vmatpush1.msra.mxu0 0.0
    %2076 = vmatprep.subr.mxu0 0.0
    %2077 = vmatpush1.msra.mxu0 0.0
    %2078 = vmatprep.subr.mxu0 0.0
    %2079 = vmatpush1.msra.mxu0 0.0
    %2080 = vmatprep.subr.mxu0 0.0
    %2081 = vmatpush1.msra.mxu0 0.0
    %2082 = vmatprep.subr.mxu0 0.0
    %2083 = vmatpush1.msra.mxu0 0.0
    %2084 = vmatprep.subr.mxu0 0.0
    %2085 = vmatpush1.msra.mxu0 0.0
    %2086 = vmatprep.mubr.f32.mxu0 0.0
    %2087 = vmatmul.mubr.f32.gmra.mrb[0].mxu0 %v1999
    %v2088 = vpop.f32.mrb[0].mxu0
    %v2089 = vadd.f32 0.0, %v2088
    %v2090 = vpop.f32.mrb[0].mxu0
    %2091 = vmatprep.mubr.f32.mxu0 0.0
    %2092 = vmatmul.mubr.f32.gmra.mrb[0].mxu0 %v2002
    %v2093 = vpop.f32.mrb[0].mxu0
    %v2094 = vadd.f32 0.0, %v2093
    %v2095 = vpop.f32.mrb[0].mxu0
    %2096 = vmatprep.mubr.f32.mxu0 0.0
    %2097 = vmatmul.mubr.f32.gmra.mrb[0].mxu0 %v2005
    %v2098 = vpop.f32.mrb[0].mxu0
    %v2099 = vadd.f32 0.0, %v2098
    %v2100 = vpop.f32.mrb[0].mxu0
    %2101 = vmatprep.mubr.f32.mxu0 0.0
    %2102 = vmatmul.mubr.f32.gmra.mrb[0].mxu0 %v2008
    %v2103 = vpop.f32.mrb[0].mxu0
    %v2104 = vadd.f32 0.0, %v2103
    %v2105 = vpop.f32.mrb[0].mxu0
    %2106 = vmatprep.mubr.f32.mxu0 0.0
    %2107 = vmatmul.mubr.f32.gmra.mrb[0].mxu0 %v2011
    %v2108 = vpop.f32.mrb[0].mxu0
    %v2109 = vadd.f32 0.0, %v2108
    %v2110 = vpop.f32.mrb[0].mxu0
    %2111 = vmatprep.mubr.f32.mxu0 0.0
    %2112 = vmatmul.mubr.f32.gmra.mrb[0].mxu0 %v2014
    %v2113 = vpop.f32.mrb[0].mxu0
    %v2114 = vadd.f32 0.0, %v2113
    %v2115 = vpop.f32.mrb[0].mxu0
    %2116 = vmatprep.mubr.f32.mxu0 0.0
    %2117 = vmatmul.mubr.f32.gmra.mrb[0].mxu0 %v2017
    %v2118 = vpop.f32.mrb[0].mxu0
    %v2119 = vadd.f32 0.0, %v2118
    %v2120 = vpop.f32.mrb[0].mxu0
    %2121 = vmatprep.mubr.f32.mxu0 0.0
    %2122 = vmatmul.mubr.f32.gmra.mrb[0].mxu0 %v2020
    %v2123 = vpop.f32.mrb[0].mxu0
    %v2124 = vadd.f32 0.0, %v2123
    %v2125 = vpop.f32.mrb[0].mxu0
    %2126 = vdwg.mxu0
    %v2128 = vsel %vm733, %v1982, 0
    %v2131 = vsel %vm733, %v1983, 0
    %v2134 = vsel %vm733, %v1984, 0
    %v2137 = vsel %vm733, %v1985, 0
    %v2140 = vsel %vm733, %v1986, 0
    %v2143 = vsel %vm733, %v1987, 0
    %v2146 = vsel %vm733, %v1988, 0
    %v2149 = vsel %vm733, %v1989, 0
    %2151 = vmatprep.subr.mxu0 0.0
    %2152 = vmatpush1.msra.mxu0 %v1742
    %2153 = vmatprep.subr.mxu0 0.0
    %2154 = vmatpush1.msra.mxu0 %v1747
    %2155 = vmatprep.subr.mxu0 0.0
    %2156 = vmatpush1.msra.mxu0 0.0
    %2157 = vmatprep.subr.mxu0 0.0
    %2158 = vmatpush1.msra.mxu0 0.0
    %2159 = vmatprep.subr.mxu0 0.0
    %2160 = vmatpush1.msra.mxu0 0.0
    %2161 = vmatprep.subr.mxu0 0.0
    %2162 = vmatpush1.msra.mxu0 0.0
    %2163 = vmatprep.subr.mxu0 0.0
    %2164 = vmatpush1.msra.mxu0 0.0
    %2165 = vmatprep.subr.mxu0 0.0
    %2166 = vmatpush1.msra.mxu0 0.0
    %2167 = vmatprep.subr.mxu0 0.0
    %2168 = vmatpush1.msra.mxu0 0.0
    %2169 = vmatprep.subr.mxu0 0.0
    %2170 = vmatpush1.msra.mxu0 0.0
    %2171 = vmatprep.subr.mxu0 0.0
    %2172 = vmatpush1.msra.mxu0 0.0
    %2173 = vmatprep.subr.mxu0 0.0
    %2174 = vmatpush1.msra.mxu0 0.0
    %2175 = vmatprep.subr.mxu0 0.0
    %2176 = vmatpush1.msra.mxu0 0.0
    %2177 = vmatprep.subr.mxu0 0.0
    %2178 = vmatpush1.msra.mxu0 0.0
    %2179 = vmatprep.subr.mxu0 0.0
    %2180 = vmatpush1.msra.mxu0 0.0
    %2181 = vmatprep.subr.mxu0 0.0
    %2182 = vmatpush1.msra.mxu0 0.0
    %2183 = vmatprep.subr.mxu0 0.0
    %2184 = vmatpush1.msra.mxu0 0.0
    %2185 = vmatprep.subr.mxu0 0.0
    %2186 = vmatpush1.msra.mxu0 0.0
    %2187 = vmatprep.subr.mxu0 0.0
    %2188 = vmatpush1.msra.mxu0 0.0
    %2189 = vmatprep.subr.mxu0 0.0
    %2190 = vmatpush1.msra.mxu0 0.0
    %2191 = vmatprep.subr.mxu0 0.0
    %2192 = vmatpush1.msra.mxu0 0.0
    %2193 = vmatprep.subr.mxu0 0.0
    %2194 = vmatpush1.msra.mxu0 0.0
    %2195 = vmatprep.subr.mxu0 0.0
    %2196 = vmatpush1.msra.mxu0 0.0
    %2197 = vmatprep.subr.mxu0 0.0
    %2198 = vmatpush1.msra.mxu0 0.0
    %2199 = vmatprep.subr.mxu0 0.0
    %2200 = vmatpush1.msra.mxu0 0.0
    %2201 = vmatprep.subr.mxu0 0.0
    %2202 = vmatpush1.msra.mxu0 0.0
    %2203 = vmatprep.subr.mxu0 0.0
    %2204 = vmatpush1.msra.mxu0 0.0
    %2205 = vmatprep.subr.mxu0 0.0
    %2206 = vmatpush1.msra.mxu0 0.0
    %2207 = vmatprep.subr.mxu0 0.0
    %2208 = vmatpush1.msra.mxu0 0.0
    %2209 = vmatprep.subr.mxu0 0.0
    %2210 = vmatpush1.msra.mxu0 0.0
    %2211 = vmatprep.subr.mxu0 0.0
    %2212 = vmatpush1.msra.mxu0 0.0
    %2213 = vmatprep.subr.mxu0 0.0
    %2214 = vmatpush1.msra.mxu0 0.0
    %2215 = vmatprep.mubr.f32.mxu0 0.0
    %2216 = vmatmul.mubr.f32.gmra.mrb[0].mxu0 %v2128
    %v2217 = vpop.f32.mrb[0].mxu0
    %v2218 = vadd.f32 %v2089, %v2217
    %v2219 = vpop.f32.mrb[0].mxu0
    %2220 = vmatprep.mubr.f32.mxu0 0.0
    %2221 = vmatmul.mubr.f32.gmra.mrb[0].mxu0 %v2131
    %v2222 = vpop.f32.mrb[0].mxu0
    %v2223 = vadd.f32 %v2094, %v2222
    %v2224 = vpop.f32.mrb[0].mxu0
    %2225 = vmatprep.mubr.f32.mxu0 0.0
    %2226 = vmatmul.mubr.f32.gmra.mrb[0].mxu0 %v2134
    %v2227 = vpop.f32.mrb[0].mxu0
    %v2228 = vadd.f32 %v2099, %v2227
    %v2229 = vpop.f32.mrb[0].mxu0
    %2230 = vmatprep.mubr.f32.mxu0 0.0
    %2231 = vmatmul.mubr.f32.gmra.mrb[0].mxu0 %v2137
    %v2232 = vpop.f32.mrb[0].mxu0
    %v2233 = vadd.f32 %v2104, %v2232
    %v2234 = vpop.f32.mrb[0].mxu0
    %2235 = vmatprep.mubr.f32.mxu0 0.0
    %2236 = vmatmul.mubr.f32.gmra.mrb[0].mxu0 %v2140
    %v2237 = vpop.f32.mrb[0].mxu0
    %v2238 = vadd.f32 %v2109, %v2237
    %v2239 = vpop.f32.mrb[0].mxu0
    %2240 = vmatprep.mubr.f32.mxu0 0.0
    %2241 = vmatmul.mubr.f32.gmra.mrb[0].mxu0 %v2143
    %v2242 = vpop.f32.mrb[0].mxu0
    %v2243 = vadd.f32 %v2114, %v2242
    %v2244 = vpop.f32.mrb[0].mxu0
    %2245 = vmatprep.mubr.f32.mxu0 0.0
    %2246 = vmatmul.mubr.f32.gmra.mrb[0].mxu0 %v2146
    %v2247 = vpop.f32.mrb[0].mxu0
    %v2248 = vadd.f32 %v2119, %v2247
    %v2249 = vpop.f32.mrb[0].mxu0
    %2250 = vmatprep.mubr.f32.mxu0 0.0
    %2251 = vmatmul.mubr.f32.gmra.mrb[0].mxu0 %v2149
    %v2252 = vpop.f32.mrb[0].mxu0
    %v2253 = vadd.f32 %v2124, %v2252
    %v2254 = vpop.f32.mrb[0].mxu0
    %2255 = vdwg.mxu0
    %v2256 = vld [vmem:[#allocation2 + $0x168] sm:$0xff]
    %v2257 = vld [vmem:[#allocation2 + $0x170] sm:$0xff]
    %v2258 = vld [vmem:[#allocation2 + $0x178] sm:$0xff]
    %v2259 = vld [vmem:[#allocation2 + $0x180] sm:$0xff]
    %v2260 = vld [vmem:[#allocation2 + $0x188] sm:$0xff]
    %v2261 = vld [vmem:[#allocation2 + $0x190] sm:$0xff]
    %v2262 = vld [vmem:[#allocation2 + $0x198] sm:$0xff]
    %v2263 = vld [vmem:[#allocation2 + $0x1a0] sm:$0xff]
    %vm2264 = vcmask 523264
    %v2266 = vsel %vm2264, %v2256, 0
    %v2269 = vsel %vm2264, %v2257, 0
    %v2272 = vsel %vm2264, %v2258, 0
    %v2275 = vsel %vm2264, %v2259, 0
    %v2278 = vsel %vm2264, %v2260, 0
    %v2281 = vsel %vm2264, %v2261, 0
    %v2284 = vsel %vm2264, %v2262, 0
    %v2287 = vsel %vm2264, %v2263, 0
    %2289 = vmatprep.subr.mxu0 0.0
    %2290 = vmatpush1.msra.mxu0 %v1944
    %2291 = vmatprep.subr.mxu0 0.0
    %2292 = vmatpush1.msra.mxu0 %v1949
    %2293 = vmatprep.subr.mxu0 0.0
    %2294 = vmatpush1.msra.mxu0 %v1954
    %2295 = vmatprep.subr.mxu0 0.0
    %2296 = vmatpush1.msra.mxu0 %v1959
    %2297 = vmatprep.subr.mxu0 0.0
    %2298 = vmatpush1.msra.mxu0 %v1964
    %2299 = vmatprep.subr.mxu0 0.0
    %2300 = vmatpush1.msra.mxu0 %v1969
    %2301 = vmatprep.subr.mxu0 0.0
    %2302 = vmatpush1.msra.mxu0 %v1974
    %2303 = vmatprep.subr.mxu0 0.0
    %2304 = vmatpush1.msra.mxu0 %v1979
    %2305 = vmatprep.subr.mxu0 0.0
    %2306 = vmatpush1.msra.mxu0 0.0
    %2307 = vmatprep.subr.mxu0 0.0
    %2308 = vmatpush1.msra.mxu0 0.0
    %2309 = vmatprep.subr.mxu0 0.0
    %2310 = vmatpush1.msra.mxu0 0.0
    %2311 = vmatprep.subr.mxu0 0.0
    %2312 = vmatpush1.msra.mxu0 0.0
    %2313 = vmatprep.subr.mxu0 0.0
    %2314 = vmatpush1.msra.mxu0 0.0
    %2315 = vmatprep.subr.mxu0 0.0
    %2316 = vmatpush1.msra.mxu0 0.0
    %2317 = vmatprep.subr.mxu0 0.0
    %2318 = vmatpush1.msra.mxu0 0.0
    %2319 = vmatprep.subr.mxu0 0.0
    %2320 = vmatpush1.msra.mxu0 0.0
    %2321 = vmatprep.subr.mxu0 0.0
    %2322 = vmatpush1.msra.mxu0 0.0
    %2323 = vmatprep.subr.mxu0 0.0
    %2324 = vmatpush1.msra.mxu0 0.0
    %2325 = vmatprep.subr.mxu0 0.0
    %2326 = vmatpush1.msra.mxu0 0.0
    %2327 = vmatprep.subr.mxu0 0.0
    %2328 = vmatpush1.msra.mxu0 0.0
    %2329 = vmatprep.subr.mxu0 0.0
    %2330 = vmatpush1.msra.mxu0 0.0
    %2331 = vmatprep.subr.mxu0 0.0
    %2332 = vmatpush1.msra.mxu0 0.0
    %2333 = vmatprep.subr.mxu0 0.0
    %2334 = vmatpush1.msra.mxu0 0.0
    %2335 = vmatprep.subr.mxu0 0.0
    %2336 = vmatpush1.msra.mxu0 0.0
    %2337 = vmatprep.subr.mxu0 0.0
    %2338 = vmatpush1.msra.mxu0 0.0
    %2339 = vmatprep.subr.mxu0 0.0
    %2340 = vmatpush1.msra.mxu0 0.0
    %2341 = vmatprep.subr.mxu0 0.0
    %2342 = vmatpush1.msra.mxu0 0.0
    %2343 = vmatprep.subr.mxu0 0.0
    %2344 = vmatpush1.msra.mxu0 0.0
    %2345 = vmatprep.subr.mxu0 0.0
    %2346 = vmatpush1.msra.mxu0 0.0
    %2347 = vmatprep.subr.mxu0 0.0
    %2348 = vmatpush1.msra.mxu0 0.0
    %2349 = vmatprep.subr.mxu0 0.0
    %2350 = vmatpush1.msra.mxu0 0.0
    %2351 = vmatprep.subr.mxu0 0.0
    %2352 = vmatpush1.msra.mxu0 0.0
    %2353 = vmatprep.mubr.f32.mxu0 0.0
    %2354 = vmatmul.mubr.f32.gmra.mrb[0].mxu0 %v2266
    %v2355 = vpop.f32.mrb[0].mxu0
    %v2356 = vadd.f32 0.0, %v2355
    %v2357 = vpop.f32.mrb[0].mxu0
    %2358 = vmatprep.mubr.f32.mxu0 0.0
    %2359 = vmatmul.mubr.f32.gmra.mrb[0].mxu0 %v2269
    %v2360 = vpop.f32.mrb[0].mxu0
    %v2361 = vadd.f32 0.0, %v2360
    %v2362 = vpop.f32.mrb[0].mxu0
    %2363 = vmatprep.mubr.f32.mxu0 0.0
    %2364 = vmatmul.mubr.f32.gmra.mrb[0].mxu0 %v2272
    %v2365 = vpop.f32.mrb[0].mxu0
    %v2366 = vadd.f32 0.0, %v2365
    %v2367 = vpop.f32.mrb[0].mxu0
    %2368 = vmatprep.mubr.f32.mxu0 0.0
    %2369 = vmatmul.mubr.f32.gmra.mrb[0].mxu0 %v2275
    %v2370 = vpop.f32.mrb[0].mxu0
    %v2371 = vadd.f32 0.0, %v2370
    %v2372 = vpop.f32.mrb[0].mxu0
    %2373 = vmatprep.mubr.f32.mxu0 0.0
    %2374 = vmatmul.mubr.f32.gmra.mrb[0].mxu0 %v2278
    %v2375 = vpop.f32.mrb[0].mxu0
    %v2376 = vadd.f32 0.0, %v2375
    %v2377 = vpop.f32.mrb[0].mxu0
    %2378 = vmatprep.mubr.f32.mxu0 0.0
    %2379 = vmatmul.mubr.f32.gmra.mrb[0].mxu0 %v2281
    %v2380 = vpop.f32.mrb[0].mxu0
    %v2381 = vadd.f32 0.0, %v2380
    %v2382 = vpop.f32.mrb[0].mxu0
    %2383 = vmatprep.mubr.f32.mxu0 0.0
    %2384 = vmatmul.mubr.f32.gmra.mrb[0].mxu0 %v2284
    %v2385 = vpop.f32.mrb[0].mxu0
    %v2386 = vadd.f32 0.0, %v2385
    %v2387 = vpop.f32.mrb[0].mxu0
    %2388 = vmatprep.mubr.f32.mxu0 0.0
    %2389 = vmatmul.mubr.f32.gmra.mrb[0].mxu0 %v2287
    %v2390 = vpop.f32.mrb[0].mxu0
    %v2391 = vadd.f32 0.0, %v2390
    %v2392 = vpop.f32.mrb[0].mxu0
    %2393 = vdwg.mxu0
    %v2394 = vadd.f32 %v2218, %v2356
    %v2395 = vadd.f32 %v2223, %v2361
    %v2396 = vadd.f32 %v2228, %v2366
    %v2397 = vadd.f32 %v2233, %v2371
    %v2398 = vadd.f32 %v2238, %v2376
    %v2399 = vadd.f32 %v2243, %v2381
    %v2400 = vadd.f32 %v2248, %v2386
    %v2401 = vadd.f32 %v2253, %v2391
    %v2402 = vld [vmem:[#allocation4 + $0xb8] sm:$0xff]
    %v2403 = vld [vmem:[#allocation4 + $0xc0] sm:$0xff]
    %v2404 = vld [vmem:[#allocation4 + $0xc8] sm:$0xff]
    %v2405 = vld [vmem:[#allocation4 + $0xd0] sm:$0xff]
    %v2406 = vld [vmem:[#allocation4 + $0xd8] sm:$0xff]
    %v2407 = vld [vmem:[#allocation4 + $0xe0] sm:$0xff]
    %v2408 = vld [vmem:[#allocation4 + $0xe8] sm:$0xff]
    %v2409 = vld [vmem:[#allocation4 + $0xf0] sm:$0xff]
    %2411 = vset.pattern.permute.xlu0 0
    %2412 = vperm.xlu0 %2411, %v2402
    %v2413 = vpop.permute.xlu0 %2412
    %2416 = vset.pattern.permute.xlu0 0
    %2417 = vperm.xlu0 %2416, %v2403
    %v2418 = vpop.permute.xlu0 %2417
    %2421 = vset.pattern.permute.xlu0 0
    %2422 = vperm.xlu0 %2421, %v2404
    %v2423 = vpop.permute.xlu0 %2422
    %2426 = vset.pattern.permute.xlu0 0
    %2427 = vperm.xlu0 %2426, %v2405
    %v2428 = vpop.permute.xlu0 %2427
    %2431 = vset.pattern.permute.xlu0 0
    %2432 = vperm.xlu0 %2431, %v2406
    %v2433 = vpop.permute.xlu0 %2432
    %2436 = vset.pattern.permute.xlu0 0
    %2437 = vperm.xlu0 %2436, %v2407
    %v2438 = vpop.permute.xlu0 %2437
    %2441 = vset.pattern.permute.xlu0 0
    %2442 = vperm.xlu0 %2441, %v2408
    %v2443 = vpop.permute.xlu0 %2442
    %2446 = vset.pattern.permute.xlu0 0
    %2447 = vperm.xlu0 %2446, %v2409
    %v2448 = vpop.permute.xlu0 %2447
    %v2450 = vadd.f32 %v2394, %v2413
    %v2451 = vadd.f32 %v2395, %v2418
    %v2452 = vadd.f32 %v2396, %v2423
    %v2453 = vadd.f32 %v2397, %v2428
    %v2454 = vadd.f32 %v2398, %v2433
    %v2455 = vadd.f32 %v2399, %v2438
    %v2456 = vadd.f32 %v2400, %v2443
    %v2457 = vadd.f32 %v2401, %v2448
    %v2458 = vmax.f32 %v2450, 0.0
    %v2459 = vmax.f32 %v2451, 0.0
    %v2460 = vmax.f32 %v2452, 0.0
    %v2461 = vmax.f32 %v2453, 0.0
    %v2462 = vmax.f32 %v2454, 0.0
    %v2463 = vmax.f32 %v2455, 0.0
    %v2464 = vmax.f32 %v2456, 0.0
    %v2465 = vmax.f32 %v2457, 0.0
    %v2466 = vld [vmem:[#allocation2 + $0x1a8] sm:$0xff]
    %v2467 = vld [vmem:[#allocation2 + $0x1b0] sm:$0xff]
    %v2468 = vld [vmem:[#allocation4 + $0xf8] sm:$0xff]
    %v2469 = vld [vmem:[#allocation4 + $0x100] sm:$0xff]
    %2471 = vset.pattern.permute.xlu0 0
    %2472 = vperm.xlu0 %2471, %v2468
    %v2473 = vpop.permute.xlu0 %2472
    %2476 = vset.pattern.permute.xlu0 0
    %2477 = vperm.xlu0 %2476, %v2469
    %v2478 = vpop.permute.xlu0 %2477
    %v2481 = vsel %vm2264, %v2466, 0
    %v2484 = vsel %vm2264, %v2467, 0
    %2486 = vmatprep.subr.mxu0 0.0
    %2487 = vmatpush1.msra.mxu0 %v2458
    %2488 = vmatprep.subr.mxu0 0.0
    %2489 = vmatpush1.msra.mxu0 %v2459
    %2490 = vmatprep.subr.mxu0 0.0
    %2491 = vmatpush1.msra.mxu0 %v2460
    %2492 = vmatprep.subr.mxu0 0.0
    %2493 = vmatpush1.msra.mxu0 %v2461
    %2494 = vmatprep.subr.mxu0 0.0
    %2495 = vmatpush1.msra.mxu0 %v2462
    %2496 = vmatprep.subr.mxu0 0.0
    %2497 = vmatpush1.msra.mxu0 %v2463
    %2498 = vmatprep.subr.mxu0 0.0
    %2499 = vmatpush1.msra.mxu0 %v2464
    %2500 = vmatprep.subr.mxu0 0.0
    %2501 = vmatpush1.msra.mxu0 %v2465
    %2502 = vmatprep.subr.mxu0 0.0
    %2503 = vmatpush1.msra.mxu0 0.0
    %2504 = vmatprep.subr.mxu0 0.0
    %2505 = vmatpush1.msra.mxu0 0.0
    %2506 = vmatprep.subr.mxu0 0.0
    %2507 = vmatpush1.msra.mxu0 0.0
    %2508 = vmatprep.subr.mxu0 0.0
    %2509 = vmatpush1.msra.mxu0 0.0
    %2510 = vmatprep.subr.mxu0 0.0
    %2511 = vmatpush1.msra.mxu0 0.0
    %2512 = vmatprep.subr.mxu0 0.0
    %2513 = vmatpush1.msra.mxu0 0.0
    %2514 = vmatprep.subr.mxu0 0.0
    %2515 = vmatpush1.msra.mxu0 0.0
    %2516 = vmatprep.subr.mxu0 0.0
    %2517 = vmatpush1.msra.mxu0 0.0
    %2518 = vmatprep.subr.mxu0 0.0
    %2519 = vmatpush1.msra.mxu0 0.0
    %2520 = vmatprep.subr.mxu0 0.0
    %2521 = vmatpush1.msra.mxu0 0.0
    %2522 = vmatprep.subr.mxu0 0.0
    %2523 = vmatpush1.msra.mxu0 0.0
    %2524 = vmatprep.subr.mxu0 0.0
    %2525 = vmatpush1.msra.mxu0 0.0
    %2526 = vmatprep.subr.mxu0 0.0
    %2527 = vmatpush1.msra.mxu0 0.0
    %2528 = vmatprep.subr.mxu0 0.0
    %2529 = vmatpush1.msra.mxu0 0.0
    %2530 = vmatprep.subr.mxu0 0.0
    %2531 = vmatpush1.msra.mxu0 0.0
    %2532 = vmatprep.subr.mxu0 0.0
    %2533 = vmatpush1.msra.mxu0 0.0
    %2534 = vmatprep.subr.mxu0 0.0
    %2535 = vmatpush1.msra.mxu0 0.0
    %2536 = vmatprep.subr.mxu0 0.0
    %2537 = vmatpush1.msra.mxu0 0.0
    %2538 = vmatprep.subr.mxu0 0.0
    %2539 = vmatpush1.msra.mxu0 0.0
    %2540 = vmatprep.subr.mxu0 0.0
    %2541 = vmatpush1.msra.mxu0 0.0
    %2542 = vmatprep.subr.mxu0 0.0
    %2543 = vmatpush1.msra.mxu0 0.0
    %2544 = vmatprep.subr.mxu0 0.0
    %2545 = vmatpush1.msra.mxu0 0.0
    %2546 = vmatprep.subr.mxu0 0.0
    %2547 = vmatpush1.msra.mxu0 0.0
    %2548 = vmatprep.subr.mxu0 0.0
    %2549 = vmatpush1.msra.mxu0 0.0
    %2550 = vmatprep.mubr.f32.mxu0 0.0
    %2551 = vmatmul.mubr.f32.gmra.mrb[0].mxu0 %v2481
    %v2552 = vpop.f32.mrb[0].mxu0
    %v2553 = vadd.f32 %v2473, %v2552
    %v2554 = vpop.f32.mrb[0].mxu0
    %2555 = vmatprep.mubr.f32.mxu0 0.0
    %2556 = vmatmul.mubr.f32.gmra.mrb[0].mxu0 %v2484
    %v2557 = vpop.f32.mrb[0].mxu0
    %v2558 = vadd.f32 %v2478, %v2557
    %v2559 = vpop.f32.mrb[0].mxu0
    %2560 = vdwg.mxu0
    %v2561 = vxor.u32 %v2553, 2147483648
    %v2562 = vxor.u32 %v2558, 2147483648
    %v2563 = vmul.f32 %v2561, 1.442695
    %v2564 = vpow.pop %v2563
    %v2565 = vmul.f32 %v2562, 1.442695
    %v2566 = vpow.pop %v2565
    %v2567 = vadd.f32 %v2564, 1.0
    %v2568 = vadd.f32 %v2566, 1.0
    %v2569 = vrcp.pop %v2567
    %v2570 = vmul.f32 1.0, %v2569
    %v2571 = vrcp.pop %v2568
    %v2572 = vmul.f32 1.0, %v2571
    %v2573 = vld [vmem:[#allocation2 + $0x1b8] sm:$0xff]
    %v2574 = vld [vmem:[#allocation2 + $0x1c0] sm:$0xff]
    %v2575 = vld [vmem:[#allocation2 + $0x1c8] sm:$0xff]
    %v2576 = vld [vmem:[#allocation2 + $0x1d0] sm:$0xff]
    %v2577 = vld [vmem:[#allocation4 + $0x108] sm:$0xff]
    %v2578 = vld [vmem:[#allocation4 + $0x110] sm:$0xff]
    %v2579 = vld [vmem:[#allocation4 + $0x118] sm:$0xff]
    %v2580 = vld [vmem:[#allocation4 + $0x120] sm:$0xff]
    %2582 = vset.pattern.permute.xlu0 0
    %2583 = vperm.xlu0 %2582, %v2577
    %v2584 = vpop.permute.xlu0 %2583
    %2587 = vset.pattern.permute.xlu0 0
    %2588 = vperm.xlu0 %2587, %v2578
    %v2589 = vpop.permute.xlu0 %2588
    %2592 = vset.pattern.permute.xlu0 0
    %2593 = vperm.xlu0 %2592, %v2579
    %v2594 = vpop.permute.xlu0 %2593
    %2597 = vset.pattern.permute.xlu0 0
    %2598 = vperm.xlu0 %2597, %v2580
    %v2599 = vpop.permute.xlu0 %2598
    %v2602 = vsel %vm2264, %v2573, 0
    %v2605 = vsel %vm2264, %v2574, 0
    %v2608 = vsel %vm2264, %v2575, 0
    %v2611 = vsel %vm2264, %v2576, 0
    %2613 = vmatprep.subr.mxu0 0.0
    %2614 = vmatpush1.msra.mxu0 %v2458
    %2615 = vmatprep.subr.mxu0 0.0
    %2616 = vmatpush1.msra.mxu0 %v2459
    %2617 = vmatprep.subr.mxu0 0.0
    %2618 = vmatpush1.msra.mxu0 %v2460
    %2619 = vmatprep.subr.mxu0 0.0
    %2620 = vmatpush1.msra.mxu0 %v2461
    %2621 = vmatprep.subr.mxu0 0.0
    %2622 = vmatpush1.msra.mxu0 %v2462
    %2623 = vmatprep.subr.mxu0 0.0
    %2624 = vmatpush1.msra.mxu0 %v2463
    %2625 = vmatprep.subr.mxu0 0.0
    %2626 = vmatpush1.msra.mxu0 %v2464
    %2627 = vmatprep.subr.mxu0 0.0
    %2628 = vmatpush1.msra.mxu0 %v2465
    %2629 = vmatprep.subr.mxu0 0.0
    %2630 = vmatpush1.msra.mxu0 0.0
    %2631 = vmatprep.subr.mxu0 0.0
    %2632 = vmatpush1.msra.mxu0 0.0
    %2633 = vmatprep.subr.mxu0 0.0
    %2634 = vmatpush1.msra.mxu0 0.0
    %2635 = vmatprep.subr.mxu0 0.0
    %2636 = vmatpush1.msra.mxu0 0.0
    %2637 = vmatprep.subr.mxu0 0.0
    %2638 = vmatpush1.msra.mxu0 0.0
    %2639 = vmatprep.subr.mxu0 0.0
    %2640 = vmatpush1.msra.mxu0 0.0
    %2641 = vmatprep.subr.mxu0 0.0
    %2642 = vmatpush1.msra.mxu0 0.0
    %2643 = vmatprep.subr.mxu0 0.0
    %2644 = vmatpush1.msra.mxu0 0.0
    %2645 = vmatprep.subr.mxu0 0.0
    %2646 = vmatpush1.msra.mxu0 0.0
    %2647 = vmatprep.subr.mxu0 0.0
    %2648 = vmatpush1.msra.mxu0 0.0
    %2649 = vmatprep.subr.mxu0 0.0
    %2650 = vmatpush1.msra.mxu0 0.0
    %2651 = vmatprep.subr.mxu0 0.0
    %2652 = vmatpush1.msra.mxu0 0.0
    %2653 = vmatprep.subr.mxu0 0.0
    %2654 = vmatpush1.msra.mxu0 0.0
    %2655 = vmatprep.subr.mxu0 0.0
    %2656 = vmatpush1.msra.mxu0 0.0
    %2657 = vmatprep.subr.mxu0 0.0
    %2658 = vmatpush1.msra.mxu0 0.0
    %2659 = vmatprep.subr.mxu0 0.0
    %2660 = vmatpush1.msra.mxu0 0.0
    %2661 = vmatprep.subr.mxu0 0.0
    %2662 = vmatpush1.msra.mxu0 0.0
    %2663 = vmatprep.subr.mxu0 0.0
    %2664 = vmatpush1.msra.mxu0 0.0
    %2665 = vmatprep.subr.mxu0 0.0
    %2666 = vmatpush1.msra.mxu0 0.0
    %2667 = vmatprep.subr.mxu0 0.0
    %2668 = vmatpush1.msra.mxu0 0.0
    %2669 = vmatprep.subr.mxu0 0.0
    %2670 = vmatpush1.msra.mxu0 0.0
    %2671 = vmatprep.subr.mxu0 0.0
    %2672 = vmatpush1.msra.mxu0 0.0
    %2673 = vmatprep.subr.mxu0 0.0
    %2674 = vmatpush1.msra.mxu0 0.0
    %2675 = vmatprep.subr.mxu0 0.0
    %2676 = vmatpush1.msra.mxu0 0.0
    %2677 = vmatprep.mubr.f32.mxu0 0.0
    %2678 = vmatmul.mubr.f32.gmra.mrb[0].mxu0 %v2602
    %v2679 = vpop.f32.mrb[0].mxu0
    %v2680 = vadd.f32 %v2584, %v2679
    %v2681 = vpop.f32.mrb[0].mxu0
    %2682 = vmatprep.mubr.f32.mxu0 0.0
    %2683 = vmatmul.mubr.f32.gmra.mrb[0].mxu0 %v2605
    %v2684 = vpop.f32.mrb[0].mxu0
    %v2685 = vadd.f32 %v2589, %v2684
    %v2686 = vpop.f32.mrb[0].mxu0
    %2687 = vmatprep.mubr.f32.mxu0 0.0
    %2688 = vmatmul.mubr.f32.gmra.mrb[0].mxu0 %v2608
    %v2689 = vpop.f32.mrb[0].mxu0
    %v2690 = vadd.f32 %v2594, %v2689
    %v2691 = vpop.f32.mrb[0].mxu0
    %2692 = vmatprep.mubr.f32.mxu0 0.0
    %2693 = vmatmul.mubr.f32.gmra.mrb[0].mxu0 %v2611
    %v2694 = vpop.f32.mrb[0].mxu0
    %v2695 = vadd.f32 %v2599, %v2694
    %v2696 = vpop.f32.mrb[0].mxu0
    %2697 = vdwg.mxu0
    %v2698 = vxor.u32 %v2680, 2147483648
    %v2699 = vxor.u32 %v2685, 2147483648
    %v2700 = vxor.u32 %v2690, 2147483648
    %v2701 = vxor.u32 %v2695, 2147483648
    %v2702 = vmul.f32 %v2698, 1.442695
    %v2703 = vpow.pop %v2702
    %v2704 = vmul.f32 %v2699, 1.442695
    %v2705 = vpow.pop %v2704
    %v2706 = vmul.f32 %v2700, 1.442695
    %v2707 = vpow.pop %v2706
    %v2708 = vmul.f32 %v2701, 1.442695
    %v2709 = vpow.pop %v2708
    %v2710 = vadd.f32 %v2703, 1.0
    %v2711 = vadd.f32 %v2705, 1.0
    %v2712 = vadd.f32 %v2707, 1.0
    %v2713 = vadd.f32 %v2709, 1.0
    %v2714 = vrcp.pop %v2710
    %v2715 = vmul.f32 1.0, %v2714
    %v2716 = vrcp.pop %v2711
    %v2717 = vmul.f32 1.0, %v2716
    %v2718 = vrcp.pop %v2712
    %v2719 = vmul.f32 1.0, %v2718
    %v2720 = vrcp.pop %v2713
    %v2721 = vmul.f32 1.0, %v2720
    %vm2722 = vcmask 15360
    %v2724 = vsel %vm2722, %v2570, 0
    %v2727 = vsel %vm2722, %v2572, 0
    %vm2729 = vcmask 1041408
    %v2731 = vsel %vm2729, %v227, 0
    %2733 = vmatprep.subr.mxu0 0.0
    %2734 = vmatpush1.msra.mxu0 %v2731
    %2735 = vmatprep.subr.mxu0 0.0
    %2736 = vmatpush1.msra.mxu0 0.0
    %2737 = vmatprep.subr.mxu0 0.0
    %2738 = vmatpush1.msra.mxu0 0.0
    %2739 = vmatprep.subr.mxu0 0.0
    %2740 = vmatpush1.msra.mxu0 0.0
    %2741 = vmatprep.subr.mxu0 0.0
    %2742 = vmatpush1.msra.mxu0 0.0
    %2743 = vmatprep.subr.mxu0 0.0
    %2744 = vmatpush1.msra.mxu0 0.0
    %2745 = vmatprep.subr.mxu0 0.0
    %2746 = vmatpush1.msra.mxu0 0.0
    %2747 = vmatprep.subr.mxu0 0.0
    %2748 = vmatpush1.msra.mxu0 0.0
    %2749 = vmatprep.subr.mxu0 0.0
    %2750 = vmatpush1.msra.mxu0 0.0
    %2751 = vmatprep.subr.mxu0 0.0
    %2752 = vmatpush1.msra.mxu0 0.0
    %2753 = vmatprep.subr.mxu0 0.0
    %2754 = vmatpush1.msra.mxu0 0.0
    %2755 = vmatprep.subr.mxu0 0.0
    %2756 = vmatpush1.msra.mxu0 0.0
    %2757 = vmatprep.subr.mxu0 0.0
    %2758 = vmatpush1.msra.mxu0 0.0
    %2759 = vmatprep.subr.mxu0 0.0
    %2760 = vmatpush1.msra.mxu0 0.0
    %2761 = vmatprep.subr.mxu0 0.0
    %2762 = vmatpush1.msra.mxu0 0.0
    %2763 = vmatprep.subr.mxu0 0.0
    %2764 = vmatpush1.msra.mxu0 0.0
    %2765 = vmatprep.subr.mxu0 0.0
    %2766 = vmatpush1.msra.mxu0 0.0
    %2767 = vmatprep.subr.mxu0 0.0
    %2768 = vmatpush1.msra.mxu0 0.0
    %2769 = vmatprep.subr.mxu0 0.0
    %2770 = vmatpush1.msra.mxu0 0.0
    %2771 = vmatprep.subr.mxu0 0.0
    %2772 = vmatpush1.msra.mxu0 0.0
    %2773 = vmatprep.subr.mxu0 0.0
    %2774 = vmatpush1.msra.mxu0 0.0
    %2775 = vmatprep.subr.mxu0 0.0
    %2776 = vmatpush1.msra.mxu0 0.0
    %2777 = vmatprep.subr.mxu0 0.0
    %2778 = vmatpush1.msra.mxu0 0.0
    %2779 = vmatprep.subr.mxu0 0.0
    %2780 = vmatpush1.msra.mxu0 0.0
    %2781 = vmatprep.subr.mxu0 0.0
    %2782 = vmatpush1.msra.mxu0 0.0
    %2783 = vmatprep.subr.mxu0 0.0
    %2784 = vmatpush1.msra.mxu0 0.0
    %2785 = vmatprep.subr.mxu0 0.0
    %2786 = vmatpush1.msra.mxu0 0.0
    %2787 = vmatprep.subr.mxu0 0.0
    %2788 = vmatpush1.msra.mxu0 0.0
    %2789 = vmatprep.subr.mxu0 0.0
    %2790 = vmatpush1.msra.mxu0 0.0
    %2791 = vmatprep.subr.mxu0 0.0
    %2792 = vmatpush1.msra.mxu0 0.0
    %2793 = vmatprep.subr.mxu0 0.0
    %2794 = vmatpush1.msra.mxu0 0.0
    %2795 = vmatprep.subr.mxu0 0.0
    %2796 = vmatpush1.msra.mxu0 0.0
    %2797 = vmatprep.mubr.f32.mxu0 0.0
    %2798 = vmatmul.mubr.f32.gmra.mrb[0].mxu0 %v2724
    %v2799 = vpop.f32.mrb[0].mxu0
    %v2800 = vadd.f32 0.0, %v2799
    %v2801 = vpop.f32.mrb[0].mxu0
    %2802 = vmatprep.mubr.f32.mxu0 0.0
    %2803 = vmatmul.mubr.f32.gmra.mrb[0].mxu0 %v2727
    %v2804 = vpop.f32.mrb[0].mxu0
    %v2805 = vadd.f32 0.0, %v2804
    %v2806 = vpop.f32.mrb[0].mxu0
    %2807 = vdwg.mxu0
    %v2808 = vmul.f32 %v628, %v2800
    %v2809 = vmul.f32 %v629, %v2805
    %v2811 = vsel %vm2722, %v2715, 0
    %v2814 = vsel %vm2722, %v2717, 0
    %v2817 = vsel %vm2722, %v2719, 0
    %v2820 = vsel %vm2722, %v2721, 0
    %v2822 = vsel %vm2729, %v229, 0
    %2824 = vmatprep.subr.mxu0 0.0
    %2825 = vmatpush1.msra.mxu0 %v2822
    %2826 = vmatprep.subr.mxu0 0.0
    %2827 = vmatpush1.msra.mxu0 0.0
    %2828 = vmatprep.subr.mxu0 0.0
    %2829 = vmatpush1.msra.mxu0 0.0
    %2830 = vmatprep.subr.mxu0 0.0
    %2831 = vmatpush1.msra.mxu0 0.0
    %2832 = vmatprep.subr.mxu0 0.0
    %2833 = vmatpush1.msra.mxu0 0.0
    %2834 = vmatprep.subr.mxu0 0.0
    %2835 = vmatpush1.msra.mxu0 0.0
    %2836 = vmatprep.subr.mxu0 0.0
    %2837 = vmatpush1.msra.mxu0 0.0
    %2838 = vmatprep.subr.mxu0 0.0
    %2839 = vmatpush1.msra.mxu0 0.0
    %2840 = vmatprep.subr.mxu0 0.0
    %2841 = vmatpush1.msra.mxu0 0.0
    %2842 = vmatprep.subr.mxu0 0.0
    %2843 = vmatpush1.msra.mxu0 0.0
    %2844 = vmatprep.subr.mxu0 0.0
    %2845 = vmatpush1.msra.mxu0 0.0
    %2846 = vmatprep.subr.mxu0 0.0
    %2847 = vmatpush1.msra.mxu0 0.0
    %2848 = vmatprep.subr.mxu0 0.0
    %2849 = vmatpush1.msra.mxu0 0.0
    %2850 = vmatprep.subr.mxu0 0.0
    %2851 = vmatpush1.msra.mxu0 0.0
    %2852 = vmatprep.subr.mxu0 0.0
    %2853 = vmatpush1.msra.mxu0 0.0
    %2854 = vmatprep.subr.mxu0 0.0
    %2855 = vmatpush1.msra.mxu0 0.0
    %2856 = vmatprep.subr.mxu0 0.0
    %2857 = vmatpush1.msra.mxu0 0.0
    %2858 = vmatprep.subr.mxu0 0.0
    %2859 = vmatpush1.msra.mxu0 0.0
    %2860 = vmatprep.subr.mxu0 0.0
    %2861 = vmatpush1.msra.mxu0 0.0
    %2862 = vmatprep.subr.mxu0 0.0
    %2863 = vmatpush1.msra.mxu0 0.0
    %2864 = vmatprep.subr.mxu0 0.0
    %2865 = vmatpush1.msra.mxu0 0.0
    %2866 = vmatprep.subr.mxu0 0.0
    %2867 = vmatpush1.msra.mxu0 0.0
    %2868 = vmatprep.subr.mxu0 0.0
    %2869 = vmatpush1.msra.mxu0 0.0
    %2870 = vmatprep.subr.mxu0 0.0
    %2871 = vmatpush1.msra.mxu0 0.0
    %2872 = vmatprep.subr.mxu0 0.0
    %2873 = vmatpush1.msra.mxu0 0.0
    %2874 = vmatprep.subr.mxu0 0.0
    %2875 = vmatpush1.msra.mxu0 0.0
    %2876 = vmatprep.subr.mxu0 0.0
    %2877 = vmatpush1.msra.mxu0 0.0
    %2878 = vmatprep.subr.mxu0 0.0
    %2879 = vmatpush1.msra.mxu0 0.0
    %2880 = vmatprep.subr.mxu0 0.0
    %2881 = vmatpush1.msra.mxu0 0.0
    %2882 = vmatprep.subr.mxu0 0.0
    %2883 = vmatpush1.msra.mxu0 0.0
    %2884 = vmatprep.subr.mxu0 0.0
    %2885 = vmatpush1.msra.mxu0 0.0
    %2886 = vmatprep.subr.mxu0 0.0
    %2887 = vmatpush1.msra.mxu0 0.0
    %2888 = vmatprep.mubr.f32.mxu0 0.0
    %2889 = vmatmul.mubr.f32.gmra.mrb[0].mxu0 %v2811
    %v2890 = vpop.f32.mrb[0].mxu0
    %v2891 = vadd.f32 0.0, %v2890
    %v2892 = vpop.f32.mrb[0].mxu0
    %2893 = vmatprep.mubr.f32.mxu0 0.0
    %2894 = vmatmul.mubr.f32.gmra.mrb[0].mxu0 %v2814
    %v2895 = vpop.f32.mrb[0].mxu0
    %v2896 = vadd.f32 0.0, %v2895
    %v2897 = vpop.f32.mrb[0].mxu0
    %2898 = vmatprep.mubr.f32.mxu0 0.0
    %2899 = vmatmul.mubr.f32.gmra.mrb[0].mxu0 %v2817
    %v2900 = vpop.f32.mrb[0].mxu0
    %v2901 = vadd.f32 0.0, %v2900
    %v2902 = vpop.f32.mrb[0].mxu0
    %2903 = vmatprep.mubr.f32.mxu0 0.0
    %2904 = vmatmul.mubr.f32.gmra.mrb[0].mxu0 %v2820
    %v2905 = vpop.f32.mrb[0].mxu0
    %v2906 = vadd.f32 0.0, %v2905
    %v2907 = vpop.f32.mrb[0].mxu0
    %2908 = vdwg.mxu0
    %v2909 = vmul.f32 %v831, %v2891
    %v2910 = vmul.f32 %v832, %v2896
    %v2911 = vmul.f32 %v833, %v2901
    %v2912 = vmul.f32 %v834, %v2906
    %v2913 = vld [vmem:[#allocation2 + $0x1d8] sm:$0xff]
    %v2914 = vld [vmem:[#allocation2 + $0x1e0] sm:$0xff]
    %v2915 = vld [vmem:[#allocation2 + $0x1e8] sm:$0xff]
    %v2916 = vld [vmem:[#allocation2 + $0x1f0] sm:$0xff]
    %v2918 = vsel %vm2264, %v2913, 0
    %v2921 = vsel %vm2264, %v2914, 0
    %v2924 = vsel %vm2264, %v2915, 0
    %v2927 = vsel %vm2264, %v2916, 0
    %2929 = vmatprep.subr.mxu0 0.0
    %2930 = vmatpush1.msra.mxu0 %v1118
    %2931 = vmatprep.subr.mxu0 0.0
    %2932 = vmatpush1.msra.mxu0 %v1119
    %2933 = vmatprep.subr.mxu0 0.0
    %2934 = vmatpush1.msra.mxu0 %v1120
    %2935 = vmatprep.subr.mxu0 0.0
    %2936 = vmatpush1.msra.mxu0 %v1121
    %2937 = vmatprep.subr.mxu0 0.0
    %2938 = vmatpush1.msra.mxu0 %v1122
    %2939 = vmatprep.subr.mxu0 0.0
    %2940 = vmatpush1.msra.mxu0 %v1123
    %2941 = vmatprep.subr.mxu0 0.0
    %2942 = vmatpush1.msra.mxu0 %v1124
    %2943 = vmatprep.subr.mxu0 0.0
    %2944 = vmatpush1.msra.mxu0 %v1125
    %2945 = vmatprep.subr.mxu0 0.0
    %2946 = vmatpush1.msra.mxu0 0.0
    %2947 = vmatprep.subr.mxu0 0.0
    %2948 = vmatpush1.msra.mxu0 0.0
    %2949 = vmatprep.subr.mxu0 0.0
    %2950 = vmatpush1.msra.mxu0 0.0
    %2951 = vmatprep.subr.mxu0 0.0
    %2952 = vmatpush1.msra.mxu0 0.0
    %2953 = vmatprep.subr.mxu0 0.0
    %2954 = vmatpush1.msra.mxu0 0.0
    %2955 = vmatprep.subr.mxu0 0.0
    %2956 = vmatpush1.msra.mxu0 0.0
    %2957 = vmatprep.subr.mxu0 0.0
    %2958 = vmatpush1.msra.mxu0 0.0
    %2959 = vmatprep.subr.mxu0 0.0
    %2960 = vmatpush1.msra.mxu0 0.0
    %2961 = vmatprep.subr.mxu0 0.0
    %2962 = vmatpush1.msra.mxu0 0.0
    %2963 = vmatprep.subr.mxu0 0.0
    %2964 = vmatpush1.msra.mxu0 0.0
    %2965 = vmatprep.subr.mxu0 0.0
    %2966 = vmatpush1.msra.mxu0 0.0
    %2967 = vmatprep.subr.mxu0 0.0
    %2968 = vmatpush1.msra.mxu0 0.0
    %2969 = vmatprep.subr.mxu0 0.0
    %2970 = vmatpush1.msra.mxu0 0.0
    %2971 = vmatprep.subr.mxu0 0.0
    %2972 = vmatpush1.msra.mxu0 0.0
    %2973 = vmatprep.subr.mxu0 0.0
    %2974 = vmatpush1.msra.mxu0 0.0
    %2975 = vmatprep.subr.mxu0 0.0
    %2976 = vmatpush1.msra.mxu0 0.0
    %2977 = vmatprep.subr.mxu0 0.0
    %2978 = vmatpush1.msra.mxu0 0.0
    %2979 = vmatprep.subr.mxu0 0.0
    %2980 = vmatpush1.msra.mxu0 0.0
    %2981 = vmatprep.subr.mxu0 0.0
    %2982 = vmatpush1.msra.mxu0 0.0
    %2983 = vmatprep.subr.mxu0 0.0
    %2984 = vmatpush1.msra.mxu0 0.0
    %2985 = vmatprep.subr.mxu0 0.0
    %2986 = vmatpush1.msra.mxu0 0.0
    %2987 = vmatprep.subr.mxu0 0.0
    %2988 = vmatpush1.msra.mxu0 0.0
    %2989 = vmatprep.subr.mxu0 0.0
    %2990 = vmatpush1.msra.mxu0 0.0
    %2991 = vmatprep.subr.mxu0 0.0
    %2992 = vmatpush1.msra.mxu0 0.0
    %2993 = vmatprep.mubr.f32.mxu0 0.0
    %2994 = vmatmul.mubr.f32.gmra.mrb[0].mxu0 %v2918
    %v2995 = vpop.f32.mrb[0].mxu0
    %v2996 = vadd.f32 0.0, %v2995
    %v2997 = vpop.f32.mrb[0].mxu0
    %2998 = vmatprep.mubr.f32.mxu0 0.0
    %2999 = vmatmul.mubr.f32.gmra.mrb[0].mxu0 %v2921
    %v3000 = vpop.f32.mrb[0].mxu0
    %v3001 = vadd.f32 0.0, %v3000
    %v3002 = vpop.f32.mrb[0].mxu0
    %3003 = vmatprep.mubr.f32.mxu0 0.0
    %3004 = vmatmul.mubr.f32.gmra.mrb[0].mxu0 %v2924
    %v3005 = vpop.f32.mrb[0].mxu0
    %v3006 = vadd.f32 0.0, %v3005
    %v3007 = vpop.f32.mrb[0].mxu0
    %3008 = vmatprep.mubr.f32.mxu0 0.0
    %3009 = vmatmul.mubr.f32.gmra.mrb[0].mxu0 %v2927
    %v3010 = vpop.f32.mrb[0].mxu0
    %v3011 = vadd.f32 0.0, %v3010
    %v3012 = vpop.f32.mrb[0].mxu0
    %3013 = vdwg.mxu0
    %v3014 = vld [vmem:[#allocation2 + $0x1f8] sm:$0xff]
    %v3015 = vld [vmem:[#allocation2 + $0x200] sm:$0xff]
    %v3016 = vld [vmem:[#allocation2 + $0x208] sm:$0xff]
    %v3017 = vld [vmem:[#allocation2 + $0x210] sm:$0xff]
    %v3019 = vsel %vm843, %v3014, 0
    %v3022 = vsel %vm843, %v3015, 0
    %v3025 = vsel %vm843, %v3016, 0
    %v3028 = vsel %vm843, %v3017, 0
    %3030 = vmatprep.subr.mxu0 0.0
    %3031 = vmatpush1.msra.mxu0 %v2909
    %3032 = vmatprep.subr.mxu0 0.0
    %3033 = vmatpush1.msra.mxu0 %v2910
    %3034 = vmatprep.subr.mxu0 0.0
    %3035 = vmatpush1.msra.mxu0 %v2911
    %3036 = vmatprep.subr.mxu0 0.0
    %3037 = vmatpush1.msra.mxu0 %v2912
    %3038 = vmatprep.subr.mxu0 0.0
    %3039 = vmatpush1.msra.mxu0 0.0
    %3040 = vmatprep.subr.mxu0 0.0
    %3041 = vmatpush1.msra.mxu0 0.0
    %3042 = vmatprep.subr.mxu0 0.0
    %3043 = vmatpush1.msra.mxu0 0.0
    %3044 = vmatprep.subr.mxu0 0.0
    %3045 = vmatpush1.msra.mxu0 0.0
    %3046 = vmatprep.subr.mxu0 0.0
    %3047 = vmatpush1.msra.mxu0 0.0
    %3048 = vmatprep.subr.mxu0 0.0
    %3049 = vmatpush1.msra.mxu0 0.0
    %3050 = vmatprep.subr.mxu0 0.0
    %3051 = vmatpush1.msra.mxu0 0.0
    %3052 = vmatprep.subr.mxu0 0.0
    %3053 = vmatpush1.msra.mxu0 0.0
    %3054 = vmatprep.subr.mxu0 0.0
    %3055 = vmatpush1.msra.mxu0 0.0
    %3056 = vmatprep.subr.mxu0 0.0
    %3057 = vmatpush1.msra.mxu0 0.0
    %3058 = vmatprep.subr.mxu0 0.0
    %3059 = vmatpush1.msra.mxu0 0.0
    %3060 = vmatprep.subr.mxu0 0.0
    %3061 = vmatpush1.msra.mxu0 0.0
    %3062 = vmatprep.subr.mxu0 0.0
    %3063 = vmatpush1.msra.mxu0 0.0
    %3064 = vmatprep.subr.mxu0 0.0
    %3065 = vmatpush1.msra.mxu0 0.0
    %3066 = vmatprep.subr.mxu0 0.0
    %3067 = vmatpush1.msra.mxu0 0.0
    %3068 = vmatprep.subr.mxu0 0.0
    %3069 = vmatpush1.msra.mxu0 0.0
    %3070 = vmatprep.subr.mxu0 0.0
    %3071 = vmatpush1.msra.mxu0 0.0
    %3072 = vmatprep.subr.mxu0 0.0
    %3073 = vmatpush1.msra.mxu0 0.0
    %3074 = vmatprep.subr.mxu0 0.0
    %3075 = vmatpush1.msra.mxu0 0.0
    %3076 = vmatprep.subr.mxu0 0.0
    %3077 = vmatpush1.msra.mxu0 0.0
    %3078 = vmatprep.subr.mxu0 0.0
    %3079 = vmatpush1.msra.mxu0 0.0
    %3080 = vmatprep.subr.mxu0 0.0
    %3081 = vmatpush1.msra.mxu0 0.0
    %3082 = vmatprep.subr.mxu0 0.0
    %3083 = vmatpush1.msra.mxu0 0.0
    %3084 = vmatprep.subr.mxu0 0.0
    %3085 = vmatpush1.msra.mxu0 0.0
    %3086 = vmatprep.subr.mxu0 0.0
    %3087 = vmatpush1.msra.mxu0 0.0
    %3088 = vmatprep.subr.mxu0 0.0
    %3089 = vmatpush1.msra.mxu0 0.0
    %3090 = vmatprep.subr.mxu0 0.0
    %3091 = vmatpush1.msra.mxu0 0.0
    %3092 = vmatprep.subr.mxu0 0.0
    %3093 = vmatpush1.msra.mxu0 0.0
    %3094 = vmatprep.mubr.f32.mxu0 0.0
    %3095 = vmatmul.mubr.f32.gmra.mrb[0].mxu0 %v3019
    %v3096 = vpop.f32.mrb[0].mxu0
    %v3097 = vadd.f32 0.0, %v3096
    %v3098 = vpop.f32.mrb[0].mxu0
    %3099 = vmatprep.mubr.f32.mxu0 0.0
    %3100 = vmatmul.mubr.f32.gmra.mrb[0].mxu0 %v3022
    %v3101 = vpop.f32.mrb[0].mxu0
    %v3102 = vadd.f32 0.0, %v3101
    %v3103 = vpop.f32.mrb[0].mxu0
    %3104 = vmatprep.mubr.f32.mxu0 0.0
    %3105 = vmatmul.mubr.f32.gmra.mrb[0].mxu0 %v3025
    %v3106 = vpop.f32.mrb[0].mxu0
    %v3107 = vadd.f32 0.0, %v3106
    %v3108 = vpop.f32.mrb[0].mxu0
    %3109 = vmatprep.mubr.f32.mxu0 0.0
    %3110 = vmatmul.mubr.f32.gmra.mrb[0].mxu0 %v3028
    %v3111 = vpop.f32.mrb[0].mxu0
    %v3112 = vadd.f32 0.0, %v3111
    %v3113 = vpop.f32.mrb[0].mxu0
    %3114 = vdwg.mxu0
    %v3116 = vsel %vm243, %v2996, 0
    %v3119 = vsel %vm243, %v3001, 0
    %v3122 = vsel %vm243, %v3006, 0
    %v3125 = vsel %vm243, %v3011, 0
    %v3128 = vsel %vm243, %v222, 0
    %v3131 = vsel %vm243, %v223, 0
    %v3134 = vsel %vm243, %v224, 0
    %v3137 = vsel %vm243, %v225, 0
    %3139 = vmatprep.subr.mxu0 0.0
    %3140 = vmatpush1.xpose.msra.mxu0 %v3128
    %3141 = vmatprep.subr.mxu0 0.0
    %3142 = vmatpush1.xpose.msra.mxu0 %v3131
    %3143 = vmatprep.subr.mxu0 0.0
    %3144 = vmatpush1.xpose.msra.mxu0 %v3134
    %3145 = vmatprep.subr.mxu0 0.0
    %3146 = vmatpush1.xpose.msra.mxu0 %v3137
    %3147 = vmatprep.subr.mxu0 0.0
    %3148 = vmatpush1.xpose.msra.mxu0 0.0
    %3149 = vmatprep.subr.mxu0 0.0
    %3150 = vmatpush1.xpose.msra.mxu0 0.0
    %3151 = vmatprep.subr.mxu0 0.0
    %3152 = vmatpush1.xpose.msra.mxu0 0.0
    %3153 = vmatprep.subr.mxu0 0.0
    %3154 = vmatpush1.xpose.msra.mxu0 0.0
    %3155 = vmatprep.subr.mxu0 0.0
    %3156 = vmatpush1.xpose.msra.mxu0 0.0
    %3157 = vmatprep.subr.mxu0 0.0
    %3158 = vmatpush1.xpose.msra.mxu0 0.0
    %3159 = vmatprep.subr.mxu0 0.0
    %3160 = vmatpush1.xpose.msra.mxu0 0.0
    %3161 = vmatprep.subr.mxu0 0.0
    %3162 = vmatpush1.xpose.msra.mxu0 0.0
    %3163 = vmatprep.subr.mxu0 0.0
    %3164 = vmatpush1.xpose.msra.mxu0 0.0
    %3165 = vmatprep.subr.mxu0 0.0
    %3166 = vmatpush1.xpose.msra.mxu0 0.0
    %3167 = vmatprep.subr.mxu0 0.0
    %3168 = vmatpush1.xpose.msra.mxu0 0.0
    %3169 = vmatprep.subr.mxu0 0.0
    %3170 = vmatpush1.xpose.msra.mxu0 0.0
    %3171 = vmatprep.subr.mxu0 0.0
    %3172 = vmatpush1.xpose.msra.mxu0 0.0
    %3173 = vmatprep.subr.mxu0 0.0
    %3174 = vmatpush1.xpose.msra.mxu0 0.0
    %3175 = vmatprep.subr.mxu0 0.0
    %3176 = vmatpush1.xpose.msra.mxu0 0.0
    %3177 = vmatprep.subr.mxu0 0.0
    %3178 = vmatpush1.xpose.msra.mxu0 0.0
    %3179 = vmatprep.subr.mxu0 0.0
    %3180 = vmatpush1.xpose.msra.mxu0 0.0
    %3181 = vmatprep.subr.mxu0 0.0
    %3182 = vmatpush1.xpose.msra.mxu0 0.0
    %3183 = vmatprep.subr.mxu0 0.0
    %3184 = vmatpush1.xpose.msra.mxu0 0.0
    %3185 = vmatprep.subr.mxu0 0.0
    %3186 = vmatpush1.xpose.msra.mxu0 0.0
    %3187 = vmatprep.subr.mxu0 0.0
    %3188 = vmatpush1.xpose.msra.mxu0 0.0
    %3189 = vmatprep.subr.mxu0 0.0
    %3190 = vmatpush1.xpose.msra.mxu0 0.0
    %3191 = vmatprep.subr.mxu0 0.0
    %3192 = vmatpush1.xpose.msra.mxu0 0.0
    %3193 = vmatprep.subr.mxu0 0.0
    %3194 = vmatpush1.xpose.msra.mxu0 0.0
    %3195 = vmatprep.subr.mxu0 0.0
    %3196 = vmatpush1.xpose.msra.mxu0 0.0
    %3197 = vmatprep.subr.mxu0 0.0
    %3198 = vmatpush1.xpose.msra.mxu0 0.0
    %3199 = vmatprep.subr.mxu0 0.0
    %3200 = vmatpush1.xpose.msra.mxu0 0.0
    %3201 = vmatprep.subr.mxu0 0.0
    %3202 = vmatpush1.xpose.msra.mxu0 0.0
    %3203 = vmatprep.mubr.f32.mxu0 0.0
    %3204 = vmatmul.mubr.f32.gmra.mrb[0].mxu0 %v3116
    %v3205 = vpop.f32.mrb[0].mxu0
    %v3206 = vadd.f32 %v3097, %v3205
    %v3207 = vpop.f32.mrb[0].mxu0
    %3208 = vmatprep.mubr.f32.mxu0 0.0
    %3209 = vmatmul.mubr.f32.gmra.mrb[0].mxu0 %v3119
    %v3210 = vpop.f32.mrb[0].mxu0
    %v3211 = vadd.f32 %v3102, %v3210
    %v3212 = vpop.f32.mrb[0].mxu0
    %3213 = vmatprep.mubr.f32.mxu0 0.0
    %3214 = vmatmul.mubr.f32.gmra.mrb[0].mxu0 %v3122
    %v3215 = vpop.f32.mrb[0].mxu0
    %v3216 = vadd.f32 %v3107, %v3215
    %v3217 = vpop.f32.mrb[0].mxu0
    %3218 = vmatprep.mubr.f32.mxu0 0.0
    %3219 = vmatmul.mubr.f32.gmra.mrb[0].mxu0 %v3125
    %v3220 = vpop.f32.mrb[0].mxu0
    %v3221 = vadd.f32 %v3112, %v3220
    %v3222 = vpop.f32.mrb[0].mxu0
    %3223 = vdwg.mxu0
    %v3224 = vld [vmem:[#allocation4 + $0x128] sm:$0xff]
    %v3225 = vld [vmem:[#allocation4 + $0x130] sm:$0xff]
    %v3226 = vld [vmem:[#allocation4 + $0x138] sm:$0xff]
    %v3227 = vld [vmem:[#allocation4 + $0x140] sm:$0xff]
    %3229 = vset.pattern.permute.xlu0 0
    %3230 = vperm.xlu0 %3229, %v3224
    %v3231 = vpop.permute.xlu0 %3230
    %3234 = vset.pattern.permute.xlu0 0
    %3235 = vperm.xlu0 %3234, %v3225
    %v3236 = vpop.permute.xlu0 %3235
    %3239 = vset.pattern.permute.xlu0 0
    %3240 = vperm.xlu0 %3239, %v3226
    %v3241 = vpop.permute.xlu0 %3240
    %3244 = vset.pattern.permute.xlu0 0
    %3245 = vperm.xlu0 %3244, %v3227
    %v3246 = vpop.permute.xlu0 %3245
    %v3248 = vadd.f32 %v3206, %v3231
    %v3249 = vadd.f32 %v3211, %v3236
    %v3250 = vadd.f32 %v3216, %v3241
    %v3251 = vadd.f32 %v3221, %v3246
    %v3252 = vmax.f32 %v3248, 0.0
    %v3253 = vmax.f32 %v3249, 0.0
    %v3254 = vmax.f32 %v3250, 0.0
    %v3255 = vmax.f32 %v3251, 0.0
    %v3256 = vld [vmem:[#allocation2 + $0x218] sm:$0xff]
    %v3257 = vld [vmem:[#allocation2 + $0x220] sm:$0xff]
    %v3259 = vsel %vm843, %v3256, 0
    %v3262 = vsel %vm843, %v3257, 0
    %3264 = vmatprep.subr.mxu0 0.0
    %3265 = vmatpush1.msra.mxu0 %v3252
    %3266 = vmatprep.subr.mxu0 0.0
    %3267 = vmatpush1.msra.mxu0 %v3253
    %3268 = vmatprep.subr.mxu0 0.0
    %3269 = vmatpush1.msra.mxu0 %v3254
    %3270 = vmatprep.subr.mxu0 0.0
    %3271 = vmatpush1.msra.mxu0 %v3255
    %3272 = vmatprep.subr.mxu0 0.0
    %3273 = vmatpush1.msra.mxu0 0.0
    %3274 = vmatprep.subr.mxu0 0.0
    %3275 = vmatpush1.msra.mxu0 0.0
    %3276 = vmatprep.subr.mxu0 0.0
    %3277 = vmatpush1.msra.mxu0 0.0
    %3278 = vmatprep.subr.mxu0 0.0
    %3279 = vmatpush1.msra.mxu0 0.0
    %3280 = vmatprep.subr.mxu0 0.0
    %3281 = vmatpush1.msra.mxu0 0.0
    %3282 = vmatprep.subr.mxu0 0.0
    %3283 = vmatpush1.msra.mxu0 0.0
    %3284 = vmatprep.subr.mxu0 0.0
    %3285 = vmatpush1.msra.mxu0 0.0
    %3286 = vmatprep.subr.mxu0 0.0
    %3287 = vmatpush1.msra.mxu0 0.0
    %3288 = vmatprep.subr.mxu0 0.0
    %3289 = vmatpush1.msra.mxu0 0.0
    %3290 = vmatprep.subr.mxu0 0.0
    %3291 = vmatpush1.msra.mxu0 0.0
    %3292 = vmatprep.subr.mxu0 0.0
    %3293 = vmatpush1.msra.mxu0 0.0
    %3294 = vmatprep.subr.mxu0 0.0
    %3295 = vmatpush1.msra.mxu0 0.0
    %3296 = vmatprep.subr.mxu0 0.0
    %3297 = vmatpush1.msra.mxu0 0.0
    %3298 = vmatprep.subr.mxu0 0.0
    %3299 = vmatpush1.msra.mxu0 0.0
    %3300 = vmatprep.subr.mxu0 0.0
    %3301 = vmatpush1.msra.mxu0 0.0
    %3302 = vmatprep.subr.mxu0 0.0
    %3303 = vmatpush1.msra.mxu0 0.0
    %3304 = vmatprep.subr.mxu0 0.0
    %3305 = vmatpush1.msra.mxu0 0.0
    %3306 = vmatprep.subr.mxu0 0.0
    %3307 = vmatpush1.msra.mxu0 0.0
    %3308 = vmatprep.subr.mxu0 0.0
    %3309 = vmatpush1.msra.mxu0 0.0
    %3310 = vmatprep.subr.mxu0 0.0
    %3311 = vmatpush1.msra.mxu0 0.0
    %3312 = vmatprep.subr.mxu0 0.0
    %3313 = vmatpush1.msra.mxu0 0.0
    %3314 = vmatprep.subr.mxu0 0.0
    %3315 = vmatpush1.msra.mxu0 0.0
    %3316 = vmatprep.subr.mxu0 0.0
    %3317 = vmatpush1.msra.mxu0 0.0
    %3318 = vmatprep.subr.mxu0 0.0
    %3319 = vmatpush1.msra.mxu0 0.0
    %3320 = vmatprep.subr.mxu0 0.0
    %3321 = vmatpush1.msra.mxu0 0.0
    %3322 = vmatprep.subr.mxu0 0.0
    %3323 = vmatpush1.msra.mxu0 0.0
    %3324 = vmatprep.subr.mxu0 0.0
    %3325 = vmatpush1.msra.mxu0 0.0
    %3326 = vmatprep.subr.mxu0 0.0
    %3327 = vmatpush1.msra.mxu0 0.0
    %3328 = vmatprep.mubr.f32.mxu0 0.0
    %3329 = vmatmul.mubr.f32.gmra.mrb[0].mxu0 %v3259
    %v3330 = vpop.f32.mrb[0].mxu0
    %v3331 = vadd.f32 0.0, %v3330
    %v3332 = vpop.f32.mrb[0].mxu0
    %3333 = vmatprep.mubr.f32.mxu0 0.0
    %3334 = vmatmul.mubr.f32.gmra.mrb[0].mxu0 %v3262
    %v3335 = vpop.f32.mrb[0].mxu0
    %v3336 = vadd.f32 0.0, %v3335
    %v3337 = vpop.f32.mrb[0].mxu0
    %3338 = vdwg.mxu0
    %v3339 = vld [vmem:[#allocation2 + $0x228] sm:$0xff]
    %v3340 = vld [vmem:[#allocation2 + $0x230] sm:$0xff]
    %v3342 = vsel %vm733, %v3339, 0
    %v3345 = vsel %vm733, %v3340, 0
    %3347 = vmatprep.subr.mxu0 0.0
    %3348 = vmatpush1.msra.mxu0 %v2808
    %3349 = vmatprep.subr.mxu0 0.0
    %3350 = vmatpush1.msra.mxu0 %v2809
    %3351 = vmatprep.subr.mxu0 0.0
    %3352 = vmatpush1.msra.mxu0 0.0
    %3353 = vmatprep.subr.mxu0 0.0
    %3354 = vmatpush1.msra.mxu0 0.0
    %3355 = vmatprep.subr.mxu0 0.0
    %3356 = vmatpush1.msra.mxu0 0.0
    %3357 = vmatprep.subr.mxu0 0.0
    %3358 = vmatpush1.msra.mxu0 0.0
    %3359 = vmatprep.subr.mxu0 0.0
    %3360 = vmatpush1.msra.mxu0 0.0
    %3361 = vmatprep.subr.mxu0 0.0
    %3362 = vmatpush1.msra.mxu0 0.0
    %3363 = vmatprep.subr.mxu0 0.0
    %3364 = vmatpush1.msra.mxu0 0.0
    %3365 = vmatprep.subr.mxu0 0.0
    %3366 = vmatpush1.msra.mxu0 0.0
    %3367 = vmatprep.subr.mxu0 0.0
    %3368 = vmatpush1.msra.mxu0 0.0
    %3369 = vmatprep.subr.mxu0 0.0
    %3370 = vmatpush1.msra.mxu0 0.0
    %3371 = vmatprep.subr.mxu0 0.0
    %3372 = vmatpush1.msra.mxu0 0.0
    %3373 = vmatprep.subr.mxu0 0.0
    %3374 = vmatpush1.msra.mxu0 0.0
    %3375 = vmatprep.subr.mxu0 0.0
    %3376 = vmatpush1.msra.mxu0 0.0
    %3377 = vmatprep.subr.mxu0 0.0
    %3378 = vmatpush1.msra.mxu0 0.0
    %3379 = vmatprep.subr.mxu0 0.0
    %3380 = vmatpush1.msra.mxu0 0.0
    %3381 = vmatprep.subr.mxu0 0.0
    %3382 = vmatpush1.msra.mxu0 0.0
    %3383 = vmatprep.subr.mxu0 0.0
    %3384 = vmatpush1.msra.mxu0 0.0
    %3385 = vmatprep.subr.mxu0 0.0
    %3386 = vmatpush1.msra.mxu0 0.0
    %3387 = vmatprep.subr.mxu0 0.0
    %3388 = vmatpush1.msra.mxu0 0.0
    %3389 = vmatprep.subr.mxu0 0.0
    %3390 = vmatpush1.msra.mxu0 0.0
    %3391 = vmatprep.subr.mxu0 0.0
    %3392 = vmatpush1.msra.mxu0 0.0
    %3393 = vmatprep.subr.mxu0 0.0
    %3394 = vmatpush1.msra.mxu0 0.0
    %3395 = vmatprep.subr.mxu0 0.0
    %3396 = vmatpush1.msra.mxu0 0.0
    %3397 = vmatprep.subr.mxu0 0.0
    %3398 = vmatpush1.msra.mxu0 0.0
    %3399 = vmatprep.subr.mxu0 0.0
    %3400 = vmatpush1.msra.mxu0 0.0
    %3401 = vmatprep.subr.mxu0 0.0
    %3402 = vmatpush1.msra.mxu0 0.0
    %3403 = vmatprep.subr.mxu0 0.0
    %3404 = vmatpush1.msra.mxu0 0.0
    %3405 = vmatprep.subr.mxu0 0.0
    %3406 = vmatpush1.msra.mxu0 0.0
    %3407 = vmatprep.subr.mxu0 0.0
    %3408 = vmatpush1.msra.mxu0 0.0
    %3409 = vmatprep.subr.mxu0 0.0
    %3410 = vmatpush1.msra.mxu0 0.0
    %3411 = vmatprep.mubr.f32.mxu0 0.0
    %3412 = vmatmul.mubr.f32.gmra.mrb[0].mxu0 %v3342
    %v3413 = vpop.f32.mrb[0].mxu0
    %v3414 = vadd.f32 0.0, %v3413
    %v3415 = vpop.f32.mrb[0].mxu0
    %3416 = vmatprep.mubr.f32.mxu0 0.0
    %3417 = vmatmul.mubr.f32.gmra.mrb[0].mxu0 %v3345
    %v3418 = vpop.f32.mrb[0].mxu0
    %v3419 = vadd.f32 0.0, %v3418
    %v3420 = vpop.f32.mrb[0].mxu0
    %3421 = vdwg.mxu0
    %v3423 = vsel %vm843, %v3331, 0
    %v3426 = vsel %vm843, %v3336, 0
    %v3429 = vsel %vm843, %v202, 0
    %v3432 = vsel %vm843, %v203, 0
    %v3435 = vsel %vm843, %v204, 0
    %v3438 = vsel %vm843, %v205, 0
    %v3441 = vsel %vm843, %v206, 0
    %v3444 = vsel %vm843, %v207, 0
    %v3447 = vsel %vm843, %v208, 0
    %v3450 = vsel %vm843, %v209, 0
    %v3453 = vsel %vm843, %v210, 0
    %v3456 = vsel %vm843, %v211, 0
    %v3459 = vsel %vm843, %v212, 0
    %v3462 = vsel %vm843, %v213, 0
    %v3465 = vsel %vm843, %v214, 0
    %v3468 = vsel %vm843, %v215, 0
    %v3471 = vsel %vm843, %v216, 0
    %v3474 = vsel %vm843, %v217, 0
    %3476 = vmatprep.subr.mxu0 0.0
    %3477 = vmatpush1.xpose.msra.mxu0 %v3429
    %3478 = vmatprep.subr.mxu0 0.0
    %3479 = vmatpush1.xpose.msra.mxu0 %v3432
    %3480 = vmatprep.subr.mxu0 0.0
    %3481 = vmatpush1.xpose.msra.mxu0 %v3435
    %3482 = vmatprep.subr.mxu0 0.0
    %3483 = vmatpush1.xpose.msra.mxu0 %v3438
    %3484 = vmatprep.subr.mxu0 0.0
    %3485 = vmatpush1.xpose.msra.mxu0 %v3441
    %3486 = vmatprep.subr.mxu0 0.0
    %3487 = vmatpush1.xpose.msra.mxu0 %v3444
    %3488 = vmatprep.subr.mxu0 0.0
    %3489 = vmatpush1.xpose.msra.mxu0 %v3447
    %3490 = vmatprep.subr.mxu0 0.0
    %3491 = vmatpush1.xpose.msra.mxu0 %v3450
    %3492 = vmatprep.subr.mxu0 0.0
    %3493 = vmatpush1.xpose.msra.mxu0 %v3453
    %3494 = vmatprep.subr.mxu0 0.0
    %3495 = vmatpush1.xpose.msra.mxu0 %v3456
    %3496 = vmatprep.subr.mxu0 0.0
    %3497 = vmatpush1.xpose.msra.mxu0 %v3459
    %3498 = vmatprep.subr.mxu0 0.0
    %3499 = vmatpush1.xpose.msra.mxu0 %v3462
    %3500 = vmatprep.subr.mxu0 0.0
    %3501 = vmatpush1.xpose.msra.mxu0 %v3465
    %3502 = vmatprep.subr.mxu0 0.0
    %3503 = vmatpush1.xpose.msra.mxu0 %v3468
    %3504 = vmatprep.subr.mxu0 0.0
    %3505 = vmatpush1.xpose.msra.mxu0 %v3471
    %3506 = vmatprep.subr.mxu0 0.0
    %3507 = vmatpush1.xpose.msra.mxu0 %v3474
    %3508 = vmatprep.subr.mxu0 0.0
    %3509 = vmatpush1.xpose.msra.mxu0 0.0
    %3510 = vmatprep.subr.mxu0 0.0
    %3511 = vmatpush1.xpose.msra.mxu0 0.0
    %3512 = vmatprep.subr.mxu0 0.0
    %3513 = vmatpush1.xpose.msra.mxu0 0.0
    %3514 = vmatprep.subr.mxu0 0.0
    %3515 = vmatpush1.xpose.msra.mxu0 0.0
    %3516 = vmatprep.subr.mxu0 0.0
    %3517 = vmatpush1.xpose.msra.mxu0 0.0
    %3518 = vmatprep.subr.mxu0 0.0
    %3519 = vmatpush1.xpose.msra.mxu0 0.0
    %3520 = vmatprep.subr.mxu0 0.0
    %3521 = vmatpush1.xpose.msra.mxu0 0.0
    %3522 = vmatprep.subr.mxu0 0.0
    %3523 = vmatpush1.xpose.msra.mxu0 0.0
    %3524 = vmatprep.subr.mxu0 0.0
    %3525 = vmatpush1.xpose.msra.mxu0 0.0
    %3526 = vmatprep.subr.mxu0 0.0
    %3527 = vmatpush1.xpose.msra.mxu0 0.0
    %3528 = vmatprep.subr.mxu0 0.0
    %3529 = vmatpush1.xpose.msra.mxu0 0.0
    %3530 = vmatprep.subr.mxu0 0.0
    %3531 = vmatpush1.xpose.msra.mxu0 0.0
    %3532 = vmatprep.subr.mxu0 0.0
    %3533 = vmatpush1.xpose.msra.mxu0 0.0
    %3534 = vmatprep.subr.mxu0 0.0
    %3535 = vmatpush1.xpose.msra.mxu0 0.0
    %3536 = vmatprep.subr.mxu0 0.0
    %3537 = vmatpush1.xpose.msra.mxu0 0.0
    %3538 = vmatprep.subr.mxu0 0.0
    %3539 = vmatpush1.xpose.msra.mxu0 0.0
    %3540 = vmatprep.mubr.f32.mxu0 0.0
    %3541 = vmatmul.mubr.f32.gmra.mrb[0].mxu0 %v3423
    %v3542 = vpop.f32.mrb[0].mxu0
    %v3543 = vadd.f32 %v3414, %v3542
    %v3544 = vpop.f32.mrb[0].mxu0
    %3545 = vmatprep.mubr.f32.mxu0 0.0
    %3546 = vmatmul.mubr.f32.gmra.mrb[0].mxu0 %v3426
    %v3547 = vpop.f32.mrb[0].mxu0
    %v3548 = vadd.f32 %v3419, %v3547
    %v3549 = vpop.f32.mrb[0].mxu0
    %3550 = vdwg.mxu0
    %v3551 = vld [vmem:[#allocation4 + $0x148] sm:$0xff]
    %v3552 = vld [vmem:[#allocation4 + $0x150] sm:$0xff]
    %3554 = vset.pattern.permute.xlu0 0
    %3555 = vperm.xlu0 %3554, %v3551
    %v3556 = vpop.permute.xlu0 %3555
    %3559 = vset.pattern.permute.xlu0 0
    %3560 = vperm.xlu0 %3559, %v3552
    %v3561 = vpop.permute.xlu0 %3560
    %v3563 = vadd.f32 %v3543, %v3556
    %v3564 = vadd.f32 %v3548, %v3561
    %v3565 = vmax.f32 %v3563, 0.0
    %v3566 = vmax.f32 %v3564, 0.0
    %v3567 = vld [vmem:[#allocation2 + $0x238] sm:$0xff]
    %v3569 = vsel %vm733, %v3567, 0
    %3571 = vmatprep.subr.mxu0 0.0
    %3572 = vmatpush1.msra.mxu0 %v3565
    %3573 = vmatprep.subr.mxu0 0.0
    %3574 = vmatpush1.msra.mxu0 %v3566
    %3575 = vmatprep.subr.mxu0 0.0
    %3576 = vmatpush1.msra.mxu0 0.0
    %3577 = vmatprep.subr.mxu0 0.0
    %3578 = vmatpush1.msra.mxu0 0.0
    %3579 = vmatprep.subr.mxu0 0.0
    %3580 = vmatpush1.msra.mxu0 0.0
    %3581 = vmatprep.subr.mxu0 0.0
    %3582 = vmatpush1.msra.mxu0 0.0
    %3583 = vmatprep.subr.mxu0 0.0
    %3584 = vmatpush1.msra.mxu0 0.0
    %3585 = vmatprep.subr.mxu0 0.0
    %3586 = vmatpush1.msra.mxu0 0.0
    %3587 = vmatprep.subr.mxu0 0.0
    %3588 = vmatpush1.msra.mxu0 0.0
    %3589 = vmatprep.subr.mxu0 0.0
    %3590 = vmatpush1.msra.mxu0 0.0
    %3591 = vmatprep.subr.mxu0 0.0
    %3592 = vmatpush1.msra.mxu0 0.0
    %3593 = vmatprep.subr.mxu0 0.0
    %3594 = vmatpush1.msra.mxu0 0.0
    %3595 = vmatprep.subr.mxu0 0.0
    %3596 = vmatpush1.msra.mxu0 0.0
    %3597 = vmatprep.subr.mxu0 0.0
    %3598 = vmatpush1.msra.mxu0 0.0
    %3599 = vmatprep.subr.mxu0 0.0
    %3600 = vmatpush1.msra.mxu0 0.0
    %3601 = vmatprep.subr.mxu0 0.0
    %3602 = vmatpush1.msra.mxu0 0.0
    %3603 = vmatprep.subr.mxu0 0.0
    %3604 = vmatpush1.msra.mxu0 0.0
    %3605 = vmatprep.subr.mxu0 0.0
    %3606 = vmatpush1.msra.mxu0 0.0
    %3607 = vmatprep.subr.mxu0 0.0
    %3608 = vmatpush1.msra.mxu0 0.0
    %3609 = vmatprep.subr.mxu0 0.0
    %3610 = vmatpush1.msra.mxu0 0.0
    %3611 = vmatprep.subr.mxu0 0.0
    %3612 = vmatpush1.msra.mxu0 0.0
    %3613 = vmatprep.subr.mxu0 0.0
    %3614 = vmatpush1.msra.mxu0 0.0
    %3615 = vmatprep.subr.mxu0 0.0
    %3616 = vmatpush1.msra.mxu0 0.0
    %3617 = vmatprep.subr.mxu0 0.0
    %3618 = vmatpush1.msra.mxu0 0.0
    %3619 = vmatprep.subr.mxu0 0.0
    %3620 = vmatpush1.msra.mxu0 0.0
    %3621 = vmatprep.subr.mxu0 0.0
    %3622 = vmatpush1.msra.mxu0 0.0
    %3623 = vmatprep.subr.mxu0 0.0
    %3624 = vmatpush1.msra.mxu0 0.0
    %3625 = vmatprep.subr.mxu0 0.0
    %3626 = vmatpush1.msra.mxu0 0.0
    %3627 = vmatprep.subr.mxu0 0.0
    %3628 = vmatpush1.msra.mxu0 0.0
    %3629 = vmatprep.subr.mxu0 0.0
    %3630 = vmatpush1.msra.mxu0 0.0
    %3631 = vmatprep.subr.mxu0 0.0
    %3632 = vmatpush1.msra.mxu0 0.0
    %3633 = vmatprep.subr.mxu0 0.0
    %3634 = vmatpush1.msra.mxu0 0.0
    %3635 = vmatprep.mubr.f32.mxu0 0.0
    %3636 = vmatmul.mubr.f32.gmra.mrb[0].mxu0 %v3569
    %v3637 = vpop.f32.mrb[0].mxu0
    %v3638 = vadd.f32 0.0, %v3637
    %v3639 = vpop.f32.mrb[0].mxu0
    %3640 = vdwg.mxu0
    %v3641 = vld [vmem:[#allocation2 + $0x240] sm:$0xff]
    %v3643 = vsel %vm243, %v3641, 0
    %3645 = vmatprep.subr.mxu0 %v390
    %3646 = vmatpush1.msra.mxu0 %v389
    %3647 = vmatprep.subr.mxu0 0.0
    %3648 = vmatpush1.msra.mxu0 0.0
    %3649 = vmatprep.subr.mxu0 0.0
    %3650 = vmatpush1.msra.mxu0 0.0
    %3651 = vmatprep.subr.mxu0 0.0
    %3652 = vmatpush1.msra.mxu0 0.0
    %3653 = vmatprep.subr.mxu0 0.0
    %3654 = vmatpush1.msra.mxu0 0.0
    %3655 = vmatprep.subr.mxu0 0.0
    %3656 = vmatpush1.msra.mxu0 0.0
    %3657 = vmatprep.subr.mxu0 0.0
    %3658 = vmatpush1.msra.mxu0 0.0
    %3659 = vmatprep.subr.mxu0 0.0
    %3660 = vmatpush1.msra.mxu0 0.0
    %3661 = vmatprep.subr.mxu0 0.0
    %3662 = vmatpush1.msra.mxu0 0.0
    %3663 = vmatprep.subr.mxu0 0.0
    %3664 = vmatpush1.msra.mxu0 0.0
    %3665 = vmatprep.subr.mxu0 0.0
    %3666 = vmatpush1.msra.mxu0 0.0
    %3667 = vmatprep.subr.mxu0 0.0
    %3668 = vmatpush1.msra.mxu0 0.0
    %3669 = vmatprep.subr.mxu0 0.0
    %3670 = vmatpush1.msra.mxu0 0.0
    %3671 = vmatprep.subr.mxu0 0.0
    %3672 = vmatpush1.msra.mxu0 0.0
    %3673 = vmatprep.subr.mxu0 0.0
    %3674 = vmatpush1.msra.mxu0 0.0
    %3675 = vmatprep.subr.mxu0 0.0
    %3676 = vmatpush1.msra.mxu0 0.0
    %3677 = vmatprep.subr.mxu0 0.0
    %3678 = vmatpush1.msra.mxu0 0.0
    %3679 = vmatprep.subr.mxu0 0.0
    %3680 = vmatpush1.msra.mxu0 0.0
    %3681 = vmatprep.subr.mxu0 0.0
    %3682 = vmatpush1.msra.mxu0 0.0
    %3683 = vmatprep.subr.mxu0 0.0
    %3684 = vmatpush1.msra.mxu0 0.0
    %3685 = vmatprep.subr.mxu0 0.0
    %3686 = vmatpush1.msra.mxu0 0.0
    %3687 = vmatprep.subr.mxu0 0.0
    %3688 = vmatpush1.msra.mxu0 0.0
    %3689 = vmatprep.subr.mxu0 0.0
    %3690 = vmatpush1.msra.mxu0 0.0
    %3691 = vmatprep.subr.mxu0 0.0
    %3692 = vmatpush1.msra.mxu0 0.0
    %3693 = vmatprep.subr.mxu0 0.0
    %3694 = vmatpush1.msra.mxu0 0.0
    %3695 = vmatprep.subr.mxu0 0.0
    %3696 = vmatpush1.msra.mxu0 0.0
    %3697 = vmatprep.subr.mxu0 0.0
    %3698 = vmatpush1.msra.mxu0 0.0
    %3699 = vmatprep.subr.mxu0 0.0
    %3700 = vmatpush1.msra.mxu0 0.0
    %3701 = vmatprep.subr.mxu0 0.0
    %3702 = vmatpush1.msra.mxu0 0.0
    %3703 = vmatprep.subr.mxu0 0.0
    %3704 = vmatpush1.msra.mxu0 0.0
    %3705 = vmatprep.subr.mxu0 0.0
    %3706 = vmatpush1.msra.mxu0 0.0
    %3707 = vmatprep.subr.mxu0 0.0
    %3708 = vmatpush1.msra.mxu0 0.0
    %3709 = vmatprep.mubr.f32.mxu0 0.0
    %3710 = vmatmul.mubr.f32.gmra.mrb[0].mxu0 %v3643
    %v3711 = vpop.f32.mrb[0].mxu0
    %v3712 = vadd.f32 0.0, %v3711
    %v3713 = vpop.f32.mrb[0].mxu0
    %v3714 = vadd.f32 0.0, %v3713
    %3715 = vdwg.mxu0
    %3716 = vmatprep.subr.mxu0 %v392
    %3717 = vmatpush1.msra.mxu0 %v391
    %3718 = vmatprep.subr.mxu0 0.0
    %3719 = vmatpush1.msra.mxu0 0.0
    %3720 = vmatprep.subr.mxu0 0.0
    %3721 = vmatpush1.msra.mxu0 0.0
    %3722 = vmatprep.subr.mxu0 0.0
    %3723 = vmatpush1.msra.mxu0 0.0
    %3724 = vmatprep.subr.mxu0 0.0
    %3725 = vmatpush1.msra.mxu0 0.0
    %3726 = vmatprep.subr.mxu0 0.0
    %3727 = vmatpush1.msra.mxu0 0.0
    %3728 = vmatprep.subr.mxu0 0.0
    %3729 = vmatpush1.msra.mxu0 0.0
    %3730 = vmatprep.subr.mxu0 0.0
    %3731 = vmatpush1.msra.mxu0 0.0
    %3732 = vmatprep.subr.mxu0 0.0
    %3733 = vmatpush1.msra.mxu0 0.0
    %3734 = vmatprep.subr.mxu0 0.0
    %3735 = vmatpush1.msra.mxu0 0.0
    %3736 = vmatprep.subr.mxu0 0.0
    %3737 = vmatpush1.msra.mxu0 0.0
    %3738 = vmatprep.subr.mxu0 0.0
    %3739 = vmatpush1.msra.mxu0 0.0
    %3740 = vmatprep.subr.mxu0 0.0
    %3741 = vmatpush1.msra.mxu0 0.0
    %3742 = vmatprep.subr.mxu0 0.0
    %3743 = vmatpush1.msra.mxu0 0.0
    %3744 = vmatprep.subr.mxu0 0.0
    %3745 = vmatpush1.msra.mxu0 0.0
    %3746 = vmatprep.subr.mxu0 0.0
    %3747 = vmatpush1.msra.mxu0 0.0
    %3748 = vmatprep.subr.mxu0 0.0
    %3749 = vmatpush1.msra.mxu0 0.0
    %3750 = vmatprep.subr.mxu0 0.0
    %3751 = vmatpush1.msra.mxu0 0.0
    %3752 = vmatprep.subr.mxu0 0.0
    %3753 = vmatpush1.msra.mxu0 0.0
    %3754 = vmatprep.subr.mxu0 0.0
    %3755 = vmatpush1.msra.mxu0 0.0
    %3756 = vmatprep.subr.mxu0 0.0
    %3757 = vmatpush1.msra.mxu0 0.0
    %3758 = vmatprep.subr.mxu0 0.0
    %3759 = vmatpush1.msra.mxu0 0.0
    %3760 = vmatprep.subr.mxu0 0.0
    %3761 = vmatpush1.msra.mxu0 0.0
    %3762 = vmatprep.subr.mxu0 0.0
    %3763 = vmatpush1.msra.mxu0 0.0
    %3764 = vmatprep.subr.mxu0 0.0
    %3765 = vmatpush1.msra.mxu0 0.0
    %3766 = vmatprep.subr.mxu0 0.0
    %3767 = vmatpush1.msra.mxu0 0.0
    %3768 = vmatprep.subr.mxu0 0.0
    %3769 = vmatpush1.msra.mxu0 0.0
    %3770 = vmatprep.subr.mxu0 0.0
    %3771 = vmatpush1.msra.mxu0 0.0
    %3772 = vmatprep.subr.mxu0 0.0
    %3773 = vmatpush1.msra.mxu0 0.0
    %3774 = vmatprep.subr.mxu0 0.0
    %3775 = vmatpush1.msra.mxu0 0.0
    %3776 = vmatprep.subr.mxu0 0.0
    %3777 = vmatpush1.msra.mxu0 0.0
    %3778 = vmatprep.subr.mxu0 0.0
    %3779 = vmatpush1.msra.mxu0 0.0
    %3780 = vmatprep.mubr.f32.mxu0 0.0
    %3781 = vmatmul.mubr.f32.gmra.mrb[0].mxu0 %v3643
    %v3782 = vpop.f32.mrb[0].mxu0
    %v3783 = vadd.f32 0.0, %v3782
    %v3784 = vpop.f32.mrb[0].mxu0
    %v3785 = vadd.f32 0.0, %v3784
    %3786 = vdwg.mxu0
    %3787 = vmatprep.subr.mxu0 0.0
    %3788 = vmatpush1.xpose.msra.mxu0 %v122
    %3789 = vmatprep.subr.mxu0 0.0
    %3790 = vmatpush1.xpose.msra.mxu0 %v123
    %3791 = vmatprep.subr.mxu0 0.0
    %3792 = vmatpush1.xpose.msra.mxu0 %v124
    %3793 = vmatprep.subr.mxu0 0.0
    %3794 = vmatpush1.xpose.msra.mxu0 %v125
    %3795 = vmatprep.subr.mxu0 0.0
    %3796 = vmatpush1.xpose.msra.mxu0 %v126
    %3797 = vmatprep.subr.mxu0 0.0
    %3798 = vmatpush1.xpose.msra.mxu0 %v127
    %3799 = vmatprep.subr.mxu0 0.0
    %3800 = vmatpush1.xpose.msra.mxu0 %v128
    %3801 = vmatprep.subr.mxu0 0.0
    %3802 = vmatpush1.xpose.msra.mxu0 %v129
    %3803 = vmatprep.subr.mxu0 0.0
    %3804 = vmatpush1.xpose.msra.mxu0 %v130
    %3805 = vmatprep.subr.mxu0 0.0
    %3806 = vmatpush1.xpose.msra.mxu0 %v131
    %3807 = vmatprep.subr.mxu0 0.0
    %3808 = vmatpush1.xpose.msra.mxu0 %v132
    %3809 = vmatprep.subr.mxu0 0.0
    %3810 = vmatpush1.xpose.msra.mxu0 %v133
    %3811 = vmatprep.subr.mxu0 0.0
    %3812 = vmatpush1.xpose.msra.mxu0 %v134
    %3813 = vmatprep.subr.mxu0 0.0
    %3814 = vmatpush1.xpose.msra.mxu0 %v135
    %3815 = vmatprep.subr.mxu0 0.0
    %3816 = vmatpush1.xpose.msra.mxu0 %v136
    %3817 = vmatprep.subr.mxu0 0.0
    %3818 = vmatpush1.xpose.msra.mxu0 %v137
    %3819 = vmatprep.subr.mxu0 0.0
    %3820 = vmatpush1.xpose.msra.mxu0 %v138
    %3821 = vmatprep.subr.mxu0 0.0
    %3822 = vmatpush1.xpose.msra.mxu0 %v139
    %3823 = vmatprep.subr.mxu0 0.0
    %3824 = vmatpush1.xpose.msra.mxu0 %v140
    %3825 = vmatprep.subr.mxu0 0.0
    %3826 = vmatpush1.xpose.msra.mxu0 %v141
    %3827 = vmatprep.subr.mxu0 0.0
    %3828 = vmatpush1.xpose.msra.mxu0 %v142
    %3829 = vmatprep.subr.mxu0 0.0
    %3830 = vmatpush1.xpose.msra.mxu0 %v143
    %3831 = vmatprep.subr.mxu0 0.0
    %3832 = vmatpush1.xpose.msra.mxu0 %v144
    %3833 = vmatprep.subr.mxu0 0.0
    %3834 = vmatpush1.xpose.msra.mxu0 %v145
    %3835 = vmatprep.subr.mxu0 0.0
    %3836 = vmatpush1.xpose.msra.mxu0 %v146
    %3837 = vmatprep.subr.mxu0 0.0
    %3838 = vmatpush1.xpose.msra.mxu0 %v147
    %3839 = vmatprep.subr.mxu0 0.0
    %3840 = vmatpush1.xpose.msra.mxu0 %v148
    %3841 = vmatprep.subr.mxu0 0.0
    %3842 = vmatpush1.xpose.msra.mxu0 %v149
    %3843 = vmatprep.subr.mxu0 0.0
    %3844 = vmatpush1.xpose.msra.mxu0 %v150
    %3845 = vmatprep.subr.mxu0 0.0
    %3846 = vmatpush1.xpose.msra.mxu0 %v151
    %3847 = vmatprep.subr.mxu0 0.0
    %3848 = vmatpush1.xpose.msra.mxu0 %v152
    %3849 = vmatprep.subr.mxu0 0.0
    %3850 = vmatpush1.xpose.msra.mxu0 %v153
    %3851 = vmatprep.mubr.f32.mxu0 0.0
    %3852 = vmatmul.mubr.f32.gmra.mrb[0].mxu0 %v3638
    %v3853 = vpop.f32.mrb[0].mxu0
    %v3854 = vadd.f32 %v3712, %v3853
    %v3855 = vpop.f32.mrb[0].mxu0
    %v3856 = vadd.f32 %v3714, %v3855
    %3857 = vdwg.mxu0
    %3858 = vmatprep.subr.mxu0 0.0
    %3859 = vmatpush1.xpose.msra.mxu0 %v154
    %3860 = vmatprep.subr.mxu0 0.0
    %3861 = vmatpush1.xpose.msra.mxu0 %v155
    %3862 = vmatprep.subr.mxu0 0.0
    %3863 = vmatpush1.xpose.msra.mxu0 %v156
    %3864 = vmatprep.subr.mxu0 0.0
    %3865 = vmatpush1.xpose.msra.mxu0 %v157
    %3866 = vmatprep.subr.mxu0 0.0
    %3867 = vmatpush1.xpose.msra.mxu0 %v158
    %3868 = vmatprep.subr.mxu0 0.0
    %3869 = vmatpush1.xpose.msra.mxu0 %v159
    %3870 = vmatprep.subr.mxu0 0.0
    %3871 = vmatpush1.xpose.msra.mxu0 %v160
    %3872 = vmatprep.subr.mxu0 0.0
    %3873 = vmatpush1.xpose.msra.mxu0 %v161
    %3874 = vmatprep.subr.mxu0 0.0
    %3875 = vmatpush1.xpose.msra.mxu0 %v162
    %3876 = vmatprep.subr.mxu0 0.0
    %3877 = vmatpush1.xpose.msra.mxu0 %v163
    %3878 = vmatprep.subr.mxu0 0.0
    %3879 = vmatpush1.xpose.msra.mxu0 %v164
    %3880 = vmatprep.subr.mxu0 0.0
    %3881 = vmatpush1.xpose.msra.mxu0 %v165
    %3882 = vmatprep.subr.mxu0 0.0
    %3883 = vmatpush1.xpose.msra.mxu0 %v166
    %3884 = vmatprep.subr.mxu0 0.0
    %3885 = vmatpush1.xpose.msra.mxu0 %v167
    %3886 = vmatprep.subr.mxu0 0.0
    %3887 = vmatpush1.xpose.msra.mxu0 %v168
    %3888 = vmatprep.subr.mxu0 0.0
    %3889 = vmatpush1.xpose.msra.mxu0 %v169
    %3890 = vmatprep.subr.mxu0 0.0
    %3891 = vmatpush1.xpose.msra.mxu0 %v170
    %3892 = vmatprep.subr.mxu0 0.0
    %3893 = vmatpush1.xpose.msra.mxu0 %v171
    %3894 = vmatprep.subr.mxu0 0.0
    %3895 = vmatpush1.xpose.msra.mxu0 %v172
    %3896 = vmatprep.subr.mxu0 0.0
    %3897 = vmatpush1.xpose.msra.mxu0 %v173
    %3898 = vmatprep.subr.mxu0 0.0
    %3899 = vmatpush1.xpose.msra.mxu0 %v174
    %3900 = vmatprep.subr.mxu0 0.0
    %3901 = vmatpush1.xpose.msra.mxu0 %v175
    %3902 = vmatprep.subr.mxu0 0.0
    %3903 = vmatpush1.xpose.msra.mxu0 %v176
    %3904 = vmatprep.subr.mxu0 0.0
    %3905 = vmatpush1.xpose.msra.mxu0 %v177
    %3906 = vmatprep.subr.mxu0 0.0
    %3907 = vmatpush1.xpose.msra.mxu0 %v178
    %3908 = vmatprep.subr.mxu0 0.0
    %3909 = vmatpush1.xpose.msra.mxu0 %v179
    %3910 = vmatprep.subr.mxu0 0.0
    %3911 = vmatpush1.xpose.msra.mxu0 %v180
    %3912 = vmatprep.subr.mxu0 0.0
    %3913 = vmatpush1.xpose.msra.mxu0 %v181
    %3914 = vmatprep.subr.mxu0 0.0
    %3915 = vmatpush1.xpose.msra.mxu0 %v182
    %3916 = vmatprep.subr.mxu0 0.0
    %3917 = vmatpush1.xpose.msra.mxu0 %v183
    %3918 = vmatprep.subr.mxu0 0.0
    %3919 = vmatpush1.xpose.msra.mxu0 %v184
    %3920 = vmatprep.subr.mxu0 0.0
    %3921 = vmatpush1.xpose.msra.mxu0 %v185
    %3922 = vmatprep.mubr.f32.mxu0 0.0
    %3923 = vmatmul.mubr.f32.gmra.mrb[0].mxu0 %v3638
    %v3924 = vpop.f32.mrb[0].mxu0
    %v3925 = vadd.f32 %v3783, %v3924
    %v3926 = vpop.f32.mrb[0].mxu0
    %v3927 = vadd.f32 %v3785, %v3926
    %3928 = vdwg.mxu0
    %v3929 = vld [vmem:[#allocation4 + $0x158] sm:$0xff]
    %3931 = vset.pattern.permute.xlu0 0
    %3932 = vperm.xlu0 %3931, %v3929
    %v3933 = vpop.permute.xlu0 %3932
    %v3935 = vadd.f32 %v3854, %v3933
    %v3936 = vadd.f32 %v3856, %v3933
    %v3937 = vadd.f32 %v3925, %v3933
    %v3938 = vadd.f32 %v3927, %v3933
    %v3939 = vmax.f32 %v3935, 0.0
    %v3940 = vmax.f32 %v3936, 0.0
    %v3941 = vmax.f32 %v3937, 0.0
    %v3942 = vmax.f32 %v3938, 0.0
    %v3943 = vld [vmem:[#allocation2 + $0x248] sm:$0x1]
    %v3944 = vld [vmem:[#allocation4 + $0x160] sm:$0x1]
    %3946 = vset.pattern.permute.xlu0 0
    %3947 = vperm.xlu0 %3946, %v3944
    %v3948 = vpop.permute.xlu0 %3947
    %v3951 = vsel %vm243, %v3943, 0
    %3953 = vmatprep.subr.mxu0 %v3940
    %3954 = vmatpush1.msra.mxu0 %v3939
    %3955 = vmatprep.subr.mxu0 0.0
    %3956 = vmatpush1.msra.mxu0 0.0
    %3957 = vmatprep.subr.mxu0 0.0
    %3958 = vmatpush1.msra.mxu0 0.0
    %3959 = vmatprep.subr.mxu0 0.0
    %3960 = vmatpush1.msra.mxu0 0.0
    %3961 = vmatprep.subr.mxu0 0.0
    %3962 = vmatpush1.msra.mxu0 0.0
    %3963 = vmatprep.subr.mxu0 0.0
    %3964 = vmatpush1.msra.mxu0 0.0
    %3965 = vmatprep.subr.mxu0 0.0
    %3966 = vmatpush1.msra.mxu0 0.0
    %3967 = vmatprep.subr.mxu0 0.0
    %3968 = vmatpush1.msra.mxu0 0.0
    %3969 = vmatprep.subr.mxu0 0.0
    %3970 = vmatpush1.msra.mxu0 0.0
    %3971 = vmatprep.subr.mxu0 0.0
    %3972 = vmatpush1.msra.mxu0 0.0
    %3973 = vmatprep.subr.mxu0 0.0
    %3974 = vmatpush1.msra.mxu0 0.0
    %3975 = vmatprep.subr.mxu0 0.0
    %3976 = vmatpush1.msra.mxu0 0.0
    %3977 = vmatprep.subr.mxu0 0.0
    %3978 = vmatpush1.msra.mxu0 0.0
    %3979 = vmatprep.subr.mxu0 0.0
    %3980 = vmatpush1.msra.mxu0 0.0
    %3981 = vmatprep.subr.mxu0 0.0
    %3982 = vmatpush1.msra.mxu0 0.0
    %3983 = vmatprep.subr.mxu0 0.0
    %3984 = vmatpush1.msra.mxu0 0.0
    %3985 = vmatprep.subr.mxu0 0.0
    %3986 = vmatpush1.msra.mxu0 0.0
    %3987 = vmatprep.subr.mxu0 0.0
    %3988 = vmatpush1.msra.mxu0 0.0
    %3989 = vmatprep.subr.mxu0 0.0
    %3990 = vmatpush1.msra.mxu0 0.0
    %3991 = vmatprep.subr.mxu0 0.0
    %3992 = vmatpush1.msra.mxu0 0.0
    %3993 = vmatprep.subr.mxu0 0.0
    %3994 = vmatpush1.msra.mxu0 0.0
    %3995 = vmatprep.subr.mxu0 0.0
    %3996 = vmatpush1.msra.mxu0 0.0
    %3997 = vmatprep.subr.mxu0 0.0
    %3998 = vmatpush1.msra.mxu0 0.0
    %3999 = vmatprep.subr.mxu0 0.0
    %4000 = vmatpush1.msra.mxu0 0.0
    %4001 = vmatprep.subr.mxu0 0.0
    %4002 = vmatpush1.msra.mxu0 0.0
    %4003 = vmatprep.subr.mxu0 0.0
    %4004 = vmatpush1.msra.mxu0 0.0
    %4005 = vmatprep.subr.mxu0 0.0
    %4006 = vmatpush1.msra.mxu0 0.0
    %4007 = vmatprep.subr.mxu0 0.0
    %4008 = vmatpush1.msra.mxu0 0.0
    %4009 = vmatprep.subr.mxu0 0.0
    %4010 = vmatpush1.msra.mxu0 0.0
    %4011 = vmatprep.subr.mxu0 0.0
    %4012 = vmatpush1.msra.mxu0 0.0
    %4013 = vmatprep.subr.mxu0 0.0
    %4014 = vmatpush1.msra.mxu0 0.0
    %4015 = vmatprep.subr.mxu0 0.0
    %4016 = vmatpush1.msra.mxu0 0.0
    %4017 = vmatprep.mubr.f32.mxu0 0.0
    %4018 = vmatmul.mubr.f32.gmra.mrb[0].mxu0 %v3951
    %v4019 = vpop.f32.mrb[0].mxu0
    %v4020 = vadd.f32 %v3948, %v4019
    %v4021 = vpop.f32.mrb[0].mxu0
    %v4022 = vadd.f32 %v3948, %v4021
    %4023 = vdwg.mxu0
    %4024 = vmatprep.subr.mxu0 %v3942
    %4025 = vmatpush1.msra.mxu0 %v3941
    %4026 = vmatprep.subr.mxu0 0.0
    %4027 = vmatpush1.msra.mxu0 0.0
    %4028 = vmatprep.subr.mxu0 0.0
    %4029 = vmatpush1.msra.mxu0 0.0
    %4030 = vmatprep.subr.mxu0 0.0
    %4031 = vmatpush1.msra.mxu0 0.0
    %4032 = vmatprep.subr.mxu0 0.0
    %4033 = vmatpush1.msra.mxu0 0.0
    %4034 = vmatprep.subr.mxu0 0.0
    %4035 = vmatpush1.msra.mxu0 0.0
    %4036 = vmatprep.subr.mxu0 0.0
    %4037 = vmatpush1.msra.mxu0 0.0
    %4038 = vmatprep.subr.mxu0 0.0
    %4039 = vmatpush1.msra.mxu0 0.0
    %4040 = vmatprep.subr.mxu0 0.0
    %4041 = vmatpush1.msra.mxu0 0.0
    %4042 = vmatprep.subr.mxu0 0.0
    %4043 = vmatpush1.msra.mxu0 0.0
    %4044 = vmatprep.subr.mxu0 0.0
    %4045 = vmatpush1.msra.mxu0 0.0
    %4046 = vmatprep.subr.mxu0 0.0
    %4047 = vmatpush1.msra.mxu0 0.0
    %4048 = vmatprep.subr.mxu0 0.0
    %4049 = vmatpush1.msra.mxu0 0.0
    %4050 = vmatprep.subr.mxu0 0.0
    %4051 = vmatpush1.msra.mxu0 0.0
    %4052 = vmatprep.subr.mxu0 0.0
    %4053 = vmatpush1.msra.mxu0 0.0
    %4054 = vmatprep.subr.mxu0 0.0
    %4055 = vmatpush1.msra.mxu0 0.0
    %4056 = vmatprep.subr.mxu0 0.0
    %4057 = vmatpush1.msra.mxu0 0.0
    %4058 = vmatprep.subr.mxu0 0.0
    %4059 = vmatpush1.msra.mxu0 0.0
    %4060 = vmatprep.subr.mxu0 0.0
    %4061 = vmatpush1.msra.mxu0 0.0
    %4062 = vmatprep.subr.mxu0 0.0
    %4063 = vmatpush1.msra.mxu0 0.0
    %4064 = vmatprep.subr.mxu0 0.0
    %4065 = vmatpush1.msra.mxu0 0.0
    %4066 = vmatprep.subr.mxu0 0.0
    %4067 = vmatpush1.msra.mxu0 0.0
    %4068 = vmatprep.subr.mxu0 0.0
    %4069 = vmatpush1.msra.mxu0 0.0
    %4070 = vmatprep.subr.mxu0 0.0
    %4071 = vmatpush1.msra.mxu0 0.0
    %4072 = vmatprep.subr.mxu0 0.0
    %4073 = vmatpush1.msra.mxu0 0.0
    %4074 = vmatprep.subr.mxu0 0.0
    %4075 = vmatpush1.msra.mxu0 0.0
    %4076 = vmatprep.subr.mxu0 0.0
    %4077 = vmatpush1.msra.mxu0 0.0
    %4078 = vmatprep.subr.mxu0 0.0
    %4079 = vmatpush1.msra.mxu0 0.0
    %4080 = vmatprep.subr.mxu0 0.0
    %4081 = vmatpush1.msra.mxu0 0.0
    %4082 = vmatprep.subr.mxu0 0.0
    %4083 = vmatpush1.msra.mxu0 0.0
    %4084 = vmatprep.subr.mxu0 0.0
    %4085 = vmatpush1.msra.mxu0 0.0
    %4086 = vmatprep.subr.mxu0 0.0
    %4087 = vmatpush1.msra.mxu0 0.0
    %4088 = vmatprep.mubr.f32.mxu0 0.0
    %4089 = vmatmul.mubr.f32.gmra.mrb[0].mxu0 %v3951
    %v4090 = vpop.f32.mrb[0].mxu0
    %v4091 = vadd.f32 %v3948, %v4090
    %v4092 = vpop.f32.mrb[0].mxu0
    %v4093 = vadd.f32 %v3948, %v4092
    %4094 = vdwg.mxu0
    %v4099 = vcombine.low %v4020, %v4022
    %v4100 = vcombine.low %v4091, %v4093
    %v4102 = vunpack.c.l.s4 1966171168
    %v4103 = vunpack.c.0.s8 %v4102
    %v4104 = vlaneseq
    %v4105 = vshrl.u32 %v4104, 7
    %v4106 = vsub.s32 %v4103, %v4105
    %v4107 = vrot.slane %v4099, %v4106
    %v4109 = vunpack.c.l.s4 1966171168
    %v4110 = vunpack.c.0.s8 %v4109
    %v4111 = vlaneseq
    %v4112 = vshrl.u32 %v4111, 7
    %v4113 = vsub.s32 %v4110, %v4112
    %v4114 = vrot.slane %v4100, %v4113
    %v4115 = vcombine.low %v4107, %v4114
    %v4117 = vunpack.c.l.s4 1966171168
    %v4118 = vunpack.c.0.s8 %v4117
    %v4119 = vlaneseq
    %v4120 = vshrl.u32 %v4119, 7
    %v4121 = vsub.s32 %v4118, %v4120
    %v4122 = vrot.slane %v4115, %v4121
    %v4124 = vlaneseq
    %vm4125 = vcmp.ge.s32.totalorder %v4124, 0
    %vm4126 = vcmp.lt.s32.totalorder %v4124, 512
    %vm4127 = vmand %vm4125, %vm4126
    %4128 = vst.msk [vmem:[%s4] sm:$0xf] %vm4127, %v4122
    // Predicated region
    $region30: #{_lambda_.1} parent=1 // pred_check
      _
    $region31: #{_lambda_.1} parent=1 // pred_check_branch
      %4130 = sbr.rel (0) target = $region33
    $region32: #{_lambda_.1} parent=1 // pred_region
      _
    $region33: #{_lambda_.1} parent=1 // pred_fallthru
      _
    // Predicated region
    $region34: #{_lambda_.1} parent=1 // pred_check
      _
    $region35: #{_lambda_.1} parent=1 // pred_check_branch
      %4132 = sbr.rel (0) target = $region37
    $region36: #{_lambda_.1} parent=1 // pred_region
      _
    $region37: #{_lambda_.1} parent=1 // pred_fallthru
      _
    %4133 = vsyncpa [#allocation3], 1
    %4134 = vsyncpa [#allocation5], 1

</llo_original>
